<compile_context>
chip_gen: v6e
topology: v6e:2x2x1
jax: 0.10.0
libtpu: 0.0.40
codegen_flags: <defaults>
</compile_context>

<pallas_src>
import functools

import jax
import jax.numpy as jnp
from jax.experimental import pallas as pl
from jax.experimental.pallas import tpu as pltpu

_LANE = 128
_VMEM_LIMIT = 32 * 1024 * 1024  # safe on v5e / v6e / v7x


def _round_up(x, m):
    return ((x + m - 1) // m) * m


# --------------------------------------------------------------------------
# Kernel 1: fused feature transform   T = X @ [W_nei | W_root], bias folded
# into the root half:  T_root = X @ W_root + b
# --------------------------------------------------------------------------
def _transform_kernel(x_ref, w_ref, b_ref, tn_ref, tr_ref):
    xw = jnp.dot(x_ref[...].astype(jnp.bfloat16), w_ref[...],
                 preferred_element_type=jnp.float32)      # [TM, 2*F_pad]
    f = tn_ref.shape[1]                                   # F_pad (128-aligned)
    tn_ref[...] = xw[:, :f].astype(jnp.bfloat16)          # neighbor part (bf16)
    tr_ref[...] = xw[:, f:] + b_ref[...]                  # root part + bias (f32)


# --------------------------------------------------------------------------
# Kernel 2: mean-aggregation + root + activation
#   out[i] = act( sum_k A[i,k] @ T_nei[k] + T_root[i] )
# --------------------------------------------------------------------------
def _sage_agg_kernel(a_ref, tn_ref, tr_ref, o_ref, acc_ref, *,
                     activation, valid_cols):
    k = pl.program_id(1)

    @pl.when(k == 0)
    def _():
        acc_ref[...] = jnp.zeros_like(acc_ref)

    acc_ref[...] += jnp.dot(a_ref[...], tn_ref[...],
                            preferred_element_type=jnp.float32)

    @pl.when(k == pl.num_programs(1) - 1)
    def _():
        h = acc_ref[...] + tr_ref[...]
        if activation == "relu":
            o_ref[...] = jnp.maximum(h, 0.0)
        else:  # masked log_softmax over the real (unpadded) columns
            col = jax.lax.broadcasted_iota(jnp.int32, h.shape, 1)
            h = jnp.where(col < valid_cols, h, -1e30)
            m = jnp.max(h, axis=1, keepdims=True)
            z = h - m
            lse = jnp.log(jnp.sum(jnp.exp(z), axis=1, keepdims=True))
            o_ref[...] = z - lse


# --------------------------------------------------------------------------
# One SAGE layer = transform pass + aggregation pass
# --------------------------------------------------------------------------
def _sage_layer(a_pad, feat, w_stack, b_pad, *, activation, valid_cols, block_n):
    n_pad, f_in = feat.shape
    f_pad = w_stack.shape[1] // 2
    n_blk = n_pad // block_n

    cparams_1d = pltpu.CompilerParams(
        dimension_semantics=("parallel",), vmem_limit_bytes=_VMEM_LIMIT)
    cparams_2d = pltpu.CompilerParams(
        dimension_semantics=("parallel", "arbitrary"),
        vmem_limit_bytes=_VMEM_LIMIT)

    # --- pass 1: T = feat @ [W_nei | W_root] (+ bias on root), row-tiled ---
    t_nei, t_root = pl.pallas_call(
        _transform_kernel,
        grid=(n_blk,),
        in_specs=(pl.BlockSpec((block_n, f_in), lambda i: (i, 0)),
                  pl.BlockSpec((f_in, 2 * f_pad), lambda i: (0, 0)),
                  pl.BlockSpec((1, f_pad), lambda i: (0, 0))),
        out_specs=(pl.BlockSpec((block_n, f_pad), lambda i: (i, 0)),
                   pl.BlockSpec((block_n, f_pad), lambda i: (i, 0))),
        out_shape=(jax.ShapeDtypeStruct((n_pad, f_pad), jnp.bfloat16),
                   jax.ShapeDtypeStruct((n_pad, f_pad), jnp.float32)),
        compiler_params=cparams_1d,
    )(feat, w_stack, b_pad)

    # --- pass 2: tiled A @ T_nei reduction + finalize ---------------------
    kernel = functools.partial(_sage_agg_kernel,
                               activation=activation, valid_cols=valid_cols)
    cost = pl.CostEstimate(
        flops=2 * n_pad * n_pad * f_pad,
        transcendentals=(n_pad * f_pad) if activation == "log_softmax" else 0,
        bytes_accessed=(n_pad * n_pad * 2            # A (bf16), read once
                        + n_blk * n_pad * f_pad * 2  # T_nei re-read per row tile
                        + n_pad * f_pad * 8))        # T_root (f32) + out (f32)
    out = pl.pallas_call(
        kernel,
        grid=(n_blk, n_blk),
        in_specs=(pl.BlockSpec((block_n, block_n), lambda i, k: (i, k)),  # A
                  pl.BlockSpec((block_n, f_pad), lambda i, k: (k, 0)),    # T_nei
                  pl.BlockSpec((block_n, f_pad), lambda i, k: (i, 0))),   # T_root
        out_specs=pl.BlockSpec((block_n, f_pad), lambda i, k: (i, 0)),
        out_shape=jax.ShapeDtypeStruct((n_pad, f_pad), jnp.float32),
        scratch_shapes=[pltpu.VMEM((block_n, f_pad), jnp.float32)],
        compiler_params=cparams_2d,
        cost_estimate=cost,
    )(a_pad, t_nei, t_root)
    return out


# --------------------------------------------------------------------------
# Wrapper (plain-JAX glue: adjacency build, padding, weight stacking)
# --------------------------------------------------------------------------
def _pad_stack_weights(w_nei, w_root, f_in_pad, f_out_pad):
    f_in, f_out = w_nei.shape
    ws = jnp.zeros((f_in_pad, 2 * f_out_pad), jnp.float32)
    ws = ws.at[:f_in, :f_out].set(w_nei)
    ws = ws.at[:f_in, f_out_pad:f_out_pad + f_out].set(w_root)
    return ws.astype(jnp.bfloat16)


def _pad_bias(b, f_out_pad):
    return jnp.zeros((1, f_out_pad), jnp.float32).at[:, :b.shape[1]].set(b)


def net_forward(x, edge_index, params, *, block_n=128):
    """x: [N, Cin] f32, edge_index: [2, E] int32 (row 0 = src, row 1 = dst)."""
    n, in_ch = x.shape
    w1l, w1r, b1, w2l, w2r, b2 = params
    hidden = w1l.shape[1]
    out_ch = w2l.shape[1]

    # Dense mean-aggregation matrix (row-normalized by in-degree, clamped >=1).
    src, dst = edge_index[0], edge_index[1]
    adj = jnp.zeros((n, n), jnp.float32).at[dst, src].add(1.0)
    deg = jnp.maximum(adj.sum(axis=1, keepdims=True), 1.0)
    a_norm = adj / deg

    # Pad node count to a tile multiple; bf16 operand for the MXU.
    n_pad = _round_up(n, block_n)
    a_pad = jnp.zeros((n_pad, n_pad), jnp.bfloat16)
    a_pad = a_pad.at[:n, :n].set(a_norm.astype(jnp.bfloat16))
    x_pad = jnp.zeros((n_pad, in_ch), jnp.float32).at[:n, :].set(x)

    h_pad = _round_up(hidden, _LANE)
    c_pad = _round_up(out_ch, _LANE)

    # ---- layer 1: SAGEConv(in_ch -> hidden) + ReLU ----
    w1_stack = _pad_stack_weights(w1l, w1r, in_ch, h_pad)
    b1_pad = _pad_bias(b1, h_pad)
    h1 = _sage_layer(a_pad, x_pad, w1_stack, b1_pad,
                     activation="relu", valid_cols=hidden, block_n=block_n)

    # F.dropout(p=0.5) is identity in eval mode.
    # TODO(synk): training-mode dropout via pltpu.prng_seed / prng_random_bits.

    # ---- layer 2: SAGEConv(hidden -> out_ch) + log_softmax ----
    w2_stack = _pad_stack_weights(w2l, w2r, h_pad, c_pad)
    b2_pad = _pad_bias(b2, c_pad)
    out_pad = _sage_layer(a_pad, h1, w2_stack, b2_pad,
                          activation="log_softmax", valid_cols=out_ch,
                          block_n=block_n)

    return out_pad[:n, :out_ch]


def init_params(key, in_channels, hidden, out_channels):
    ks = jax.random.split(key, 4)
    s1 = 1.0 / jnp.sqrt(in_channels)
    s2 = 1.0 / jnp.sqrt(hidden)
    w1l = jax.random.normal(ks[0], (in_channels, hidden), jnp.float32) * s1
    w1r = jax.random.normal(ks[1], (in_channels, hidden), jnp.float32) * s1
    b1 = jnp.zeros((1, hidden), jnp.float32)
    w2l = jax.random.normal(ks[2], (hidden, out_channels), jnp.float32) * s2
    w2r = jax.random.normal(ks[3], (hidden, out_channels), jnp.float32) * s2
    b2 = jnp.zeros((1, out_channels), jnp.float32)
    return (w1l, w1r, b1, w2l, w2r, b2)


def _reference(x, edge_index, params):
    """Pure-JAX f32 reference of the same forward pass."""
    n = x.shape[0]
    src, dst = edge_index[0], edge_index[1]
    adj = jnp.zeros((n, n), jnp.float32).at[dst, src].add(1.0)
    deg = jnp.maximum(adj.sum(axis=1, keepdims=True), 1.0)
    a = adj / deg
    w1l, w1r, b1, w2l, w2r, b2 = params
    h1 = jnp.maximum(a @ (x @ w1l) + x @ w1r + b1, 0.0)
    h2 = a @ (h1 @ w2l) + h1 @ w2r + b2
    return jax.nn.log_softmax(h2, axis=1)


if __name__ == "__main__":
    key = jax.random.PRNGKey(0)
    k_x, k_e, k_p = jax.random.split(key, 3)

    N, IN_CH, HIDDEN, OUT_CH, E = 256, 32, 16, 8, 1024

    x = jax.random.normal(k_x, (N, IN_CH), jnp.float32)
    edge_index = jax.random.randint(k_e, (2, E), 0, N, dtype=jnp.int32)
    params = init_params(k_p, IN_CH, HIDDEN, OUT_CH)

    fwd = jax.jit(functools.partial(net_forward, block_n=128))
    out = fwd(x, edge_index, params)
    out = jax.block_until_ready(out)

    assert out.shape == (N, OUT_CH)
    # log_softmax rows must sum (in prob space) to ~1
    assert jnp.allclose(jnp.sum(jnp.exp(out), axis=1), 1.0, atol=1e-3)
    # match the f32 reference within bf16 tolerance
    ref = _reference(x, edge_index, params)
    max_err = float(jnp.max(jnp.abs(out - ref)))
    assert max_err < 0.1, f"max abs err vs reference: {max_err}"
    print("KERNEL_OK")
</pallas_src>

<mosaic_0001>
module attributes {stable_mosaic.version = 11 : i64} {
  func.func private @main(%arg0: i32) attributes {dimension_semantics = [#tpu.dimension_semantics<core_parallel>], iteration_bounds = array<i64: 2>, tpu.core_type = #tpu.core_type<sc_scalar_subcore>, window_params = []} {
    return
  }
}

module attributes {stable_mosaic.version = 11 : i64} {
  func.func private @main(%arg0: i32) attributes {dimension_semantics = [#tpu.dimension_semantics<core_parallel>], iteration_bounds = array<i64: 2>, tpu.core_type = #tpu.core_type<sc_scalar_subcore>, window_params = []} {
    return
  }
}

module attributes {stable_mosaic.version = 11 : i64} {
  func.func @_transform_kernel(%arg0: i32, %arg1: memref<128x32xf32, #tpu.memory_space<vmem>>, %arg2: memref<32x256xbf16, #tpu.memory_space<vmem>>, %arg3: memref<1x128xf32, #tpu.memory_space<vmem>>, %arg4: memref<128x128xbf16, #tpu.memory_space<vmem>>, %arg5: memref<128x128xf32, #tpu.memory_space<vmem>>) attributes {dimension_semantics = [#tpu.dimension_semantics<parallel>], iteration_bounds = array<i64: 2>, scalar_prefetch = 0 : i64, scratch_operands = 0 : i64, tpu.core_type = #tpu.core_type<tc>, window_params = [{transform_indices = @transform_0, window_bounds = array<i64: 128, 32>}, {pipeline_mode = #tpu.pipeline_mode<synchronous>, transform_indices = @transform_1, window_bounds = array<i64: 32, 256>}, {pipeline_mode = #tpu.pipeline_mode<synchronous>, transform_indices = @transform_2, window_bounds = array<i64: 1, 128>}, {transform_indices = @transform_3, window_bounds = array<i64: 128, 128>}, {transform_indices = @transform_4, window_bounds = array<i64: 128, 128>}]} {
    %c0 = arith.constant 0 : index
    %c0_0 = arith.constant 0 : index
    %0 = vector.load %arg1[%c0, %c0_0] : memref<128x32xf32, #tpu.memory_space<vmem>>, vector<128x32xf32>
    %1 = arith.truncf %0 : vector<128x32xf32> to vector<128x32xbf16>
    %c0_1 = arith.constant 0 : index
    %c0_2 = arith.constant 0 : index
    %2 = vector.load %arg2[%c0_1, %c0_2] : memref<32x256xbf16, #tpu.memory_space<vmem>>, vector<32x256xbf16>
    %cst = arith.constant dense<0.000000e+00> : vector<128x256xf32>
    %3 = tpu.matmul %1, %2, %cst {dimension_numbers = #tpu.dot_dimension_numbers<[1], [0], [0], [1], [0, 0, 1, 1], [], []>} : vector<128x32xbf16>, vector<32x256xbf16>, vector<128x256xf32> -> vector<128x256xf32>
    %4 = vector.extract_strided_slice %3 {offsets = [0, 0], sizes = [128, 128], strides = [1, 1]} : vector<128x256xf32> to vector<128x128xf32>
    %5 = arith.truncf %4 : vector<128x128xf32> to vector<128x128xbf16>
    %c0_3 = arith.constant 0 : index
    %c0_4 = arith.constant 0 : index
    %6 = vector.load %arg4[%c0_3, %c0_4] : memref<128x128xbf16, #tpu.memory_space<vmem>>, vector<128x128xbf16>
    tpu.vector_store %arg4[%c0_3, %c0_4], %5 {strides = array<i32>} : memref<128x128xbf16, #tpu.memory_space<vmem>>, vector<128x128xbf16>,
    %7 = vector.extract_strided_slice %3 {offsets = [0, 128], sizes = [128, 128], strides = [1, 1]} : vector<128x256xf32> to vector<128x128xf32>
    %c0_5 = arith.constant 0 : index
    %c0_6 = arith.constant 0 : index
    %8 = vector.load %arg3[%c0_5, %c0_6] : memref<1x128xf32, #tpu.memory_space<vmem>>, vector<1x128xf32>
    %9 = vector.broadcast %8 : vector<1x128xf32> to vector<128x128xf32>
    %10 = arith.addf %7, %9 : vector<128x128xf32>
    %c0_7 = arith.constant 0 : index
    %c0_8 = arith.constant 0 : index
    %11 = vector.load %arg5[%c0_7, %c0_8] : memref<128x128xf32, #tpu.memory_space<vmem>>, vector<128x128xf32>
    tpu.vector_store %arg5[%c0_7, %c0_8], %10 {strides = array<i32>} : memref<128x128xf32, #tpu.memory_space<vmem>>, vector<128x128xf32>,
    return
  }
  func.func @transform_0(%arg0: i32) -> (i32, i32) {
    %c0_i32 = arith.constant 0 : i32
    %c0_i32_0 = arith.constant 0 : i32
    return %arg0, %c0_i32 : i32, i32
  }
  func.func @transform_1(%arg0: i32) -> (i32, i32) {
    %c0_i32 = arith.constant 0 : i32
    %c0_i32_0 = arith.constant 0 : i32
    %c0_i32_1 = arith.constant 0 : i32
    return %c0_i32, %c0_i32_0 : i32, i32
  }
  func.func @transform_2(%arg0: i32) -> (i32, i32) {
    %c0_i32 = arith.constant 0 : i32
    %c0_i32_0 = arith.constant 0 : i32
    %c0_i32_1 = arith.constant 0 : i32
    return %c0_i32, %c0_i32_0 : i32, i32
  }
  func.func @transform_3(%arg0: i32) -> (i32, i32) {
    %c0_i32 = arith.constant 0 : i32
    %c0_i32_0 = arith.constant 0 : i32
    return %arg0, %c0_i32 : i32, i32
  }
  func.func @transform_4(%arg0: i32) -> (i32, i32) {
    %c0_i32 = arith.constant 0 : i32
    %c0_i32_0 = arith.constant 0 : i32
    return %arg0, %c0_i32 : i32, i32
  }
}

module attributes {stable_mosaic.version = 11 : i64} {
  func.func @_sage_agg_kernel(%arg0: i32, %arg1: i32, %arg2: memref<128x128xbf16, #tpu.memory_space<vmem>>, %arg3: memref<128x128xbf16, #tpu.memory_space<vmem>>, %arg4: memref<128x128xf32, #tpu.memory_space<vmem>>, %arg5: memref<128x128xf32, #tpu.memory_space<vmem>>, %arg6: memref<128x128xf32, #tpu.memory_space<vmem>>) attributes {dimension_semantics = [#tpu.dimension_semantics<parallel>, #tpu.dimension_semantics<arbitrary>], iteration_bounds = array<i64: 2, 2>, scalar_prefetch = 0 : i64, scratch_operands = 1 : i64, tpu.core_type = #tpu.core_type<tc>, window_params = [{transform_indices = @transform_0, window_bounds = array<i64: 128, 128>}, {transform_indices = @transform_1, window_bounds = array<i64: 128, 128>}, {transform_indices = @transform_2, window_bounds = array<i64: 128, 128>}, {transform_indices = @transform_3, window_bounds = array<i64: 128, 128>}]} {
    %c0_i32 = arith.constant 0 : i32
    %0 = arith.cmpi eq, %arg1, %c0_i32 : i32
    %1 = arith.extui %0 : i1 to i32
    %c0_i32_0 = arith.constant 0 : i32
    %2 = arith.cmpi ne, %1, %c0_i32_0 : i32
    scf.if %2 {
      %cst_9 = arith.constant 0.000000e+00 : f32
      %12 = vector.broadcast %cst_9 : f32 to vector<128x128xf32>
      %c0_10 = arith.constant 0 : index
      %c0_11 = arith.constant 0 : index
      %13 = vector.load %arg6[%c0_10, %c0_11] : memref<128x128xf32, #tpu.memory_space<vmem>>, vector<128x128xf32>
      tpu.vector_store %arg6[%c0_10, %c0_11], %12 {strides = array<i32>} : memref<128x128xf32, #tpu.memory_space<vmem>>, vector<128x128xf32>,
    } else {
    }
    %c0 = arith.constant 0 : index
    %c0_1 = arith.constant 0 : index
    %3 = vector.load %arg6[%c0, %c0_1] : memref<128x128xf32, #tpu.memory_space<vmem>>, vector<128x128xf32>
    %c0_2 = arith.constant 0 : index
    %c0_3 = arith.constant 0 : index
    %4 = vector.load %arg2[%c0_2, %c0_3] : memref<128x128xbf16, #tpu.memory_space<vmem>>, vector<128x128xbf16>
    %c0_4 = arith.constant 0 : index
    %c0_5 = arith.constant 0 : index
    %5 = vector.load %arg3[%c0_4, %c0_5] : memref<128x128xbf16, #tpu.memory_space<vmem>>, vector<128x128xbf16>
    %cst = arith.constant dense<0.000000e+00> : vector<128x128xf32>
    %6 = tpu.matmul %4, %5, %cst {dimension_numbers = #tpu.dot_dimension_numbers<[1], [0], [0], [1], [0, 0, 1, 1], [], []>} : vector<128x128xbf16>, vector<128x128xbf16>, vector<128x128xf32> -> vector<128x128xf32>
    %7 = arith.addf %3, %6 : vector<128x128xf32>
    %c0_6 = arith.constant 0 : index
    %c0_7 = arith.constant 0 : index
    %8 = vector.load %arg6[%c0_6, %c0_7] : memref<128x128xf32, #tpu.memory_space<vmem>>, vector<128x128xf32>
    tpu.vector_store %arg6[%c0_6, %c0_7], %7 {strides = array<i32>} : memref<128x128xf32, #tpu.memory_space<vmem>>, vector<128x128xf32>,
    %c1_i32 = arith.constant 1 : i32
    %9 = arith.cmpi eq, %arg1, %c1_i32 : i32
    %10 = arith.extui %9 : i1 to i32
    %c0_i32_8 = arith.constant 0 : i32
    %11 = arith.cmpi ne, %10, %c0_i32_8 : i32
    scf.if %11 {
      %c0_9 = arith.constant 0 : index
      %c0_10 = arith.constant 0 : index
      %12 = vector.load %arg6[%c0_9, %c0_10] : memref<128x128xf32, #tpu.memory_space<vmem>>, vector<128x128xf32>
      %c0_11 = arith.constant 0 : index
      %c0_12 = arith.constant 0 : index
      %13 = vector.load %arg4[%c0_11, %c0_12] : memref<128x128xf32, #tpu.memory_space<vmem>>, vector<128x128xf32>
      %14 = arith.addf %12, %13 : vector<128x128xf32>
      %cst_13 = arith.constant 0.000000e+00 : f32
      %15 = vector.broadcast %cst_13 : f32 to vector<128x128xf32>
      %16 = arith.maximumf %14, %15 : vector<128x128xf32>
      %c0_14 = arith.constant 0 : index
      %c0_15 = arith.constant 0 : index
      %17 = vector.load %arg5[%c0_14, %c0_15] : memref<128x128xf32, #tpu.memory_space<vmem>>, vector<128x128xf32>
      tpu.vector_store %arg5[%c0_14, %c0_15], %16 {strides = array<i32>} : memref<128x128xf32, #tpu.memory_space<vmem>>, vector<128x128xf32>,
    } else {
    }
    return
  }
  func.func @transform_0(%arg0: i32, %arg1: i32) -> (i32, i32) {
    %c0_i32 = arith.constant 0 : i32
    return %arg0, %arg1 : i32, i32
  }
  func.func @transform_1(%arg0: i32, %arg1: i32) -> (i32, i32) {
    %c0_i32 = arith.constant 0 : i32
    %c0_i32_0 = arith.constant 0 : i32
    return %arg1, %c0_i32 : i32, i32
  }
  func.func @transform_2(%arg0: i32, %arg1: i32) -> (i32, i32) {
    %c0_i32 = arith.constant 0 : i32
    %c0_i32_0 = arith.constant 0 : i32
    return %arg0, %c0_i32 : i32, i32
  }
  func.func @transform_3(%arg0: i32, %arg1: i32) -> (i32, i32) {
    %c0_i32 = arith.constant 0 : i32
    %c0_i32_0 = arith.constant 0 : i32
    return %arg0, %c0_i32 : i32, i32
  }
}

module attributes {stable_mosaic.version = 11 : i64} {
  func.func @_transform_kernel(%arg0: i32, %arg1: memref<128x128xf32, #tpu.memory_space<vmem>>, %arg2: memref<128x256xbf16, #tpu.memory_space<vmem>>, %arg3: memref<1x128xf32, #tpu.memory_space<vmem>>, %arg4: memref<128x128xbf16, #tpu.memory_space<vmem>>, %arg5: memref<128x128xf32, #tpu.memory_space<vmem>>) attributes {dimension_semantics = [#tpu.dimension_semantics<parallel>], iteration_bounds = array<i64: 2>, scalar_prefetch = 0 : i64, scratch_operands = 0 : i64, tpu.core_type = #tpu.core_type<tc>, window_params = [{transform_indices = @transform_0, window_bounds = array<i64: 128, 128>}, {pipeline_mode = #tpu.pipeline_mode<synchronous>, transform_indices = @transform_1, window_bounds = array<i64: 128, 256>}, {pipeline_mode = #tpu.pipeline_mode<synchronous>, transform_indices = @transform_2, window_bounds = array<i64: 1, 128>}, {transform_indices = @transform_3, window_bounds = array<i64: 128, 128>}, {transform_indices = @transform_4, window_bounds = array<i64: 128, 128>}]} {
    %c0 = arith.constant 0 : index
    %c0_0 = arith.constant 0 : index
    %0 = vector.load %arg1[%c0, %c0_0] : memref<128x128xf32, #tpu.memory_space<vmem>>, vector<128x128xf32>
    %1 = arith.truncf %0 : vector<128x128xf32> to vector<128x128xbf16>
    %c0_1 = arith.constant 0 : index
    %c0_2 = arith.constant 0 : index
    %2 = vector.load %arg2[%c0_1, %c0_2] : memref<128x256xbf16, #tpu.memory_space<vmem>>, vector<128x256xbf16>
    %cst = arith.constant dense<0.000000e+00> : vector<128x256xf32>
    %3 = tpu.matmul %1, %2, %cst {dimension_numbers = #tpu.dot_dimension_numbers<[1], [0], [0], [1], [0, 0, 1, 1], [], []>} : vector<128x128xbf16>, vector<128x256xbf16>, vector<128x256xf32> -> vector<128x256xf32>
    %4 = vector.extract_strided_slice %3 {offsets = [0, 0], sizes = [128, 128], strides = [1, 1]} : vector<128x256xf32> to vector<128x128xf32>
    %5 = arith.truncf %4 : vector<128x128xf32> to vector<128x128xbf16>
    %c0_3 = arith.constant 0 : index
    %c0_4 = arith.constant 0 : index
    %6 = vector.load %arg4[%c0_3, %c0_4] : memref<128x128xbf16, #tpu.memory_space<vmem>>, vector<128x128xbf16>
    tpu.vector_store %arg4[%c0_3, %c0_4], %5 {strides = array<i32>} : memref<128x128xbf16, #tpu.memory_space<vmem>>, vector<128x128xbf16>,
    %7 = vector.extract_strided_slice %3 {offsets = [0, 128], sizes = [128, 128], strides = [1, 1]} : vector<128x256xf32> to vector<128x128xf32>
    %c0_5 = arith.constant 0 : index
    %c0_6 = arith.constant 0 : index
    %8 = vector.load %arg3[%c0_5, %c0_6] : memref<1x128xf32, #tpu.memory_space<vmem>>, vector<1x128xf32>
    %9 = vector.broadcast %8 : vector<1x128xf32> to vector<128x128xf32>
    %10 = arith.addf %7, %9 : vector<128x128xf32>
    %c0_7 = arith.constant 0 : index
    %c0_8 = arith.constant 0 : index
    %11 = vector.load %arg5[%c0_7, %c0_8] : memref<128x128xf32, #tpu.memory_space<vmem>>, vector<128x128xf32>
    tpu.vector_store %arg5[%c0_7, %c0_8], %10 {strides = array<i32>} : memref<128x128xf32, #tpu.memory_space<vmem>>, vector<128x128xf32>,
    return
  }
  func.func @transform_0(%arg0: i32) -> (i32, i32) {
    %c0_i32 = arith.constant 0 : i32
    %c0_i32_0 = arith.constant 0 : i32
    return %arg0, %c0_i32 : i32, i32
  }
  func.func @transform_1(%arg0: i32) -> (i32, i32) {
    %c0_i32 = arith.constant 0 : i32
    %c0_i32_0 = arith.constant 0 : i32
    %c0_i32_1 = arith.constant 0 : i32
    return %c0_i32, %c0_i32_0 : i32, i32
  }
  func.func @transform_2(%arg0: i32) -> (i32, i32) {
    %c0_i32 = arith.constant 0 : i32
    %c0_i32_0 = arith.constant 0 : i32
    %c0_i32_1 = arith.constant 0 : i32
    return %c0_i32, %c0_i32_0 : i32, i32
  }
  func.func @transform_3(%arg0: i32) -> (i32, i32) {
    %c0_i32 = arith.constant 0 : i32
    %c0_i32_0 = arith.constant 0 : i32
    return %arg0, %c0_i32 : i32, i32
  }
  func.func @transform_4(%arg0: i32) -> (i32, i32) {
    %c0_i32 = arith.constant 0 : i32
    %c0_i32_0 = arith.constant 0 : i32
    return %arg0, %c0_i32 : i32, i32
  }
}

module attributes {stable_mosaic.version = 11 : i64} {
  func.func @_sage_agg_kernel(%arg0: i32, %arg1: i32, %arg2: memref<128x128xbf16, #tpu.memory_space<vmem>>, %arg3: memref<128x128xbf16, #tpu.memory_space<vmem>>, %arg4: memref<128x128xf32, #tpu.memory_space<vmem>>, %arg5: memref<128x128xf32, #tpu.memory_space<vmem>>, %arg6: memref<128x128xf32, #tpu.memory_space<vmem>>) attributes {dimension_semantics = [#tpu.dimension_semantics<parallel>, #tpu.dimension_semantics<arbitrary>], iteration_bounds = array<i64: 2, 2>, scalar_prefetch = 0 : i64, scratch_operands = 1 : i64, tpu.core_type = #tpu.core_type<tc>, window_params = [{transform_indices = @transform_0, window_bounds = array<i64: 128, 128>}, {transform_indices = @transform_1, window_bounds = array<i64: 128, 128>}, {transform_indices = @transform_2, window_bounds = array<i64: 128, 128>}, {transform_indices = @transform_3, window_bounds = array<i64: 128, 128>}]} {
    %c0_i32 = arith.constant 0 : i32
    %0 = arith.cmpi eq, %arg1, %c0_i32 : i32
    %1 = arith.extui %0 : i1 to i32
    %c0_i32_0 = arith.constant 0 : i32
    %2 = arith.cmpi ne, %1, %c0_i32_0 : i32
    scf.if %2 {
      %cst_9 = arith.constant 0.000000e+00 : f32
      %12 = vector.broadcast %cst_9 : f32 to vector<128x128xf32>
      %c0_10 = arith.constant 0 : index
      %c0_11 = arith.constant 0 : index
      %13 = vector.load %arg6[%c0_10, %c0_11] : memref<128x128xf32, #tpu.memory_space<vmem>>, vector<128x128xf32>
      tpu.vector_store %arg6[%c0_10, %c0_11], %12 {strides = array<i32>} : memref<128x128xf32, #tpu.memory_space<vmem>>, vector<128x128xf32>,
    } else {
    }
    %c0 = arith.constant 0 : index
    %c0_1 = arith.constant 0 : index
    %3 = vector.load %arg6[%c0, %c0_1] : memref<128x128xf32, #tpu.memory_space<vmem>>, vector<128x128xf32>
    %c0_2 = arith.constant 0 : index
    %c0_3 = arith.constant 0 : index
    %4 = vector.load %arg2[%c0_2, %c0_3] : memref<128x128xbf16, #tpu.memory_space<vmem>>, vector<128x128xbf16>
    %c0_4 = arith.constant 0 : index
    %c0_5 = arith.constant 0 : index
    %5 = vector.load %arg3[%c0_4, %c0_5] : memref<128x128xbf16, #tpu.memory_space<vmem>>, vector<128x128xbf16>
    %cst = arith.constant dense<0.000000e+00> : vector<128x128xf32>
    %6 = tpu.matmul %4, %5, %cst {dimension_numbers = #tpu.dot_dimension_numbers<[1], [0], [0], [1], [0, 0, 1, 1], [], []>} : vector<128x128xbf16>, vector<128x128xbf16>, vector<128x128xf32> -> vector<128x128xf32>
    %7 = arith.addf %3, %6 : vector<128x128xf32>
    %c0_6 = arith.constant 0 : index
    %c0_7 = arith.constant 0 : index
    %8 = vector.load %arg6[%c0_6, %c0_7] : memref<128x128xf32, #tpu.memory_space<vmem>>, vector<128x128xf32>
    tpu.vector_store %arg6[%c0_6, %c0_7], %7 {strides = array<i32>} : memref<128x128xf32, #tpu.memory_space<vmem>>, vector<128x128xf32>,
    %c1_i32 = arith.constant 1 : i32
    %9 = arith.cmpi eq, %arg1, %c1_i32 : i32
    %10 = arith.extui %9 : i1 to i32
    %c0_i32_8 = arith.constant 0 : i32
    %11 = arith.cmpi ne, %10, %c0_i32_8 : i32
    scf.if %11 {
      %c0_9 = arith.constant 0 : index
      %c0_10 = arith.constant 0 : index
      %12 = vector.load %arg6[%c0_9, %c0_10] : memref<128x128xf32, #tpu.memory_space<vmem>>, vector<128x128xf32>
      %c0_11 = arith.constant 0 : index
      %c0_12 = arith.constant 0 : index
      %13 = vector.load %arg4[%c0_11, %c0_12] : memref<128x128xf32, #tpu.memory_space<vmem>>, vector<128x128xf32>
      %14 = arith.addf %12, %13 : vector<128x128xf32>
      %15 = tpu.iota {dimensions = array<i32: 1>} : vector<128x128xi32>
      %c8_i32 = arith.constant 8 : i32
      %16 = vector.broadcast %c8_i32 : i32 to vector<128x128xi32>
      %17 = arith.cmpi slt, %15, %16 : vector<128x128xi32>
      %cst_13 = arith.constant -1.000000e+30 : f32
      %18 = vector.broadcast %cst_13 : f32 to vector<128x128xf32>
      %19 = arith.select %17, %14, %18 : vector<128x128xi1>, vector<128x128xf32>
      %cst_14 = arith.constant dense<0xFF800000> : vector<128xf32>
      %20 = vector.multi_reduction <maximumf>, %19, %cst_14 [1] : vector<128x128xf32> to vector<128xf32>
      %21 = vector.shape_cast %20 : vector<128xf32> to vector<128x1xf32>
      %22 = vector.broadcast %21 : vector<128x1xf32> to vector<128x128xf32>
      %23 = arith.subf %19, %22 : vector<128x128xf32>
      %24 = math.exp %23 : vector<128x128xf32>
      %cst_15 = arith.constant dense<0.000000e+00> : vector<128xf32>
      %25 = vector.multi_reduction <add>, %24, %cst_15 [1] : vector<128x128xf32> to vector<128xf32>
      %26 = vector.shape_cast %25 : vector<128xf32> to vector<128x1xf32>
      %27 = math.log %26 : vector<128x1xf32>
      %28 = vector.broadcast %27 : vector<128x1xf32> to vector<128x128xf32>
      %29 = arith.subf %23, %28 : vector<128x128xf32>
      %c0_16 = arith.constant 0 : index
      %c0_17 = arith.constant 0 : index
      %30 = vector.load %arg5[%c0_16, %c0_17] : memref<128x128xf32, #tpu.memory_space<vmem>>, vector<128x128xf32>
      tpu.vector_store %arg5[%c0_16, %c0_17], %29 {strides = array<i32>} : memref<128x128xf32, #tpu.memory_space<vmem>>, vector<128x128xf32>,
    } else {
    }
    return
  }
  func.func @transform_0(%arg0: i32, %arg1: i32) -> (i32, i32) {
    %c0_i32 = arith.constant 0 : i32
    return %arg0, %arg1 : i32, i32
  }
  func.func @transform_1(%arg0: i32, %arg1: i32) -> (i32, i32) {
    %c0_i32 = arith.constant 0 : i32
    %c0_i32_0 = arith.constant 0 : i32
    return %arg1, %c0_i32 : i32, i32
  }
  func.func @transform_2(%arg0: i32, %arg1: i32) -> (i32, i32) {
    %c0_i32 = arith.constant 0 : i32
    %c0_i32_0 = arith.constant 0 : i32
    return %arg0, %c0_i32 : i32, i32
  }
  func.func @transform_3(%arg0: i32, %arg1: i32) -> (i32, i32) {
    %c0_i32 = arith.constant 0 : i32
    %c0_i32_0 = arith.constant 0 : i32
    return %arg0, %c0_i32 : i32, i32
  }
}

</mosaic_0001>

<llo_original>
// kernel: net_forward.5
$region0: #{net_forward.5}
  #allocation0 [shape = 'u32[]', space=smem, size = 0x4, offset = 0x4, fixed_abs, tag = 'smem constant byte address 0x4 - core index']
  #allocation1 [shape = 'u32[144,128]{1,0:T(1,128)}', space=vmem, size = 0x12000, scoped, tag = 'internal scratch']
  #allocation2 [shape = 'f32[128,128]{1,0:T(8,128)}', space=vmem, size = 0x10000, scoped, tag = 'scratch operand']
  %s0 = inlined_call_operand.vmem [shape: bf16[256,256], index: 0, kind: input, shape index: {}]
  %s1 = inlined_call_operand.vmem [shape: bf16[256,128], index: 1, kind: input, shape index: {}]
  %s2 = inlined_call_operand.vmem [shape: f32[256,128], index: 2, kind: input, shape index: {}]
  %s3 = inlined_call_operand.vmem [shape: f32[256,128], index: 3, kind: output, shape index: {}]
  %s4 = sld [smem:[#allocation0]]
  $region94: #{net_forward.5} parent=0
    _
  %s6 = ssub.s32 1, %s4
  %s7 = scalar_select 0, %s6, %s4
  $region1: #{net_forward.5} parent=0
    #allocation3 [shape = 'u8[65536]{0}', space=vmem, size = 0x10000, scoped, tag = 'input window, operand 0']
    loop: start=0, step=1, limit=6
    $region2: #{net_forward.5} parent=1 // loop_pre_header
      _
    $region3: #{net_forward.5} parent=1 // loop_header
      %s9 = sphi 0, %s13
      %p10 = scmp.ge.s32.totalorder %s9, 6
      %s16 = sphi 0, %s28
      %s17 = sphi 0, %s24
      %s18 = sphi 0, %s16
      %s19 = sphi 0, %s17
      %s20 = sphi 0, %s18
      %s21 = sphi 0, %s19
      %s33 = sphi 0, %s35
      %s36 = sphi 0, %s33
      %s37 = sphi 0, %s36
      %s53 = sphi 0, %s37
      %s59 = sphi 0, %s61
      %s62 = sphi 0, %s59
      %s63 = sphi 0, %s62
      %s79 = sphi 0, %s63
      %s85 = sphi 0, %s87
      %s88 = sphi 0, %s85
      %s89 = sphi 0, %s88
      %s105 = sphi 0, %s89
      %s111 = sphi 0, %s113
      %s114 = sphi 0, %s111
      %s115 = sphi 0, %s114
      %s131 = sphi 0, %s115
    $region4: #{net_forward.5} parent=1 // loop_header_branch
      %12 = sbr.rel (%p10) target = $region8
    $region5: #{net_forward.5} parent=1 // loop_body
      %s14 = ssub.s32 %s9, 1
      %s15 = ssub.s32 %s9, 2
      %s22 = sadd.s32 1, %s17
      %p23 = scmp.ge.s32.totalorder %s22, 2
      %s24 = scalar_select %p23, 0, %s22
      %s25 = sadd.s32 1, %s16
      %s26 = scalar_select %p23, %s25, %s16
      %p27 = scmp.ge.s32.totalorder %s26, 2
      %s28 = scalar_select %p27, 0, %s26
      %s29 = ssub.s32 %s16, %s28
      %s30 = ssub.s32 %s17, %s24
      %s31 = sor.u32 %s29, %s30
      %p32 = scmp.eq.s32.totalorder %s31, 0
      %s34 = sadd.s32 %s33, 1
      %s35 = scalar_select %p32, %s33, %s34
      %p38 = pneg %p32
      %p39 = scmp.eq.s32.totalorder %s9, 3
      %p40 = por %p38, %p39
      %p41 = scmp.ne.s32.totalorder %s33, %s36
      %p42 = scmp.eq.s32.totalorder %s9, 0
      %p43 = por %p41, %p42
      %p44 = scmp.ne.s32.totalorder %s33, %s36
      %p45 = scmp.eq.s32.totalorder %s14, 3
      %p46 = por %p44, %p45
      %p47 = scmp.ne.s32.totalorder %s36, %s37
      %p48 = scmp.eq.s32.totalorder %s14, 0
      %p49 = por %p47, %p48
      %p50 = scmp.ne.s32.totalorder %s36, %s37
      %p51 = scmp.eq.s32.totalorder %s15, 3
      %p52 = por %p50, %p51
      %p54 = scmp.ne.s32.totalorder %s37, %s53
      %p55 = scmp.eq.s32.totalorder %s15, 0
      %p56 = por %p54, %p55
      %s57 = ssub.s32 %s17, %s24
      %p58 = scmp.eq.s32.totalorder %s57, 0
      %s60 = sadd.s32 %s59, 1
      %s61 = scalar_select %p58, %s59, %s60
      %p64 = pneg %p58
      %p65 = scmp.eq.s32.totalorder %s9, 3
      %p66 = por %p64, %p65
      %p67 = scmp.ne.s32.totalorder %s59, %s62
      %p68 = scmp.eq.s32.totalorder %s9, 0
      %p69 = por %p67, %p68
      %p70 = scmp.ne.s32.totalorder %s59, %s62
      %p71 = scmp.eq.s32.totalorder %s14, 3
      %p72 = por %p70, %p71
      %p73 = scmp.ne.s32.totalorder %s62, %s63
      %p74 = scmp.eq.s32.totalorder %s14, 0
      %p75 = por %p73, %p74
      %p76 = scmp.ne.s32.totalorder %s62, %s63
      %p77 = scmp.eq.s32.totalorder %s15, 3
      %p78 = por %p76, %p77
      %p80 = scmp.ne.s32.totalorder %s63, %s79
      %p81 = scmp.eq.s32.totalorder %s15, 0
      %p82 = por %p80, %p81
      %s83 = ssub.s32 %s16, %s28
      %p84 = scmp.eq.s32.totalorder %s83, 0
      %s86 = sadd.s32 %s85, 1
      %s87 = scalar_select %p84, %s85, %s86
      %p90 = pneg %p84
      %p91 = scmp.eq.s32.totalorder %s9, 3
      %p92 = por %p90, %p91
      %p93 = scmp.ne.s32.totalorder %s85, %s88
      %p94 = scmp.eq.s32.totalorder %s9, 0
      %p95 = por %p93, %p94
      %p96 = scmp.ne.s32.totalorder %s85, %s88
      %p97 = scmp.eq.s32.totalorder %s14, 3
      %p98 = por %p96, %p97
      %p99 = scmp.ne.s32.totalorder %s88, %s89
      %p100 = scmp.eq.s32.totalorder %s14, 0
      %p101 = por %p99, %p100
      %p102 = scmp.ne.s32.totalorder %s88, %s89
      %p103 = scmp.eq.s32.totalorder %s15, 3
      %p104 = por %p102, %p103
      %p106 = scmp.ne.s32.totalorder %s89, %s105
      %p107 = scmp.eq.s32.totalorder %s15, 0
      %p108 = por %p106, %p107
      %s109 = ssub.s32 %s16, %s28
      %p110 = scmp.eq.s32.totalorder %s109, 0
      %s112 = sadd.s32 %s111, 1
      %s113 = scalar_select %p110, %s111, %s112
      %p116 = pneg %p110
      %p117 = scmp.eq.s32.totalorder %s9, 3
      %p118 = por %p116, %p117
      %p119 = scmp.ne.s32.totalorder %s111, %s114
      %p120 = scmp.eq.s32.totalorder %s9, 0
      %p121 = por %p119, %p120
      %p122 = scmp.ne.s32.totalorder %s111, %s114
      %p123 = scmp.eq.s32.totalorder %s14, 3
      %p124 = por %p122, %p123
      %p125 = scmp.ne.s32.totalorder %s114, %s115
      %p126 = scmp.eq.s32.totalorder %s14, 0
      %p127 = por %p125, %p126
      %p128 = scmp.ne.s32.totalorder %s114, %s115
      %p129 = scmp.eq.s32.totalorder %s15, 3
      %p130 = por %p128, %p129
      %p132 = scmp.ne.s32.totalorder %s115, %s131
      %p133 = scmp.eq.s32.totalorder %s15, 0
      %p134 = por %p132, %p133
      %p135 = scmp.le.s32.totalorder 1, %s9
      %p136 = scmp.lt.s32.totalorder %s9, 5
      %p137 = pnand %p135, %p136
      %p138 = pneg %p137
      // Predicated region
      $region9: #{net_forward.5} parent=5 // pred_check
        _
      $region10: #{net_forward.5} parent=5 // pred_check_branch
        %140 = sbr.rel (%p137) target = $region12
      $region11: #{net_forward.5} parent=5 // pred_region
        %s141 = ssub.s32 %s9, 1
      $region12: #{net_forward.5} parent=5 // pred_fallthru
        _
      %p142 = scmp.lt.s32.totalorder %s9, 4
      // Predicated region
      $region13: #{net_forward.5} parent=5 // pred_check
        %p143 = pneg %p142
      $region14: #{net_forward.5} parent=5 // pred_check_branch
        %145 = sbr.rel (%p143) target = $region16
      $region15: #{net_forward.5} parent=5 // pred_region
        // Predicated region
        $region17: #{net_forward.5} parent=15 // pred_check
          %p146 = pneg %p43
        $region18: #{net_forward.5} parent=15 // pred_check_branch
          %148 = sbr.rel (%p146) target = $region20
        $region19: #{net_forward.5} parent=15 // pred_region
          %s149 = sand.u32 %s33, 1
          %s150 = sand.u32 %s33, 1
          %s151 = smul.addr %s150, 64
          %s152 = scalar_lea.vmem [#allocation3], %s151
          %s153 = smul.u32 16, %s16
          %s154 = smul.addr %s153, 2
          %s155 = sadd.s32 %s17, %s154
          %s156 = smul.addr %s155, 4
          %s157 = scalar_lea.vmem %s0, %s156
          // Predicated region
          $region21: #{net_forward.5} parent=19 // pred_check
            _
          $region22: #{net_forward.5} parent=19 // pred_check_branch
            %159 = sbr.rel (0) target = $region24
          $region23: #{net_forward.5} parent=19 // pred_region
            // Predicated region
            $region25: #{net_forward.5} parent=23 // pred_check
              _
            $region26: #{net_forward.5} parent=23 // pred_check_branch
              %161 = sbr.rel target = $region28
            $region27: #{net_forward.5} parent=23 // pred_region
              // Predicated region
              $region40: #{net_forward.5} parent=27 // pred_check
                _
              $region41: #{net_forward.5} parent=27 // pred_check_branch
                %207 = sbr.rel (0) target = $region43
              $region42: #{net_forward.5} parent=27 // pred_region
                loop: start=0, step=1, limit=1
                $region44: #{net_forward.5} parent=42 // loop_pre_header
                  _
                $region45: #{net_forward.5} parent=42 // loop_header
                  %s209 = sphi 0, %s213
                  %p210 = scmp.ge.s32.totalorder %s209, 1
                  %s214 = sphi %s157, %s157
                  %s215 = sphi %s152, %s152
                $region46: #{net_forward.5} parent=42 // loop_header_branch
                  %212 = sbr.rel (%p210) target = $region50
                $region47: #{net_forward.5} parent=42 // loop_body
                  _
                $region48: #{net_forward.5} parent=42 // loop_footer
                  %s213 = sadd.s32 1, %s209
                $region49: #{net_forward.5} parent=42 // loop_footer_branch
                  %208 = sbr.rel target = $region45
                $region50: #{net_forward.5} parent=42 // loop_exit
                  _
                %s217 = ssub.s32 16, 1
                loop: start=0, step=1, limit=1
                $region51: #{net_forward.5} parent=42 // loop_pre_header
                  _
                $region52: #{net_forward.5} parent=42 // loop_header
                  %s219 = sphi 0, %s223
                  %p220 = scmp.ge.s32.totalorder %s219, 1
                  %s224 = sphi %s157, %s157
                  %s225 = sphi %s152, %s152
                $region53: #{net_forward.5} parent=42 // loop_header_branch
                  %222 = sbr.rel (%p220) target = $region57
                $region54: #{net_forward.5} parent=42 // loop_body
                  %v226 = vld [vmem:[%s224] sm:%s217]
                  %227 = vst [vmem:[%s225] sm:%s217] %v226
                  %v228 = vld [vmem:[%s224 + $0x8] sm:%s217]
                  %229 = vst [vmem:[%s225 + $0x4] sm:%s217] %v228
                  %v230 = vld [vmem:[%s224 + $0x10] sm:%s217]
                  %231 = vst [vmem:[%s225 + $0x8] sm:%s217] %v230
                  %v232 = vld [vmem:[%s224 + $0x18] sm:%s217]
                  %233 = vst [vmem:[%s225 + $0xc] sm:%s217] %v232
                  %v234 = vld [vmem:[%s224 + $0x20] sm:%s217]
                  %235 = vst [vmem:[%s225 + $0x10] sm:%s217] %v234
                  %v236 = vld [vmem:[%s224 + $0x28] sm:%s217]
                  %237 = vst [vmem:[%s225 + $0x14] sm:%s217] %v236
                  %v238 = vld [vmem:[%s224 + $0x30] sm:%s217]
                  %239 = vst [vmem:[%s225 + $0x18] sm:%s217] %v238
                  %v240 = vld [vmem:[%s224 + $0x38] sm:%s217]
                  %241 = vst [vmem:[%s225 + $0x1c] sm:%s217] %v240
                  %v242 = vld [vmem:[%s224 + $0x40] sm:%s217]
                  %243 = vst [vmem:[%s225 + $0x20] sm:%s217] %v242
                  %v244 = vld [vmem:[%s224 + $0x48] sm:%s217]
                  %245 = vst [vmem:[%s225 + $0x24] sm:%s217] %v244
                  %v246 = vld [vmem:[%s224 + $0x50] sm:%s217]
                  %247 = vst [vmem:[%s225 + $0x28] sm:%s217] %v246
                  %v248 = vld [vmem:[%s224 + $0x58] sm:%s217]
                  %249 = vst [vmem:[%s225 + $0x2c] sm:%s217] %v248
                  %v250 = vld [vmem:[%s224 + $0x60] sm:%s217]
                  %251 = vst [vmem:[%s225 + $0x30] sm:%s217] %v250
                  %v252 = vld [vmem:[%s224 + $0x68] sm:%s217]
                  %253 = vst [vmem:[%s225 + $0x34] sm:%s217] %v252
                  %v254 = vld [vmem:[%s224 + $0x70] sm:%s217]
                  %255 = vst [vmem:[%s225 + $0x38] sm:%s217] %v254
                  %v256 = vld [vmem:[%s224 + $0x78] sm:%s217]
                  %257 = vst [vmem:[%s225 + $0x3c] sm:%s217] %v256
                $region55: #{net_forward.5} parent=42 // loop_footer
                  %s223 = sadd.s32 1, %s219
                $region56: #{net_forward.5} parent=42 // loop_footer_branch
                  %218 = sbr.rel target = $region52
                $region57: #{net_forward.5} parent=42 // loop_exit
                  _
              $region43: #{net_forward.5} parent=27 // pred_fallthru
                _
            $region28: #{net_forward.5} parent=23 // pred_fallthru
              _
            // Predicated region
            $region29: #{net_forward.5} parent=23 // pred_check
              _
            $region30: #{net_forward.5} parent=23 // pred_check_branch
              %163 = sbr.rel (0) target = $region32
            $region31: #{net_forward.5} parent=23 // pred_region
              %s165 = ssub.s32 16, 1
              loop: start=0, step=1, limit=1
              $region33: #{net_forward.5} parent=31 // loop_pre_header
                _
              $region34: #{net_forward.5} parent=31 // loop_header
                %s167 = sphi 0, %s171
                %p168 = scmp.ge.s32.totalorder %s167, 1
                %s172 = sphi %s157, %s157
                %s173 = sphi %s152, %s152
              $region35: #{net_forward.5} parent=31 // loop_header_branch
                %170 = sbr.rel (%p168) target = $region39
              $region36: #{net_forward.5} parent=31 // loop_body
                %v174 = vld [vmem:[%s172] sm:%s165]
                %175 = vst [vmem:[%s173] sm:%s165] %v174
                %v176 = vld [vmem:[%s172 + $0x8] sm:%s165]
                %177 = vst [vmem:[%s173 + $0x4] sm:%s165] %v176
                %v178 = vld [vmem:[%s172 + $0x10] sm:%s165]
                %179 = vst [vmem:[%s173 + $0x8] sm:%s165] %v178
                %v180 = vld [vmem:[%s172 + $0x18] sm:%s165]
                %181 = vst [vmem:[%s173 + $0xc] sm:%s165] %v180
                %v182 = vld [vmem:[%s172 + $0x20] sm:%s165]
                %183 = vst [vmem:[%s173 + $0x10] sm:%s165] %v182
                %v184 = vld [vmem:[%s172 + $0x28] sm:%s165]
                %185 = vst [vmem:[%s173 + $0x14] sm:%s165] %v184
                %v186 = vld [vmem:[%s172 + $0x30] sm:%s165]
                %187 = vst [vmem:[%s173 + $0x18] sm:%s165] %v186
                %v188 = vld [vmem:[%s172 + $0x38] sm:%s165]
                %189 = vst [vmem:[%s173 + $0x1c] sm:%s165] %v188
                %v190 = vld [vmem:[%s172 + $0x40] sm:%s165]
                %191 = vst [vmem:[%s173 + $0x20] sm:%s165] %v190
                %v192 = vld [vmem:[%s172 + $0x48] sm:%s165]
                %193 = vst [vmem:[%s173 + $0x24] sm:%s165] %v192
                %v194 = vld [vmem:[%s172 + $0x50] sm:%s165]
                %195 = vst [vmem:[%s173 + $0x28] sm:%s165] %v194
                %v196 = vld [vmem:[%s172 + $0x58] sm:%s165]
                %197 = vst [vmem:[%s173 + $0x2c] sm:%s165] %v196
                %v198 = vld [vmem:[%s172 + $0x60] sm:%s165]
                %199 = vst [vmem:[%s173 + $0x30] sm:%s165] %v198
                %v200 = vld [vmem:[%s172 + $0x68] sm:%s165]
                %201 = vst [vmem:[%s173 + $0x34] sm:%s165] %v200
                %v202 = vld [vmem:[%s172 + $0x70] sm:%s165]
                %203 = vst [vmem:[%s173 + $0x38] sm:%s165] %v202
                %v204 = vld [vmem:[%s172 + $0x78] sm:%s165]
                %205 = vst [vmem:[%s173 + $0x3c] sm:%s165] %v204
              $region37: #{net_forward.5} parent=31 // loop_footer
                %s171 = sadd.s32 1, %s167
              $region38: #{net_forward.5} parent=31 // loop_footer_branch
                %166 = sbr.rel target = $region34
              $region39: #{net_forward.5} parent=31 // loop_exit
                _
            $region32: #{net_forward.5} parent=23 // pred_fallthru
              _
          $region24: #{net_forward.5} parent=19 // pred_fallthru
            _
          %258 = vnop
        $region20: #{net_forward.5} parent=15 // pred_fallthru
          _
        // Predicated region
        $region58: #{net_forward.5} parent=15 // pred_check
          %p259 = pneg %p69
        $region59: #{net_forward.5} parent=15 // pred_check_branch
          %261 = sbr.rel (%p259) target = $region61
        $region60: #{net_forward.5} parent=15 // pred_region
          %s262 = smul.u32 16, %s17
          %p263 = scmp.lt.s32.totalorder %s262, 31
          %s264 = scalar_select %p263, %s262, 31
          %s265 = smul.addr %s264, 4
          %s266 = scalar_lea.vmem %s1, %s265
          %s267 = smul.u32 16, %s17
        $region61: #{net_forward.5} parent=15 // pred_fallthru
          _
        // Predicated region
        $region62: #{net_forward.5} parent=15 // pred_check
          %p268 = pneg %p95
        $region63: #{net_forward.5} parent=15 // pred_check_branch
          %270 = sbr.rel (%p268) target = $region65
        $region64: #{net_forward.5} parent=15 // pred_region
          %s271 = smul.u32 16, %s16
          %p272 = scmp.lt.s32.totalorder %s271, 31
          %s273 = scalar_select %p272, %s271, 31
          %s274 = smul.addr %s273, 8
          %s275 = scalar_lea.vmem %s2, %s274
          %s276 = smul.u32 16, %s16
        $region65: #{net_forward.5} parent=15 // pred_fallthru
          _
      $region16: #{net_forward.5} parent=5 // pred_fallthru
        _
      %p277 = scmp.le.s32.totalorder 1, %s9
      %p278 = scmp.lt.s32.totalorder %s9, 5
      %p279 = pnand %p277, %p278
      %p280 = pneg %p279
      // Predicated region
      $region66: #{net_forward.5} parent=5 // pred_check
        _
      $region67: #{net_forward.5} parent=5 // pred_check_branch
        %282 = sbr.rel (%p279) target = $region69
      $region68: #{net_forward.5} parent=5 // pred_region
        %s283 = ssub.s32 %s9, 1
        %s284 = sand.u32 %s36, 1
        %s285 = sand.u32 %s36, 1
        %s286 = smul.addr %s285, 64
        %s287 = scalar_lea.vmem [#allocation3], %s286
        // Predicated region
        $region70: #{net_forward.5} parent=68 // pred_check
          %p288 = pneg %p49
        $region71: #{net_forward.5} parent=68 // pred_check_branch
          %290 = sbr.rel (%p288) target = $region73
        $region72: #{net_forward.5} parent=68 // pred_region
          _
        $region73: #{net_forward.5} parent=68 // pred_fallthru
          _
        %s291 = sand.u32 %s36, 1
        %s292 = sand.u32 %s36, 1
        %s293 = smul.addr %s292, 64
        %s294 = scalar_lea.vmem [#allocation3], %s293
        %p295 = pneg %p49
        %p296 = pneg %p46
        %s297 = smul.u32 16, %s19
        %p298 = scmp.lt.s32.totalorder %s297, 31
        %s299 = scalar_select %p298, %s297, 31
        %s300 = smul.addr %s299, 4
        %s301 = scalar_lea.vmem %s1, %s300
        %p302 = pneg %p75
        %p303 = pneg %p72
        %s304 = smul.u32 16, %s18
        %p305 = scmp.lt.s32.totalorder %s304, 31
        %s306 = scalar_select %p305, %s304, 31
        %s307 = smul.addr %s306, 8
        %s308 = scalar_lea.vmem %s2, %s307
        %p309 = pneg %p101
        %p310 = pneg %p98
        %p311 = pneg %p127
        %p312 = pneg %p124
        %s313 = smul.u32 16, %s18
        %p314 = scmp.lt.s32.totalorder %s313, 31
        %s315 = scalar_select %p314, %s313, 31
        %s316 = smul.addr %s315, 8
        %s317 = scalar_lea.vmem %s3, %s316
        %s318 = smul.u32 16, %s18
        %s319 = smul.u32 16, %s19
        %p320 = scmp.lt.s32.totalorder %s319, 31
        %s321 = scalar_select %p320, %s319, 31
        %s322 = smul.addr %s321, 4
        %s323 = scalar_lea.vmem %s1, %s322
        %s324 = smul.u32 16, %s19
        %s325 = smul.u32 16, %s18
        %p326 = scmp.lt.s32.totalorder %s325, 31
        %s327 = scalar_select %p326, %s325, 31
        %s328 = smul.addr %s327, 8
        %s329 = scalar_lea.vmem %s2, %s328
        %s330 = smul.u32 16, %s18
        %s331 = smul.u32 16, %s18
        %p332 = scmp.lt.s32.totalorder %s331, 31
        %s333 = scalar_select %p332, %s331, 31
        %s334 = smul.addr %s333, 8
        %s335 = scalar_lea.vmem %s3, %s334
        %s336 = smul.u32 16, %s18
        %p338 = scmp.eq.s32.totalorder %s19, 0
        // Predicated region
        $region74: #{net_forward.5} parent=68 // pred_check
          %p339 = pneg %p338
        $region75: #{net_forward.5} parent=68 // pred_check_branch
          %341 = sbr.rel (%p339) target = $region77
        $region76: #{net_forward.5} parent=68 // pred_region
          %342 = vst [vmem:[#allocation2] sm:$0xff] 0.0
          %343 = vst [vmem:[#allocation2 + $0x8] sm:$0xff] 0.0
          %344 = vst [vmem:[#allocation2 + $0x10] sm:$0xff] 0.0
          %345 = vst [vmem:[#allocation2 + $0x18] sm:$0xff] 0.0
          %346 = vst [vmem:[#allocation2 + $0x20] sm:$0xff] 0.0
          %347 = vst [vmem:[#allocation2 + $0x28] sm:$0xff] 0.0
          %348 = vst [vmem:[#allocation2 + $0x30] sm:$0xff] 0.0
          %349 = vst [vmem:[#allocation2 + $0x38] sm:$0xff] 0.0
          %350 = vst [vmem:[#allocation2 + $0x40] sm:$0xff] 0.0
          %351 = vst [vmem:[#allocation2 + $0x48] sm:$0xff] 0.0
          %352 = vst [vmem:[#allocation2 + $0x50] sm:$0xff] 0.0
          %353 = vst [vmem:[#allocation2 + $0x58] sm:$0xff] 0.0
          %354 = vst [vmem:[#allocation2 + $0x60] sm:$0xff] 0.0
          %355 = vst [vmem:[#allocation2 + $0x68] sm:$0xff] 0.0
          %356 = vst [vmem:[#allocation2 + $0x70] sm:$0xff] 0.0
          %357 = vst [vmem:[#allocation2 + $0x78] sm:$0xff] 0.0
        $region77: #{net_forward.5} parent=68 // pred_fallthru
          _
        %v358 = vld [vmem:[#allocation2] sm:$0xff]
        %v359 = vld [vmem:[#allocation2 + $0x8] sm:$0xff]
        %v360 = vld [vmem:[#allocation2 + $0x10] sm:$0xff]
        %v361 = vld [vmem:[#allocation2 + $0x18] sm:$0xff]
        %v362 = vld [vmem:[#allocation2 + $0x20] sm:$0xff]
        %v363 = vld [vmem:[#allocation2 + $0x28] sm:$0xff]
        %v364 = vld [vmem:[#allocation2 + $0x30] sm:$0xff]
        %v365 = vld [vmem:[#allocation2 + $0x38] sm:$0xff]
        %v366 = vld [vmem:[#allocation2 + $0x40] sm:$0xff]
        %v367 = vld [vmem:[#allocation2 + $0x48] sm:$0xff]
        %v368 = vld [vmem:[#allocation2 + $0x50] sm:$0xff]
        %v369 = vld [vmem:[#allocation2 + $0x58] sm:$0xff]
        %v370 = vld [vmem:[#allocation2 + $0x60] sm:$0xff]
        %v371 = vld [vmem:[#allocation2 + $0x68] sm:$0xff]
        %v372 = vld [vmem:[#allocation2 + $0x70] sm:$0xff]
        %v373 = vld [vmem:[#allocation2 + $0x78] sm:$0xff]
        %v374 = vld [vmem:[%s287] sm:$0xf]
        %v375 = vld [vmem:[%s287 + $0x4] sm:$0xf]
        %v376 = vld [vmem:[%s287 + $0x8] sm:$0xf]
        %v377 = vld [vmem:[%s287 + $0xc] sm:$0xf]
        %v378 = vld [vmem:[%s287 + $0x10] sm:$0xf]
        %v379 = vld [vmem:[%s287 + $0x14] sm:$0xf]
        %v380 = vld [vmem:[%s287 + $0x18] sm:$0xf]
        %v381 = vld [vmem:[%s287 + $0x1c] sm:$0xf]
        %v382 = vld [vmem:[%s287 + $0x20] sm:$0xf]
        %v383 = vld [vmem:[%s287 + $0x24] sm:$0xf]
        %v384 = vld [vmem:[%s287 + $0x28] sm:$0xf]
        %v385 = vld [vmem:[%s287 + $0x2c] sm:$0xf]
        %v386 = vld [vmem:[%s287 + $0x30] sm:$0xf]
        %v387 = vld [vmem:[%s287 + $0x34] sm:$0xf]
        %v388 = vld [vmem:[%s287 + $0x38] sm:$0xf]
        %v389 = vld [vmem:[%s287 + $0x3c] sm:$0xf]
        %v390 = vld [vmem:[%s323] sm:$0xf]
        %v391 = vld [vmem:[%s323 + $0x4] sm:$0xf]
        %v392 = vld [vmem:[%s323 + $0x8] sm:$0xf]
        %v393 = vld [vmem:[%s323 + $0xc] sm:$0xf]
        %v394 = vld [vmem:[%s323 + $0x10] sm:$0xf]
        %v395 = vld [vmem:[%s323 + $0x14] sm:$0xf]
        %v396 = vld [vmem:[%s323 + $0x18] sm:$0xf]
        %v397 = vld [vmem:[%s323 + $0x1c] sm:$0xf]
        %v398 = vld [vmem:[%s323 + $0x20] sm:$0xf]
        %v399 = vld [vmem:[%s323 + $0x24] sm:$0xf]
        %v400 = vld [vmem:[%s323 + $0x28] sm:$0xf]
        %v401 = vld [vmem:[%s323 + $0x2c] sm:$0xf]
        %v402 = vld [vmem:[%s323 + $0x30] sm:$0xf]
        %v403 = vld [vmem:[%s323 + $0x34] sm:$0xf]
        %v404 = vld [vmem:[%s323 + $0x38] sm:$0xf]
        %v405 = vld [vmem:[%s323 + $0x3c] sm:$0xf]
        %v422 = vunpack.c.l.b16 %v374
        %v423 = vunpack.c.l.b16 %v375
        %v424 = vunpack.c.l.b16 %v376
        %v425 = vunpack.c.l.b16 %v377
        %v426 = vunpack.c.l.b16 %v378
        %v427 = vunpack.c.l.b16 %v379
        %v428 = vunpack.c.l.b16 %v380
        %v429 = vunpack.c.l.b16 %v381
        %v430 = vunpack.c.l.b16 %v382
        %v431 = vunpack.c.l.b16 %v383
        %v432 = vunpack.c.l.b16 %v384
        %v433 = vunpack.c.l.b16 %v385
        %v434 = vunpack.c.l.b16 %v386
        %v435 = vunpack.c.l.b16 %v387
        %v436 = vunpack.c.l.b16 %v388
        %v437 = vunpack.c.l.b16 %v389
        %v438 = vpack.c.b16 %v423, %v422
        %v439 = vpack.c.b16 %v425, %v424
        %v440 = vpack.c.b16 %v427, %v426
        %v441 = vpack.c.b16 %v429, %v428
        %v442 = vpack.c.b16 %v431, %v430
        %v443 = vpack.c.b16 %v433, %v432
        %v444 = vpack.c.b16 %v435, %v434
        %v445 = vpack.c.b16 %v437, %v436
        %v470 = vunpack.c.l.b16 %v390
        %v471 = vunpack.c.l.b16 %v391
        %v472 = vunpack.c.l.b16 %v392
        %v473 = vunpack.c.l.b16 %v393
        %v474 = vunpack.c.l.b16 %v394
        %v475 = vunpack.c.l.b16 %v395
        %v476 = vunpack.c.l.b16 %v396
        %v477 = vunpack.c.l.b16 %v397
        %v478 = vunpack.c.l.b16 %v398
        %v479 = vunpack.c.l.b16 %v399
        %v480 = vunpack.c.l.b16 %v400
        %v481 = vunpack.c.l.b16 %v401
        %v482 = vunpack.c.l.b16 %v402
        %v483 = vunpack.c.l.b16 %v403
        %v484 = vunpack.c.l.b16 %v404
        %v485 = vunpack.c.l.b16 %v405
        %v486 = vpack.c.b16 %v471, %v470
        %v487 = vpack.c.b16 %v473, %v472
        %v488 = vpack.c.b16 %v475, %v474
        %v489 = vpack.c.b16 %v477, %v476
        %v490 = vpack.c.b16 %v479, %v478
        %v491 = vpack.c.b16 %v481, %v480
        %v492 = vpack.c.b16 %v483, %v482
        %v493 = vpack.c.b16 %v485, %v484
        %502 = vmatprep.subr.bf16.mxu0 0
        %503 = vmatpush1.bf16.msra.mxu0 %v493
        %504 = vmatprep.subr.bf16.mxu0 0
        %505 = vmatpush1.bf16.msra.mxu0 %v492
        %506 = vmatprep.subr.bf16.mxu0 0
        %507 = vmatpush1.bf16.msra.mxu0 %v491
        %508 = vmatprep.subr.bf16.mxu0 0
        %509 = vmatpush1.bf16.msra.mxu0 %v490
        %510 = vmatprep.subr.bf16.mxu0 0
        %511 = vmatpush1.bf16.msra.mxu0 %v489
        %512 = vmatprep.subr.bf16.mxu0 0
        %513 = vmatpush1.bf16.msra.mxu0 %v488
        %514 = vmatprep.subr.bf16.mxu0 0
        %515 = vmatpush1.bf16.msra.mxu0 %v487
        %516 = vmatprep.subr.bf16.mxu0 0
        %517 = vmatpush1.bf16.msra.mxu0 %v486
        %518 = vmatprep.subr.bf16.mxu0 0
        %519 = vmatpush2.bf16.msra.mxu0 0
        %520 = vmatprep.subr.bf16.mxu0 0
        %521 = vmatpush2.bf16.msra.mxu0 0
        %522 = vmatprep.subr.bf16.mxu0 0
        %523 = vmatpush2.bf16.msra.mxu0 0
        %524 = vmatprep.subr.bf16.mxu0 0
        %525 = vmatpush2.bf16.msra.mxu0 0
        %526 = vmatprep.subr.bf16.mxu0 0
        %527 = vmatpush2.bf16.msra.mxu0 0
        %528 = vmatprep.subr.bf16.mxu0 0
        %529 = vmatpush2.bf16.msra.mxu0 0
        %530 = vmatprep.subr.bf16.mxu0 0
        %531 = vmatpush2.bf16.msra.mxu0 0
        %532 = vmatprep.subr.bf16.mxu0 0
        %533 = vmatpush2.bf16.msra.mxu0 0
        %534 = vmatprep.mubr.bf16.mxu0 0
        %535 = vmatmul.mubr.bf16.gmra.mxu0 %v438
        %v536 = vpop.f32.mrf.mxu0
        %v537 = vadd.f32 0.0, %v536
        %v538 = vpop.f32.mrf.mxu0
        %v539 = vpop.f32.mrf.mxu0
        %v540 = vadd.f32 0.0, %v539
        %v541 = vpop.f32.mrf.mxu0
        %542 = vmatprep.mubr.bf16.mxu0 0
        %543 = vmatmul.mubr.bf16.gmra.mxu0 %v439
        %v544 = vpop.f32.mrf.mxu0
        %v545 = vadd.f32 0.0, %v544
        %v546 = vpop.f32.mrf.mxu0
        %v547 = vpop.f32.mrf.mxu0
        %v548 = vadd.f32 0.0, %v547
        %v549 = vpop.f32.mrf.mxu0
        %550 = vmatprep.mubr.bf16.mxu0 0
        %551 = vmatmul.mubr.bf16.gmra.mxu0 %v440
        %v552 = vpop.f32.mrf.mxu0
        %v553 = vadd.f32 0.0, %v552
        %v554 = vpop.f32.mrf.mxu0
        %v555 = vpop.f32.mrf.mxu0
        %v556 = vadd.f32 0.0, %v555
        %v557 = vpop.f32.mrf.mxu0
        %558 = vmatprep.mubr.bf16.mxu0 0
        %559 = vmatmul.mubr.bf16.gmra.mxu0 %v441
        %v560 = vpop.f32.mrf.mxu0
        %v561 = vadd.f32 0.0, %v560
        %v562 = vpop.f32.mrf.mxu0
        %v563 = vpop.f32.mrf.mxu0
        %v564 = vadd.f32 0.0, %v563
        %v565 = vpop.f32.mrf.mxu0
        %566 = vmatprep.mubr.bf16.mxu0 0
        %567 = vmatmul.mubr.bf16.gmra.mxu0 %v442
        %v568 = vpop.f32.mrf.mxu0
        %v569 = vadd.f32 0.0, %v568
        %v570 = vpop.f32.mrf.mxu0
        %v571 = vpop.f32.mrf.mxu0
        %v572 = vadd.f32 0.0, %v571
        %v573 = vpop.f32.mrf.mxu0
        %574 = vmatprep.mubr.bf16.mxu0 0
        %575 = vmatmul.mubr.bf16.gmra.mxu0 %v443
        %v576 = vpop.f32.mrf.mxu0
        %v577 = vadd.f32 0.0, %v576
        %v578 = vpop.f32.mrf.mxu0
        %v579 = vpop.f32.mrf.mxu0
        %v580 = vadd.f32 0.0, %v579
        %v581 = vpop.f32.mrf.mxu0
        %582 = vmatprep.mubr.bf16.mxu0 0
        %583 = vmatmul.mubr.bf16.gmra.mxu0 %v444
        %v584 = vpop.f32.mrf.mxu0
        %v585 = vadd.f32 0.0, %v584
        %v586 = vpop.f32.mrf.mxu0
        %v587 = vpop.f32.mrf.mxu0
        %v588 = vadd.f32 0.0, %v587
        %v589 = vpop.f32.mrf.mxu0
        %590 = vmatprep.mubr.bf16.mxu0 0
        %591 = vmatmul.mubr.bf16.gmra.mxu0 %v445
        %v592 = vpop.f32.mrf.mxu0
        %v593 = vadd.f32 0.0, %v592
        %v594 = vpop.f32.mrf.mxu0
        %v595 = vpop.f32.mrf.mxu0
        %v596 = vadd.f32 0.0, %v595
        %v597 = vpop.f32.mrf.mxu0
        %598 = vdwg.mxu0
        %v599 = vadd.f32 %v358, %v537
        %v600 = vadd.f32 %v359, %v540
        %v601 = vadd.f32 %v360, %v545
        %v602 = vadd.f32 %v361, %v548
        %v603 = vadd.f32 %v362, %v553
        %v604 = vadd.f32 %v363, %v556
        %v605 = vadd.f32 %v364, %v561
        %v606 = vadd.f32 %v365, %v564
        %v607 = vadd.f32 %v366, %v569
        %v608 = vadd.f32 %v367, %v572
        %v609 = vadd.f32 %v368, %v577
        %v610 = vadd.f32 %v369, %v580
        %v611 = vadd.f32 %v370, %v585
        %v612 = vadd.f32 %v371, %v588
        %v613 = vadd.f32 %v372, %v593
        %v614 = vadd.f32 %v373, %v596
        %615 = vst [vmem:[#allocation2] sm:$0xff] %v599
        %616 = vst [vmem:[#allocation2 + $0x8] sm:$0xff] %v600
        %617 = vst [vmem:[#allocation2 + $0x10] sm:$0xff] %v601
        %618 = vst [vmem:[#allocation2 + $0x18] sm:$0xff] %v602
        %619 = vst [vmem:[#allocation2 + $0x20] sm:$0xff] %v603
        %620 = vst [vmem:[#allocation2 + $0x28] sm:$0xff] %v604
        %621 = vst [vmem:[#allocation2 + $0x30] sm:$0xff] %v605
        %622 = vst [vmem:[#allocation2 + $0x38] sm:$0xff] %v606
        %623 = vst [vmem:[#allocation2 + $0x40] sm:$0xff] %v607
        %624 = vst [vmem:[#allocation2 + $0x48] sm:$0xff] %v608
        %625 = vst [vmem:[#allocation2 + $0x50] sm:$0xff] %v609
        %626 = vst [vmem:[#allocation2 + $0x58] sm:$0xff] %v610
        %627 = vst [vmem:[#allocation2 + $0x60] sm:$0xff] %v611
        %628 = vst [vmem:[#allocation2 + $0x68] sm:$0xff] %v612
        %629 = vst [vmem:[#allocation2 + $0x70] sm:$0xff] %v613
        %630 = vst [vmem:[#allocation2 + $0x78] sm:$0xff] %v614
        %p631 = scmp.eq.s32.totalorder %s19, 1
        // Predicated region
        $region78: #{net_forward.5} parent=68 // pred_check
          %p632 = pneg %p631
        $region79: #{net_forward.5} parent=68 // pred_check_branch
          %634 = sbr.rel (%p632) target = $region81
        $region80: #{net_forward.5} parent=68 // pred_region
          %v635 = vld [vmem:[#allocation2] sm:$0xff]
          %v636 = vld [vmem:[#allocation2 + $0x8] sm:$0xff]
          %v637 = vld [vmem:[#allocation2 + $0x10] sm:$0xff]
          %v638 = vld [vmem:[#allocation2 + $0x18] sm:$0xff]
          %v639 = vld [vmem:[#allocation2 + $0x20] sm:$0xff]
          %v640 = vld [vmem:[#allocation2 + $0x28] sm:$0xff]
          %v641 = vld [vmem:[#allocation2 + $0x30] sm:$0xff]
          %v642 = vld [vmem:[#allocation2 + $0x38] sm:$0xff]
          %v643 = vld [vmem:[#allocation2 + $0x40] sm:$0xff]
          %v644 = vld [vmem:[#allocation2 + $0x48] sm:$0xff]
          %v645 = vld [vmem:[#allocation2 + $0x50] sm:$0xff]
          %v646 = vld [vmem:[#allocation2 + $0x58] sm:$0xff]
          %v647 = vld [vmem:[#allocation2 + $0x60] sm:$0xff]
          %v648 = vld [vmem:[#allocation2 + $0x68] sm:$0xff]
          %v649 = vld [vmem:[#allocation2 + $0x70] sm:$0xff]
          %v650 = vld [vmem:[#allocation2 + $0x78] sm:$0xff]
          %v651 = vld [vmem:[%s329] sm:$0xff]
          %v652 = vld [vmem:[%s329 + $0x8] sm:$0xff]
          %v653 = vld [vmem:[%s329 + $0x10] sm:$0xff]
          %v654 = vld [vmem:[%s329 + $0x18] sm:$0xff]
          %v655 = vld [vmem:[%s329 + $0x20] sm:$0xff]
          %v656 = vld [vmem:[%s329 + $0x28] sm:$0xff]
          %v657 = vld [vmem:[%s329 + $0x30] sm:$0xff]
          %v658 = vld [vmem:[%s329 + $0x38] sm:$0xff]
          %v659 = vld [vmem:[%s329 + $0x40] sm:$0xff]
          %v660 = vld [vmem:[%s329 + $0x48] sm:$0xff]
          %v661 = vld [vmem:[%s329 + $0x50] sm:$0xff]
          %v662 = vld [vmem:[%s329 + $0x58] sm:$0xff]
          %v663 = vld [vmem:[%s329 + $0x60] sm:$0xff]
          %v664 = vld [vmem:[%s329 + $0x68] sm:$0xff]
          %v665 = vld [vmem:[%s329 + $0x70] sm:$0xff]
          %v666 = vld [vmem:[%s329 + $0x78] sm:$0xff]
          %v667 = vadd.f32 %v635, %v651
          %v668 = vadd.f32 %v636, %v652
          %v669 = vadd.f32 %v637, %v653
          %v670 = vadd.f32 %v638, %v654
          %v671 = vadd.f32 %v639, %v655
          %v672 = vadd.f32 %v640, %v656
          %v673 = vadd.f32 %v641, %v657
          %v674 = vadd.f32 %v642, %v658
          %v675 = vadd.f32 %v643, %v659
          %v676 = vadd.f32 %v644, %v660
          %v677 = vadd.f32 %v645, %v661
          %v678 = vadd.f32 %v646, %v662
          %v679 = vadd.f32 %v647, %v663
          %v680 = vadd.f32 %v648, %v664
          %v681 = vadd.f32 %v649, %v665
          %v682 = vadd.f32 %v650, %v666
          %v683 = vmax.f32 %v667, 0.0
          %v684 = vmax.f32 %v668, 0.0
          %v685 = vmax.f32 %v669, 0.0
          %v686 = vmax.f32 %v670, 0.0
          %v687 = vmax.f32 %v671, 0.0
          %v688 = vmax.f32 %v672, 0.0
          %v689 = vmax.f32 %v673, 0.0
          %v690 = vmax.f32 %v674, 0.0
          %v691 = vmax.f32 %v675, 0.0
          %v692 = vmax.f32 %v676, 0.0
          %v693 = vmax.f32 %v677, 0.0
          %v694 = vmax.f32 %v678, 0.0
          %v695 = vmax.f32 %v679, 0.0
          %v696 = vmax.f32 %v680, 0.0
          %v697 = vmax.f32 %v681, 0.0
          %v698 = vmax.f32 %v682, 0.0
          %699 = vst [vmem:[%s335] sm:$0xff] %v683
          %700 = vst [vmem:[%s335 + $0x8] sm:$0xff] %v684
          %701 = vst [vmem:[%s335 + $0x10] sm:$0xff] %v685
          %702 = vst [vmem:[%s335 + $0x18] sm:$0xff] %v686
          %703 = vst [vmem:[%s335 + $0x20] sm:$0xff] %v687
          %704 = vst [vmem:[%s335 + $0x28] sm:$0xff] %v688
          %705 = vst [vmem:[%s335 + $0x30] sm:$0xff] %v689
          %706 = vst [vmem:[%s335 + $0x38] sm:$0xff] %v690
          %707 = vst [vmem:[%s335 + $0x40] sm:$0xff] %v691
          %708 = vst [vmem:[%s335 + $0x48] sm:$0xff] %v692
          %709 = vst [vmem:[%s335 + $0x50] sm:$0xff] %v693
          %710 = vst [vmem:[%s335 + $0x58] sm:$0xff] %v694
          %711 = vst [vmem:[%s335 + $0x60] sm:$0xff] %v695
          %712 = vst [vmem:[%s335 + $0x68] sm:$0xff] %v696
          %713 = vst [vmem:[%s335 + $0x70] sm:$0xff] %v697
          %714 = vst [vmem:[%s335 + $0x78] sm:$0xff] %v698
        $region81: #{net_forward.5} parent=68 // pred_fallthru
          _
        %s715 = smul.u32 16, %s18
        %p716 = scmp.lt.s32.totalorder %s715, 31
        %s717 = scalar_select %p716, %s715, 31
        %s718 = smul.addr %s717, 8
        %s719 = scalar_lea.vmem %s3, %s718
        // Predicated region
        $region82: #{net_forward.5} parent=68 // pred_check
          %p720 = pneg %p124
        $region83: #{net_forward.5} parent=68 // pred_check_branch
          %722 = sbr.rel (%p720) target = $region85
        $region84: #{net_forward.5} parent=68 // pred_region
          %s723 = smul.u32 16, %s18
        $region85: #{net_forward.5} parent=68 // pred_fallthru
          _
      $region69: #{net_forward.5} parent=5 // pred_fallthru
        _
      %p724 = scmp.le.s32.totalorder 2, %s9
      // Predicated region
      $region86: #{net_forward.5} parent=5 // pred_check
        %p725 = pneg %p724
      $region87: #{net_forward.5} parent=5 // pred_check_branch
        %727 = sbr.rel (%p725) target = $region89
      $region88: #{net_forward.5} parent=5 // pred_region
        %s728 = ssub.s32 %s9, 2
        // Predicated region
        $region90: #{net_forward.5} parent=88 // pred_check
          %p729 = pneg %p130
        $region91: #{net_forward.5} parent=88 // pred_check_branch
          %731 = sbr.rel (%p729) target = $region93
        $region92: #{net_forward.5} parent=88 // pred_region
          %s732 = smul.u32 16, %s20
          %p733 = scmp.lt.s32.totalorder %s732, 31
          %s734 = scalar_select %p733, %s732, 31
          %s735 = smul.addr %s734, 8
          %s736 = scalar_lea.vmem %s3, %s735
        $region93: #{net_forward.5} parent=88 // pred_fallthru
          _
      $region89: #{net_forward.5} parent=5 // pred_fallthru
        _
    $region6: #{net_forward.5} parent=1 // loop_footer
      %s13 = sadd.s32 1, %s9
    $region7: #{net_forward.5} parent=1 // loop_footer_branch
      %8 = sbr.rel target = $region3
    $region8: #{net_forward.5} parent=1 // loop_exit
      _

// kernel: net_forward.4
$region0: #{net_forward.4}
  #allocation0 [shape = 'u32[]', space=smem, size = 0x4, offset = 0x4, fixed_abs, tag = 'smem constant byte address 0x4 - core index']
  #allocation1 [shape = 'u32[144,128]{1,0:T(1,128)}', space=vmem, size = 0x12000, scoped, tag = 'internal scratch']
  %s0 = inlined_call_operand.vmem [shape: f32[256,32], index: 0, kind: input, shape index: {}]
  %s1 = inlined_call_operand.vmem [shape: bf16[32,256], index: 1, kind: input, shape index: {}]
  %s2 = inlined_call_operand.vmem [shape: f32[1,128], index: 2, kind: input, shape index: {}]
  %s3 = inlined_call_operand.vmem [shape: bf16[256,128], index: 3, kind: output, shape index: {0}]
  %s4 = inlined_call_operand.vmem [shape: f32[256,128], index: 4, kind: output, shape index: {1}]
  %5 = xla_tuple %s3, %s4
  %s6 = sld [smem:[#allocation0]]
  $region53: #{net_forward.4} parent=0
    _
  %s8 = ssub.s32 1, %s6
  %s9 = scalar_select 0, %s8, %s6
  loop: start=0, step=1, limit=4
  $region2: #{net_forward.4} parent=0 // loop_pre_header
    _
  $region3: #{net_forward.4} parent=0 // loop_header
    %s11 = sphi 0, %s15
    %p12 = scmp.ge.s32.totalorder %s11, 4
    %s21 = sphi 0, %s23
    %s24 = sphi 0, %s21
    %s25 = sphi 0, %s24
    %s41 = sphi 0, %s25
    %s45 = sphi 0, %s45
    %s47 = sphi 0, %s45
    %s48 = sphi 0, %s47
    %s62 = sphi 0, %s48
    %s66 = sphi 0, %s66
    %s68 = sphi 0, %s66
    %s69 = sphi 0, %s68
    %s83 = sphi 0, %s69
    %s89 = sphi 0, %s91
    %s92 = sphi 0, %s89
    %s93 = sphi 0, %s92
    %s109 = sphi 0, %s93
    %s115 = sphi 0, %s117
    %s118 = sphi 0, %s115
    %s119 = sphi 0, %s118
    %s135 = sphi 0, %s119
  $region4: #{net_forward.4} parent=0 // loop_header_branch
    %14 = sbr.rel (%p12) target = $region8
  $region5: #{net_forward.4} parent=0 // loop_body
    %s16 = ssub.s32 %s11, 1
    %s17 = ssub.s32 %s11, 2
    %s18 = sadd.s32 %s11, 1
    %s19 = ssub.s32 %s11, %s18
    %p20 = scmp.eq.s32.totalorder %s19, 0
    %s22 = sadd.s32 %s21, 1
    %s23 = scalar_select %p20, %s21, %s22
    %p26 = pneg %p20
    %p27 = scmp.eq.s32.totalorder %s11, 1
    %p28 = por %p26, %p27
    %p29 = scmp.ne.s32.totalorder %s21, %s24
    %p30 = scmp.eq.s32.totalorder %s11, 0
    %p31 = por %p29, %p30
    %p32 = scmp.ne.s32.totalorder %s21, %s24
    %p33 = scmp.eq.s32.totalorder %s16, 1
    %p34 = por %p32, %p33
    %p35 = scmp.ne.s32.totalorder %s24, %s25
    %p36 = scmp.eq.s32.totalorder %s16, 0
    %p37 = por %p35, %p36
    %p38 = scmp.ne.s32.totalorder %s24, %s25
    %p39 = scmp.eq.s32.totalorder %s17, 1
    %p40 = por %p38, %p39
    %p42 = scmp.ne.s32.totalorder %s25, %s41
    %p43 = scmp.eq.s32.totalorder %s17, 0
    %p44 = por %p42, %p43
    %s46 = sadd.s32 %s45, 1
    %p49 = scmp.eq.s32.totalorder %s11, 1
    %p50 = scmp.ne.s32.totalorder %s45, %s47
    %p51 = scmp.eq.s32.totalorder %s11, 0
    %p52 = por %p50, %p51
    %p53 = scmp.ne.s32.totalorder %s45, %s47
    %p54 = scmp.eq.s32.totalorder %s16, 1
    %p55 = por %p53, %p54
    %p56 = scmp.ne.s32.totalorder %s47, %s48
    %p57 = scmp.eq.s32.totalorder %s16, 0
    %p58 = por %p56, %p57
    %p59 = scmp.ne.s32.totalorder %s47, %s48
    %p60 = scmp.eq.s32.totalorder %s17, 1
    %p61 = por %p59, %p60
    %p63 = scmp.ne.s32.totalorder %s48, %s62
    %p64 = scmp.eq.s32.totalorder %s17, 0
    %p65 = por %p63, %p64
    %s67 = sadd.s32 %s66, 1
    %p70 = scmp.eq.s32.totalorder %s11, 1
    %p71 = scmp.ne.s32.totalorder %s66, %s68
    %p72 = scmp.eq.s32.totalorder %s11, 0
    %p73 = por %p71, %p72
    %p74 = scmp.ne.s32.totalorder %s66, %s68
    %p75 = scmp.eq.s32.totalorder %s16, 1
    %p76 = por %p74, %p75
    %p77 = scmp.ne.s32.totalorder %s68, %s69
    %p78 = scmp.eq.s32.totalorder %s16, 0
    %p79 = por %p77, %p78
    %p80 = scmp.ne.s32.totalorder %s68, %s69
    %p81 = scmp.eq.s32.totalorder %s17, 1
    %p82 = por %p80, %p81
    %p84 = scmp.ne.s32.totalorder %s69, %s83
    %p85 = scmp.eq.s32.totalorder %s17, 0
    %p86 = por %p84, %p85
    %s87 = ssub.s32 %s11, %s18
    %p88 = scmp.eq.s32.totalorder %s87, 0
    %s90 = sadd.s32 %s89, 1
    %s91 = scalar_select %p88, %s89, %s90
    %p94 = pneg %p88
    %p95 = scmp.eq.s32.totalorder %s11, 1
    %p96 = por %p94, %p95
    %p97 = scmp.ne.s32.totalorder %s89, %s92
    %p98 = scmp.eq.s32.totalorder %s11, 0
    %p99 = por %p97, %p98
    %p100 = scmp.ne.s32.totalorder %s89, %s92
    %p101 = scmp.eq.s32.totalorder %s16, 1
    %p102 = por %p100, %p101
    %p103 = scmp.ne.s32.totalorder %s92, %s93
    %p104 = scmp.eq.s32.totalorder %s16, 0
    %p105 = por %p103, %p104
    %p106 = scmp.ne.s32.totalorder %s92, %s93
    %p107 = scmp.eq.s32.totalorder %s17, 1
    %p108 = por %p106, %p107
    %p110 = scmp.ne.s32.totalorder %s93, %s109
    %p111 = scmp.eq.s32.totalorder %s17, 0
    %p112 = por %p110, %p111
    %s113 = ssub.s32 %s11, %s18
    %p114 = scmp.eq.s32.totalorder %s113, 0
    %s116 = sadd.s32 %s115, 1
    %s117 = scalar_select %p114, %s115, %s116
    %p120 = pneg %p114
    %p121 = scmp.eq.s32.totalorder %s11, 1
    %p122 = por %p120, %p121
    %p123 = scmp.ne.s32.totalorder %s115, %s118
    %p124 = scmp.eq.s32.totalorder %s11, 0
    %p125 = por %p123, %p124
    %p126 = scmp.ne.s32.totalorder %s115, %s118
    %p127 = scmp.eq.s32.totalorder %s16, 1
    %p128 = por %p126, %p127
    %p129 = scmp.ne.s32.totalorder %s118, %s119
    %p130 = scmp.eq.s32.totalorder %s16, 0
    %p131 = por %p129, %p130
    %p132 = scmp.ne.s32.totalorder %s118, %s119
    %p133 = scmp.eq.s32.totalorder %s17, 1
    %p134 = por %p132, %p133
    %p136 = scmp.ne.s32.totalorder %s119, %s135
    %p137 = scmp.eq.s32.totalorder %s17, 0
    %p138 = por %p136, %p137
    %p139 = scmp.le.s32.totalorder 1, %s11
    %p140 = scmp.lt.s32.totalorder %s11, 3
    %p141 = pnand %p139, %p140
    %p142 = pneg %p141
    // Predicated region
    $region9: #{net_forward.4} parent=5 // pred_check
      _
    $region10: #{net_forward.4} parent=5 // pred_check_branch
      %144 = sbr.rel (%p141) target = $region12
    $region11: #{net_forward.4} parent=5 // pred_region
      %s145 = ssub.s32 %s11, 1
      // Predicated region
      $region13: #{net_forward.4} parent=11 // pred_check
        %p146 = pneg %p58
      $region14: #{net_forward.4} parent=11 // pred_check_branch
        %148 = sbr.rel (%p146) target = $region16
      $region15: #{net_forward.4} parent=11 // pred_region
        _
      $region16: #{net_forward.4} parent=11 // pred_fallthru
        _
      // Predicated region
      $region17: #{net_forward.4} parent=11 // pred_check
        %p149 = pneg %p79
      $region18: #{net_forward.4} parent=11 // pred_check_branch
        %151 = sbr.rel (%p149) target = $region20
      $region19: #{net_forward.4} parent=11 // pred_region
        _
      $region20: #{net_forward.4} parent=11 // pred_fallthru
        _
    $region12: #{net_forward.4} parent=5 // pred_fallthru
      _
    %p152 = scmp.lt.s32.totalorder %s11, 2
    // Predicated region
    $region21: #{net_forward.4} parent=5 // pred_check
      %p153 = pneg %p152
    $region22: #{net_forward.4} parent=5 // pred_check_branch
      %155 = sbr.rel (%p153) target = $region24
    $region23: #{net_forward.4} parent=5 // pred_region
      // Predicated region
      $region25: #{net_forward.4} parent=23 // pred_check
        %p156 = pneg %p31
      $region26: #{net_forward.4} parent=23 // pred_check_branch
        %158 = sbr.rel (%p156) target = $region28
      $region27: #{net_forward.4} parent=23 // pred_region
        %s159 = smul.u32 16, %s11
        %p160 = scmp.lt.s32.totalorder %s159, 31
        %s161 = scalar_select %p160, %s159, 31
        %s162 = smul.addr %s161, 8
        %s163 = scalar_lea.vmem %s0, %s162
        %s164 = smul.u32 16, %s11
      $region28: #{net_forward.4} parent=23 // pred_fallthru
        _
    $region24: #{net_forward.4} parent=5 // pred_fallthru
      _
    %p165 = scmp.le.s32.totalorder 1, %s11
    %p166 = scmp.lt.s32.totalorder %s11, 3
    %p167 = pnand %p165, %p166
    %p168 = pneg %p167
    // Predicated region
    $region29: #{net_forward.4} parent=5 // pred_check
      _
    $region30: #{net_forward.4} parent=5 // pred_check_branch
      %170 = sbr.rel (%p167) target = $region32
    $region31: #{net_forward.4} parent=5 // pred_region
      %s171 = ssub.s32 %s11, 1
      %s172 = smul.u32 16, %s16
      %p173 = scmp.lt.s32.totalorder %s172, 31
      %s174 = scalar_select %p173, %s172, 31
      %s175 = smul.addr %s174, 8
      %s176 = scalar_lea.vmem %s0, %s175
      %p177 = pneg %p37
      %p178 = pneg %p34
      %p179 = pneg %p58
      %p180 = pneg %p55
      %p181 = pneg %p79
      %p182 = pneg %p76
      %p183 = pneg %p105
      %p184 = pneg %p102
      %s185 = smul.u32 16, %s16
      %p186 = scmp.lt.s32.totalorder %s185, 31
      %s187 = scalar_select %p186, %s185, 31
      %s188 = smul.addr %s187, 4
      %s189 = scalar_lea.vmem %s3, %s188
      %p190 = pneg %p131
      %p191 = pneg %p128
      %s192 = smul.u32 16, %s16
      %p193 = scmp.lt.s32.totalorder %s192, 31
      %s194 = scalar_select %p193, %s192, 31
      %s195 = smul.addr %s194, 8
      %s196 = scalar_lea.vmem %s4, %s195
      %s197 = smul.u32 16, %s16
      %p198 = scmp.lt.s32.totalorder %s197, 31
      %s199 = scalar_select %p198, %s197, 31
      %s200 = smul.addr %s199, 8
      %s201 = scalar_lea.vmem %s0, %s200
      %s202 = smul.u32 16, %s16
      %s203 = smul.u32 16, %s16
      %p204 = scmp.lt.s32.totalorder %s203, 31
      %s205 = scalar_select %p204, %s203, 31
      %s206 = smul.addr %s205, 4
      %s207 = scalar_lea.vmem %s3, %s206
      %s208 = smul.u32 16, %s16
      %s209 = smul.u32 16, %s16
      %p210 = scmp.lt.s32.totalorder %s209, 31
      %s211 = scalar_select %p210, %s209, 31
      %s212 = smul.addr %s211, 8
      %s213 = scalar_lea.vmem %s4, %s212
      %s214 = smul.u32 16, %s16
      %v216 = vld [vmem:[%s201] sm:$0xff]
      %v217 = vld [vmem:[%s201 + $0x8] sm:$0xff]
      %v218 = vld [vmem:[%s201 + $0x10] sm:$0xff]
      %v219 = vld [vmem:[%s201 + $0x18] sm:$0xff]
      %v220 = vld [vmem:[%s201 + $0x20] sm:$0xff]
      %v221 = vld [vmem:[%s201 + $0x28] sm:$0xff]
      %v222 = vld [vmem:[%s201 + $0x30] sm:$0xff]
      %v223 = vld [vmem:[%s201 + $0x38] sm:$0xff]
      %v224 = vld [vmem:[%s201 + $0x40] sm:$0xff]
      %v225 = vld [vmem:[%s201 + $0x48] sm:$0xff]
      %v226 = vld [vmem:[%s201 + $0x50] sm:$0xff]
      %v227 = vld [vmem:[%s201 + $0x58] sm:$0xff]
      %v228 = vld [vmem:[%s201 + $0x60] sm:$0xff]
      %v229 = vld [vmem:[%s201 + $0x68] sm:$0xff]
      %v230 = vld [vmem:[%s201 + $0x70] sm:$0xff]
      %v231 = vld [vmem:[%s201 + $0x78] sm:$0xff]
      %v232 = vpack.c.bf16 %v217, %v216
      %v233 = vpack.c.bf16 %v219, %v218
      %v234 = vpack.c.bf16 %v221, %v220
      %v235 = vpack.c.bf16 %v223, %v222
      %v236 = vpack.c.bf16 %v225, %v224
      %v237 = vpack.c.bf16 %v227, %v226
      %v238 = vpack.c.bf16 %v229, %v228
      %v239 = vpack.c.bf16 %v231, %v230
      %v240 = vld [vmem:[%s1] sm:$0xff]
      %v241 = vld [vmem:[%s1 + $0x8] sm:$0xff]
      %v242 = vld [vmem:[%s1 + $0x10] sm:$0xff]
      %v243 = vld [vmem:[%s1 + $0x18] sm:$0xff]
      %v248 = vunpack.c.l.b16 %v240
      %v249 = vunpack.c.h.b16 %v240
      %v250 = vunpack.c.l.b16 %v241
      %v251 = vunpack.c.h.b16 %v241
      %v252 = vunpack.c.l.b16 %v242
      %v253 = vunpack.c.h.b16 %v242
      %v254 = vunpack.c.l.b16 %v243
      %v255 = vunpack.c.h.b16 %v243
      %v256 = vpack.c.b16 %v250, %v248
      %v257 = vpack.c.b16 %v251, %v249
      %v258 = vpack.c.b16 %v254, %v252
      %v259 = vpack.c.b16 %v255, %v253
      %vm264 = vcmask 261120
      %v266 = vsel %vm264, %v232, 0
      %v269 = vsel %vm264, %v233, 0
      %v272 = vsel %vm264, %v234, 0
      %v275 = vsel %vm264, %v235, 0
      %v278 = vsel %vm264, %v236, 0
      %v281 = vsel %vm264, %v237, 0
      %v284 = vsel %vm264, %v238, 0
      %v287 = vsel %vm264, %v239, 0
      %289 = vmatprep.subr.bf16.mxu0 0
      %290 = vmatpush1.bf16.msra.mxu0 0
      %291 = vmatprep.subr.bf16.mxu0 0
      %292 = vmatpush1.bf16.msra.mxu0 0
      %293 = vmatprep.subr.bf16.mxu0 0
      %294 = vmatpush1.bf16.msra.mxu0 0
      %295 = vmatprep.subr.bf16.mxu0 0
      %296 = vmatpush1.bf16.msra.mxu0 0
      %297 = vmatprep.subr.bf16.mxu0 0
      %298 = vmatpush1.bf16.msra.mxu0 0
      %299 = vmatprep.subr.bf16.mxu0 0
      %300 = vmatpush1.bf16.msra.mxu0 0
      %301 = vmatprep.subr.bf16.mxu0 %v259
      %302 = vmatpush1.bf16.msra.mxu0 %v258
      %303 = vmatprep.subr.bf16.mxu0 %v257
      %304 = vmatpush1.bf16.msra.mxu0 %v256
      %305 = vmatprep.subr.bf16.mxu0 0
      %306 = vmatpush2.bf16.msra.mxu0 0
      %307 = vmatprep.subr.bf16.mxu0 0
      %308 = vmatpush2.bf16.msra.mxu0 0
      %309 = vmatprep.subr.bf16.mxu0 0
      %310 = vmatpush2.bf16.msra.mxu0 0
      %311 = vmatprep.subr.bf16.mxu0 0
      %312 = vmatpush2.bf16.msra.mxu0 0
      %313 = vmatprep.subr.bf16.mxu0 0
      %314 = vmatpush2.bf16.msra.mxu0 0
      %315 = vmatprep.subr.bf16.mxu0 0
      %316 = vmatpush2.bf16.msra.mxu0 0
      %317 = vmatprep.subr.bf16.mxu0 0
      %318 = vmatpush2.bf16.msra.mxu0 0
      %319 = vmatprep.subr.bf16.mxu0 0
      %320 = vmatpush2.bf16.msra.mxu0 0
      %321 = vmatprep.mubr.bf16.mxu0 0
      %322 = vmatmul.mubr.bf16.gmra.mxu0 %v266
      %v323 = vpop.f32.mrf.mxu0
      %v324 = vadd.f32 0.0, %v323
      %v325 = vpop.f32.mrf.mxu0
      %v326 = vadd.f32 0.0, %v325
      %v327 = vpop.f32.mrf.mxu0
      %v328 = vadd.f32 0.0, %v327
      %v329 = vpop.f32.mrf.mxu0
      %v330 = vadd.f32 0.0, %v329
      %331 = vmatprep.mubr.bf16.mxu0 0
      %332 = vmatmul.mubr.bf16.gmra.mxu0 %v269
      %v333 = vpop.f32.mrf.mxu0
      %v334 = vadd.f32 0.0, %v333
      %v335 = vpop.f32.mrf.mxu0
      %v336 = vadd.f32 0.0, %v335
      %v337 = vpop.f32.mrf.mxu0
      %v338 = vadd.f32 0.0, %v337
      %v339 = vpop.f32.mrf.mxu0
      %v340 = vadd.f32 0.0, %v339
      %341 = vmatprep.mubr.bf16.mxu0 0
      %342 = vmatmul.mubr.bf16.gmra.mxu0 %v272
      %v343 = vpop.f32.mrf.mxu0
      %v344 = vadd.f32 0.0, %v343
      %v345 = vpop.f32.mrf.mxu0
      %v346 = vadd.f32 0.0, %v345
      %v347 = vpop.f32.mrf.mxu0
      %v348 = vadd.f32 0.0, %v347
      %v349 = vpop.f32.mrf.mxu0
      %v350 = vadd.f32 0.0, %v349
      %351 = vmatprep.mubr.bf16.mxu0 0
      %352 = vmatmul.mubr.bf16.gmra.mxu0 %v275
      %v353 = vpop.f32.mrf.mxu0
      %v354 = vadd.f32 0.0, %v353
      %v355 = vpop.f32.mrf.mxu0
      %v356 = vadd.f32 0.0, %v355
      %v357 = vpop.f32.mrf.mxu0
      %v358 = vadd.f32 0.0, %v357
      %v359 = vpop.f32.mrf.mxu0
      %v360 = vadd.f32 0.0, %v359
      %361 = vmatprep.mubr.bf16.mxu0 0
      %362 = vmatmul.mubr.bf16.gmra.mxu0 %v278
      %v363 = vpop.f32.mrf.mxu0
      %v364 = vadd.f32 0.0, %v363
      %v365 = vpop.f32.mrf.mxu0
      %v366 = vadd.f32 0.0, %v365
      %v367 = vpop.f32.mrf.mxu0
      %v368 = vadd.f32 0.0, %v367
      %v369 = vpop.f32.mrf.mxu0
      %v370 = vadd.f32 0.0, %v369
      %371 = vmatprep.mubr.bf16.mxu0 0
      %372 = vmatmul.mubr.bf16.gmra.mxu0 %v281
      %v373 = vpop.f32.mrf.mxu0
      %v374 = vadd.f32 0.0, %v373
      %v375 = vpop.f32.mrf.mxu0
      %v376 = vadd.f32 0.0, %v375
      %v377 = vpop.f32.mrf.mxu0
      %v378 = vadd.f32 0.0, %v377
      %v379 = vpop.f32.mrf.mxu0
      %v380 = vadd.f32 0.0, %v379
      %381 = vmatprep.mubr.bf16.mxu0 0
      %382 = vmatmul.mubr.bf16.gmra.mxu0 %v284
      %v383 = vpop.f32.mrf.mxu0
      %v384 = vadd.f32 0.0, %v383
      %v385 = vpop.f32.mrf.mxu0
      %v386 = vadd.f32 0.0, %v385
      %v387 = vpop.f32.mrf.mxu0
      %v388 = vadd.f32 0.0, %v387
      %v389 = vpop.f32.mrf.mxu0
      %v390 = vadd.f32 0.0, %v389
      %391 = vmatprep.mubr.bf16.mxu0 0
      %392 = vmatmul.mubr.bf16.gmra.mxu0 %v287
      %v393 = vpop.f32.mrf.mxu0
      %v394 = vadd.f32 0.0, %v393
      %v395 = vpop.f32.mrf.mxu0
      %v396 = vadd.f32 0.0, %v395
      %v397 = vpop.f32.mrf.mxu0
      %v398 = vadd.f32 0.0, %v397
      %v399 = vpop.f32.mrf.mxu0
      %v400 = vadd.f32 0.0, %v399
      %401 = vdwg.mxu0
      %v402 = vpack.c.bf16 %v328, %v324
      %v403 = vpack.c.bf16 %v338, %v334
      %v404 = vpack.c.bf16 %v348, %v344
      %v405 = vpack.c.bf16 %v358, %v354
      %v406 = vpack.c.bf16 %v368, %v364
      %v407 = vpack.c.bf16 %v378, %v374
      %v408 = vpack.c.bf16 %v388, %v384
      %v409 = vpack.c.bf16 %v398, %v394
      %v418 = vunpack.c.l.b16 %v402
      %v419 = vunpack.c.h.b16 %v402
      %v420 = vunpack.c.l.b16 %v403
      %v421 = vunpack.c.h.b16 %v403
      %v422 = vunpack.c.l.b16 %v404
      %v423 = vunpack.c.h.b16 %v404
      %v424 = vunpack.c.l.b16 %v405
      %v425 = vunpack.c.h.b16 %v405
      %v426 = vunpack.c.l.b16 %v406
      %v427 = vunpack.c.h.b16 %v406
      %v428 = vunpack.c.l.b16 %v407
      %v429 = vunpack.c.h.b16 %v407
      %v430 = vunpack.c.l.b16 %v408
      %v431 = vunpack.c.h.b16 %v408
      %v432 = vunpack.c.l.b16 %v409
      %v433 = vunpack.c.h.b16 %v409
      %v434 = vpack.c.b16 %v418, %v418
      %v435 = vpack.c.b16 %v419, %v419
      %v436 = vpack.c.b16 %v420, %v420
      %v437 = vpack.c.b16 %v421, %v421
      %v438 = vpack.c.b16 %v422, %v422
      %v439 = vpack.c.b16 %v423, %v423
      %v440 = vpack.c.b16 %v424, %v424
      %v441 = vpack.c.b16 %v425, %v425
      %v442 = vpack.c.b16 %v426, %v426
      %v443 = vpack.c.b16 %v427, %v427
      %v444 = vpack.c.b16 %v428, %v428
      %v445 = vpack.c.b16 %v429, %v429
      %v446 = vpack.c.b16 %v430, %v430
      %v447 = vpack.c.b16 %v431, %v431
      %v448 = vpack.c.b16 %v432, %v432
      %v449 = vpack.c.b16 %v433, %v433
      %466 = vst [vmem:[%s207] sm:$0xf] %v434
      %467 = vst [vmem:[%s207 + $0x4] sm:$0xf] %v435
      %468 = vst [vmem:[%s207 + $0x8] sm:$0xf] %v436
      %469 = vst [vmem:[%s207 + $0xc] sm:$0xf] %v437
      %470 = vst [vmem:[%s207 + $0x10] sm:$0xf] %v438
      %471 = vst [vmem:[%s207 + $0x14] sm:$0xf] %v439
      %472 = vst [vmem:[%s207 + $0x18] sm:$0xf] %v440
      %473 = vst [vmem:[%s207 + $0x1c] sm:$0xf] %v441
      %474 = vst [vmem:[%s207 + $0x20] sm:$0xf] %v442
      %475 = vst [vmem:[%s207 + $0x24] sm:$0xf] %v443
      %476 = vst [vmem:[%s207 + $0x28] sm:$0xf] %v444
      %477 = vst [vmem:[%s207 + $0x2c] sm:$0xf] %v445
      %478 = vst [vmem:[%s207 + $0x30] sm:$0xf] %v446
      %479 = vst [vmem:[%s207 + $0x34] sm:$0xf] %v447
      %480 = vst [vmem:[%s207 + $0x38] sm:$0xf] %v448
      %481 = vst [vmem:[%s207 + $0x3c] sm:$0xf] %v449
      %v482 = vld [vmem:[%s2] sm:$0x1]
      %v484 = vlaneseq
      %v485 = vshrl.u32 %v484, 7
      %v486 = vsub.s32 0, %v485
      %v487 = vrot.slane %v482, %v486
      %v489 = vadd.f32 %v326, %v487
      %v490 = vadd.f32 %v330, %v487
      %v491 = vadd.f32 %v336, %v487
      %v492 = vadd.f32 %v340, %v487
      %v493 = vadd.f32 %v346, %v487
      %v494 = vadd.f32 %v350, %v487
      %v495 = vadd.f32 %v356, %v487
      %v496 = vadd.f32 %v360, %v487
      %v497 = vadd.f32 %v366, %v487
      %v498 = vadd.f32 %v370, %v487
      %v499 = vadd.f32 %v376, %v487
      %v500 = vadd.f32 %v380, %v487
      %v501 = vadd.f32 %v386, %v487
      %v502 = vadd.f32 %v390, %v487
      %v503 = vadd.f32 %v396, %v487
      %v504 = vadd.f32 %v400, %v487
      %505 = vst [vmem:[%s213] sm:$0xff] %v489
      %506 = vst [vmem:[%s213 + $0x8] sm:$0xff] %v490
      %507 = vst [vmem:[%s213 + $0x10] sm:$0xff] %v491
      %508 = vst [vmem:[%s213 + $0x18] sm:$0xff] %v492
      %509 = vst [vmem:[%s213 + $0x20] sm:$0xff] %v493
      %510 = vst [vmem:[%s213 + $0x28] sm:$0xff] %v494
      %511 = vst [vmem:[%s213 + $0x30] sm:$0xff] %v495
      %512 = vst [vmem:[%s213 + $0x38] sm:$0xff] %v496
      %513 = vst [vmem:[%s213 + $0x40] sm:$0xff] %v497
      %514 = vst [vmem:[%s213 + $0x48] sm:$0xff] %v498
      %515 = vst [vmem:[%s213 + $0x50] sm:$0xff] %v499
      %516 = vst [vmem:[%s213 + $0x58] sm:$0xff] %v500
      %517 = vst [vmem:[%s213 + $0x60] sm:$0xff] %v501
      %518 = vst [vmem:[%s213 + $0x68] sm:$0xff] %v502
      %519 = vst [vmem:[%s213 + $0x70] sm:$0xff] %v503
      %520 = vst [vmem:[%s213 + $0x78] sm:$0xff] %v504
      %s521 = smul.u32 16, %s16
      %p522 = scmp.lt.s32.totalorder %s521, 31
      %s523 = scalar_select %p522, %s521, 31
      %s524 = smul.addr %s523, 4
      %s525 = scalar_lea.vmem %s3, %s524
      %s526 = smul.u32 16, %s16
      %p527 = scmp.lt.s32.totalorder %s526, 31
      %s528 = scalar_select %p527, %s526, 31
      %s529 = smul.addr %s528, 8
      %s530 = scalar_lea.vmem %s4, %s529
      // Predicated region
      $region33: #{net_forward.4} parent=31 // pred_check
        %p531 = pneg %p102
      $region34: #{net_forward.4} parent=31 // pred_check_branch
        %533 = sbr.rel (%p531) target = $region36
      $region35: #{net_forward.4} parent=31 // pred_region
        %s534 = smul.u32 16, %s16
      $region36: #{net_forward.4} parent=31 // pred_fallthru
        _
      // Predicated region
      $region37: #{net_forward.4} parent=31 // pred_check
        %p535 = pneg %p128
      $region38: #{net_forward.4} parent=31 // pred_check_branch
        %537 = sbr.rel (%p535) target = $region40
      $region39: #{net_forward.4} parent=31 // pred_region
        %s538 = smul.u32 16, %s16
      $region40: #{net_forward.4} parent=31 // pred_fallthru
        _
    $region32: #{net_forward.4} parent=5 // pred_fallthru
      _
    %p539 = scmp.le.s32.totalorder 2, %s11
    // Predicated region
    $region41: #{net_forward.4} parent=5 // pred_check
      %p540 = pneg %p539
    $region42: #{net_forward.4} parent=5 // pred_check_branch
      %542 = sbr.rel (%p540) target = $region44
    $region43: #{net_forward.4} parent=5 // pred_region
      %s543 = ssub.s32 %s11, 2
      // Predicated region
      $region45: #{net_forward.4} parent=43 // pred_check
        %p544 = pneg %p108
      $region46: #{net_forward.4} parent=43 // pred_check_branch
        %546 = sbr.rel (%p544) target = $region48
      $region47: #{net_forward.4} parent=43 // pred_region
        %s547 = smul.u32 16, %s17
        %p548 = scmp.lt.s32.totalorder %s547, 31
        %s549 = scalar_select %p548, %s547, 31
        %s550 = smul.addr %s549, 4
        %s551 = scalar_lea.vmem %s3, %s550
      $region48: #{net_forward.4} parent=43 // pred_fallthru
        _
      // Predicated region
      $region49: #{net_forward.4} parent=43 // pred_check
        %p552 = pneg %p134
      $region50: #{net_forward.4} parent=43 // pred_check_branch
        %554 = sbr.rel (%p552) target = $region52
      $region51: #{net_forward.4} parent=43 // pred_region
        %s555 = smul.u32 16, %s17
        %p556 = scmp.lt.s32.totalorder %s555, 31
        %s557 = scalar_select %p556, %s555, 31
        %s558 = smul.addr %s557, 8
        %s559 = scalar_lea.vmem %s4, %s558
      $region52: #{net_forward.4} parent=43 // pred_fallthru
        _
    $region44: #{net_forward.4} parent=5 // pred_fallthru
      _
  $region6: #{net_forward.4} parent=0 // loop_footer
    %s15 = sadd.s32 1, %s11
  $region7: #{net_forward.4} parent=0 // loop_footer_branch
    %10 = sbr.rel target = $region3
  $region8: #{net_forward.4} parent=0 // loop_exit
    _

// kernel: net_forward.6
$region0: #{net_forward.6}
  #allocation0 [shape = 'u32[]', space=smem, size = 0x4, offset = 0x4, fixed_abs, tag = 'smem constant byte address 0x4 - core index']
  #allocation1 [shape = 'u32[144,128]{1,0:T(1,128)}', space=vmem, size = 0x12000, scoped, tag = 'internal scratch']
  %s0 = inlined_call_operand.vmem [shape: f32[256,128], index: 0, kind: input, shape index: {}]
  %s1 = inlined_call_operand.vmem [shape: bf16[128,256], index: 1, kind: input, shape index: {}]
  %s2 = inlined_call_operand.vmem [shape: f32[1,128], index: 2, kind: input, shape index: {}]
  %s3 = inlined_call_operand.vmem [shape: bf16[256,128], index: 3, kind: output, shape index: {0}]
  %s4 = inlined_call_operand.vmem [shape: f32[256,128], index: 4, kind: output, shape index: {1}]
  %5 = xla_tuple %s3, %s4
  %s6 = sld [smem:[#allocation0]]
  $region53: #{net_forward.6} parent=0
    _
  %s8 = ssub.s32 1, %s6
  %s9 = scalar_select 0, %s8, %s6
  loop: start=0, step=1, limit=4
  $region2: #{net_forward.6} parent=0 // loop_pre_header
    _
  $region3: #{net_forward.6} parent=0 // loop_header
    %s11 = sphi 0, %s15
    %p12 = scmp.ge.s32.totalorder %s11, 4
    %s21 = sphi 0, %s23
    %s24 = sphi 0, %s21
    %s25 = sphi 0, %s24
    %s41 = sphi 0, %s25
    %s45 = sphi 0, %s45
    %s47 = sphi 0, %s45
    %s48 = sphi 0, %s47
    %s62 = sphi 0, %s48
    %s66 = sphi 0, %s66
    %s68 = sphi 0, %s66
    %s69 = sphi 0, %s68
    %s83 = sphi 0, %s69
    %s89 = sphi 0, %s91
    %s92 = sphi 0, %s89
    %s93 = sphi 0, %s92
    %s109 = sphi 0, %s93
    %s115 = sphi 0, %s117
    %s118 = sphi 0, %s115
    %s119 = sphi 0, %s118
    %s135 = sphi 0, %s119
  $region4: #{net_forward.6} parent=0 // loop_header_branch
    %14 = sbr.rel (%p12) target = $region8
  $region5: #{net_forward.6} parent=0 // loop_body
    %s16 = ssub.s32 %s11, 1
    %s17 = ssub.s32 %s11, 2
    %s18 = sadd.s32 %s11, 1
    %s19 = ssub.s32 %s11, %s18
    %p20 = scmp.eq.s32.totalorder %s19, 0
    %s22 = sadd.s32 %s21, 1
    %s23 = scalar_select %p20, %s21, %s22
    %p26 = pneg %p20
    %p27 = scmp.eq.s32.totalorder %s11, 1
    %p28 = por %p26, %p27
    %p29 = scmp.ne.s32.totalorder %s21, %s24
    %p30 = scmp.eq.s32.totalorder %s11, 0
    %p31 = por %p29, %p30
    %p32 = scmp.ne.s32.totalorder %s21, %s24
    %p33 = scmp.eq.s32.totalorder %s16, 1
    %p34 = por %p32, %p33
    %p35 = scmp.ne.s32.totalorder %s24, %s25
    %p36 = scmp.eq.s32.totalorder %s16, 0
    %p37 = por %p35, %p36
    %p38 = scmp.ne.s32.totalorder %s24, %s25
    %p39 = scmp.eq.s32.totalorder %s17, 1
    %p40 = por %p38, %p39
    %p42 = scmp.ne.s32.totalorder %s25, %s41
    %p43 = scmp.eq.s32.totalorder %s17, 0
    %p44 = por %p42, %p43
    %s46 = sadd.s32 %s45, 1
    %p49 = scmp.eq.s32.totalorder %s11, 1
    %p50 = scmp.ne.s32.totalorder %s45, %s47
    %p51 = scmp.eq.s32.totalorder %s11, 0
    %p52 = por %p50, %p51
    %p53 = scmp.ne.s32.totalorder %s45, %s47
    %p54 = scmp.eq.s32.totalorder %s16, 1
    %p55 = por %p53, %p54
    %p56 = scmp.ne.s32.totalorder %s47, %s48
    %p57 = scmp.eq.s32.totalorder %s16, 0
    %p58 = por %p56, %p57
    %p59 = scmp.ne.s32.totalorder %s47, %s48
    %p60 = scmp.eq.s32.totalorder %s17, 1
    %p61 = por %p59, %p60
    %p63 = scmp.ne.s32.totalorder %s48, %s62
    %p64 = scmp.eq.s32.totalorder %s17, 0
    %p65 = por %p63, %p64
    %s67 = sadd.s32 %s66, 1
    %p70 = scmp.eq.s32.totalorder %s11, 1
    %p71 = scmp.ne.s32.totalorder %s66, %s68
    %p72 = scmp.eq.s32.totalorder %s11, 0
    %p73 = por %p71, %p72
    %p74 = scmp.ne.s32.totalorder %s66, %s68
    %p75 = scmp.eq.s32.totalorder %s16, 1
    %p76 = por %p74, %p75
    %p77 = scmp.ne.s32.totalorder %s68, %s69
    %p78 = scmp.eq.s32.totalorder %s16, 0
    %p79 = por %p77, %p78
    %p80 = scmp.ne.s32.totalorder %s68, %s69
    %p81 = scmp.eq.s32.totalorder %s17, 1
    %p82 = por %p80, %p81
    %p84 = scmp.ne.s32.totalorder %s69, %s83
    %p85 = scmp.eq.s32.totalorder %s17, 0
    %p86 = por %p84, %p85
    %s87 = ssub.s32 %s11, %s18
    %p88 = scmp.eq.s32.totalorder %s87, 0
    %s90 = sadd.s32 %s89, 1
    %s91 = scalar_select %p88, %s89, %s90
    %p94 = pneg %p88
    %p95 = scmp.eq.s32.totalorder %s11, 1
    %p96 = por %p94, %p95
    %p97 = scmp.ne.s32.totalorder %s89, %s92
    %p98 = scmp.eq.s32.totalorder %s11, 0
    %p99 = por %p97, %p98
    %p100 = scmp.ne.s32.totalorder %s89, %s92
    %p101 = scmp.eq.s32.totalorder %s16, 1
    %p102 = por %p100, %p101
    %p103 = scmp.ne.s32.totalorder %s92, %s93
    %p104 = scmp.eq.s32.totalorder %s16, 0
    %p105 = por %p103, %p104
    %p106 = scmp.ne.s32.totalorder %s92, %s93
    %p107 = scmp.eq.s32.totalorder %s17, 1
    %p108 = por %p106, %p107
    %p110 = scmp.ne.s32.totalorder %s93, %s109
    %p111 = scmp.eq.s32.totalorder %s17, 0
    %p112 = por %p110, %p111
    %s113 = ssub.s32 %s11, %s18
    %p114 = scmp.eq.s32.totalorder %s113, 0
    %s116 = sadd.s32 %s115, 1
    %s117 = scalar_select %p114, %s115, %s116
    %p120 = pneg %p114
    %p121 = scmp.eq.s32.totalorder %s11, 1
    %p122 = por %p120, %p121
    %p123 = scmp.ne.s32.totalorder %s115, %s118
    %p124 = scmp.eq.s32.totalorder %s11, 0
    %p125 = por %p123, %p124
    %p126 = scmp.ne.s32.totalorder %s115, %s118
    %p127 = scmp.eq.s32.totalorder %s16, 1
    %p128 = por %p126, %p127
    %p129 = scmp.ne.s32.totalorder %s118, %s119
    %p130 = scmp.eq.s32.totalorder %s16, 0
    %p131 = por %p129, %p130
    %p132 = scmp.ne.s32.totalorder %s118, %s119
    %p133 = scmp.eq.s32.totalorder %s17, 1
    %p134 = por %p132, %p133
    %p136 = scmp.ne.s32.totalorder %s119, %s135
    %p137 = scmp.eq.s32.totalorder %s17, 0
    %p138 = por %p136, %p137
    %p139 = scmp.le.s32.totalorder 1, %s11
    %p140 = scmp.lt.s32.totalorder %s11, 3
    %p141 = pnand %p139, %p140
    %p142 = pneg %p141
    // Predicated region
    $region9: #{net_forward.6} parent=5 // pred_check
      _
    $region10: #{net_forward.6} parent=5 // pred_check_branch
      %144 = sbr.rel (%p141) target = $region12
    $region11: #{net_forward.6} parent=5 // pred_region
      %s145 = ssub.s32 %s11, 1
      // Predicated region
      $region13: #{net_forward.6} parent=11 // pred_check
        %p146 = pneg %p58
      $region14: #{net_forward.6} parent=11 // pred_check_branch
        %148 = sbr.rel (%p146) target = $region16
      $region15: #{net_forward.6} parent=11 // pred_region
        _
      $region16: #{net_forward.6} parent=11 // pred_fallthru
        _
      // Predicated region
      $region17: #{net_forward.6} parent=11 // pred_check
        %p149 = pneg %p79
      $region18: #{net_forward.6} parent=11 // pred_check_branch
        %151 = sbr.rel (%p149) target = $region20
      $region19: #{net_forward.6} parent=11 // pred_region
        _
      $region20: #{net_forward.6} parent=11 // pred_fallthru
        _
    $region12: #{net_forward.6} parent=5 // pred_fallthru
      _
    %p152 = scmp.lt.s32.totalorder %s11, 2
    // Predicated region
    $region21: #{net_forward.6} parent=5 // pred_check
      %p153 = pneg %p152
    $region22: #{net_forward.6} parent=5 // pred_check_branch
      %155 = sbr.rel (%p153) target = $region24
    $region23: #{net_forward.6} parent=5 // pred_region
      // Predicated region
      $region25: #{net_forward.6} parent=23 // pred_check
        %p156 = pneg %p31
      $region26: #{net_forward.6} parent=23 // pred_check_branch
        %158 = sbr.rel (%p156) target = $region28
      $region27: #{net_forward.6} parent=23 // pred_region
        %s159 = smul.u32 16, %s11
        %p160 = scmp.lt.s32.totalorder %s159, 31
        %s161 = scalar_select %p160, %s159, 31
        %s162 = smul.addr %s161, 8
        %s163 = scalar_lea.vmem %s0, %s162
        %s164 = smul.u32 16, %s11
      $region28: #{net_forward.6} parent=23 // pred_fallthru
        _
    $region24: #{net_forward.6} parent=5 // pred_fallthru
      _
    %p165 = scmp.le.s32.totalorder 1, %s11
    %p166 = scmp.lt.s32.totalorder %s11, 3
    %p167 = pnand %p165, %p166
    %p168 = pneg %p167
    // Predicated region
    $region29: #{net_forward.6} parent=5 // pred_check
      _
    $region30: #{net_forward.6} parent=5 // pred_check_branch
      %170 = sbr.rel (%p167) target = $region32
    $region31: #{net_forward.6} parent=5 // pred_region
      %s171 = ssub.s32 %s11, 1
      %s172 = smul.u32 16, %s16
      %p173 = scmp.lt.s32.totalorder %s172, 31
      %s174 = scalar_select %p173, %s172, 31
      %s175 = smul.addr %s174, 8
      %s176 = scalar_lea.vmem %s0, %s175
      %p177 = pneg %p37
      %p178 = pneg %p34
      %p179 = pneg %p58
      %p180 = pneg %p55
      %p181 = pneg %p79
      %p182 = pneg %p76
      %p183 = pneg %p105
      %p184 = pneg %p102
      %s185 = smul.u32 16, %s16
      %p186 = scmp.lt.s32.totalorder %s185, 31
      %s187 = scalar_select %p186, %s185, 31
      %s188 = smul.addr %s187, 4
      %s189 = scalar_lea.vmem %s3, %s188
      %p190 = pneg %p131
      %p191 = pneg %p128
      %s192 = smul.u32 16, %s16
      %p193 = scmp.lt.s32.totalorder %s192, 31
      %s194 = scalar_select %p193, %s192, 31
      %s195 = smul.addr %s194, 8
      %s196 = scalar_lea.vmem %s4, %s195
      %s197 = smul.u32 16, %s16
      %p198 = scmp.lt.s32.totalorder %s197, 31
      %s199 = scalar_select %p198, %s197, 31
      %s200 = smul.addr %s199, 8
      %s201 = scalar_lea.vmem %s0, %s200
      %s202 = smul.u32 16, %s16
      %s203 = smul.u32 16, %s16
      %p204 = scmp.lt.s32.totalorder %s203, 31
      %s205 = scalar_select %p204, %s203, 31
      %s206 = smul.addr %s205, 4
      %s207 = scalar_lea.vmem %s3, %s206
      %s208 = smul.u32 16, %s16
      %s209 = smul.u32 16, %s16
      %p210 = scmp.lt.s32.totalorder %s209, 31
      %s211 = scalar_select %p210, %s209, 31
      %s212 = smul.addr %s211, 8
      %s213 = scalar_lea.vmem %s4, %s212
      %s214 = smul.u32 16, %s16
      %v216 = vld [vmem:[%s201] sm:$0xff]
      %v217 = vld [vmem:[%s201 + $0x8] sm:$0xff]
      %v218 = vld [vmem:[%s201 + $0x10] sm:$0xff]
      %v219 = vld [vmem:[%s201 + $0x18] sm:$0xff]
      %v220 = vld [vmem:[%s201 + $0x20] sm:$0xff]
      %v221 = vld [vmem:[%s201 + $0x28] sm:$0xff]
      %v222 = vld [vmem:[%s201 + $0x30] sm:$0xff]
      %v223 = vld [vmem:[%s201 + $0x38] sm:$0xff]
      %v224 = vld [vmem:[%s201 + $0x40] sm:$0xff]
      %v225 = vld [vmem:[%s201 + $0x48] sm:$0xff]
      %v226 = vld [vmem:[%s201 + $0x50] sm:$0xff]
      %v227 = vld [vmem:[%s201 + $0x58] sm:$0xff]
      %v228 = vld [vmem:[%s201 + $0x60] sm:$0xff]
      %v229 = vld [vmem:[%s201 + $0x68] sm:$0xff]
      %v230 = vld [vmem:[%s201 + $0x70] sm:$0xff]
      %v231 = vld [vmem:[%s201 + $0x78] sm:$0xff]
      %v232 = vpack.c.bf16 %v217, %v216
      %v233 = vpack.c.bf16 %v219, %v218
      %v234 = vpack.c.bf16 %v221, %v220
      %v235 = vpack.c.bf16 %v223, %v222
      %v236 = vpack.c.bf16 %v225, %v224
      %v237 = vpack.c.bf16 %v227, %v226
      %v238 = vpack.c.bf16 %v229, %v228
      %v239 = vpack.c.bf16 %v231, %v230
      %v240 = vld [vmem:[%s1] sm:$0xff]
      %v241 = vld [vmem:[%s1 + $0x8] sm:$0xff]
      %v242 = vld [vmem:[%s1 + $0x10] sm:$0xff]
      %v243 = vld [vmem:[%s1 + $0x18] sm:$0xff]
      %v244 = vld [vmem:[%s1 + $0x20] sm:$0xff]
      %v245 = vld [vmem:[%s1 + $0x28] sm:$0xff]
      %v246 = vld [vmem:[%s1 + $0x30] sm:$0xff]
      %v247 = vld [vmem:[%s1 + $0x38] sm:$0xff]
      %v248 = vld [vmem:[%s1 + $0x40] sm:$0xff]
      %v249 = vld [vmem:[%s1 + $0x48] sm:$0xff]
      %v250 = vld [vmem:[%s1 + $0x50] sm:$0xff]
      %v251 = vld [vmem:[%s1 + $0x58] sm:$0xff]
      %v252 = vld [vmem:[%s1 + $0x60] sm:$0xff]
      %v253 = vld [vmem:[%s1 + $0x68] sm:$0xff]
      %v254 = vld [vmem:[%s1 + $0x70] sm:$0xff]
      %v255 = vld [vmem:[%s1 + $0x78] sm:$0xff]
      %v272 = vunpack.c.l.b16 %v240
      %v273 = vunpack.c.h.b16 %v240
      %v274 = vunpack.c.l.b16 %v241
      %v275 = vunpack.c.h.b16 %v241
      %v276 = vunpack.c.l.b16 %v242
      %v277 = vunpack.c.h.b16 %v242
      %v278 = vunpack.c.l.b16 %v243
      %v279 = vunpack.c.h.b16 %v243
      %v280 = vunpack.c.l.b16 %v244
      %v281 = vunpack.c.h.b16 %v244
      %v282 = vunpack.c.l.b16 %v245
      %v283 = vunpack.c.h.b16 %v245
      %v284 = vunpack.c.l.b16 %v246
      %v285 = vunpack.c.h.b16 %v246
      %v286 = vunpack.c.l.b16 %v247
      %v287 = vunpack.c.h.b16 %v247
      %v288 = vunpack.c.l.b16 %v248
      %v289 = vunpack.c.h.b16 %v248
      %v290 = vunpack.c.l.b16 %v249
      %v291 = vunpack.c.h.b16 %v249
      %v292 = vunpack.c.l.b16 %v250
      %v293 = vunpack.c.h.b16 %v250
      %v294 = vunpack.c.l.b16 %v251
      %v295 = vunpack.c.h.b16 %v251
      %v296 = vunpack.c.l.b16 %v252
      %v297 = vunpack.c.h.b16 %v252
      %v298 = vunpack.c.l.b16 %v253
      %v299 = vunpack.c.h.b16 %v253
      %v300 = vunpack.c.l.b16 %v254
      %v301 = vunpack.c.h.b16 %v254
      %v302 = vunpack.c.l.b16 %v255
      %v303 = vunpack.c.h.b16 %v255
      %v304 = vpack.c.b16 %v274, %v272
      %v305 = vpack.c.b16 %v275, %v273
      %v306 = vpack.c.b16 %v278, %v276
      %v307 = vpack.c.b16 %v279, %v277
      %v308 = vpack.c.b16 %v282, %v280
      %v309 = vpack.c.b16 %v283, %v281
      %v310 = vpack.c.b16 %v286, %v284
      %v311 = vpack.c.b16 %v287, %v285
      %v312 = vpack.c.b16 %v290, %v288
      %v313 = vpack.c.b16 %v291, %v289
      %v314 = vpack.c.b16 %v294, %v292
      %v315 = vpack.c.b16 %v295, %v293
      %v316 = vpack.c.b16 %v298, %v296
      %v317 = vpack.c.b16 %v299, %v297
      %v318 = vpack.c.b16 %v302, %v300
      %v319 = vpack.c.b16 %v303, %v301
      %336 = vmatprep.subr.bf16.mxu0 %v319
      %337 = vmatpush1.bf16.msra.mxu0 %v318
      %338 = vmatprep.subr.bf16.mxu0 %v317
      %339 = vmatpush1.bf16.msra.mxu0 %v316
      %340 = vmatprep.subr.bf16.mxu0 %v315
      %341 = vmatpush1.bf16.msra.mxu0 %v314
      %342 = vmatprep.subr.bf16.mxu0 %v313
      %343 = vmatpush1.bf16.msra.mxu0 %v312
      %344 = vmatprep.subr.bf16.mxu0 %v311
      %345 = vmatpush1.bf16.msra.mxu0 %v310
      %346 = vmatprep.subr.bf16.mxu0 %v309
      %347 = vmatpush1.bf16.msra.mxu0 %v308
      %348 = vmatprep.subr.bf16.mxu0 %v307
      %349 = vmatpush1.bf16.msra.mxu0 %v306
      %350 = vmatprep.subr.bf16.mxu0 %v305
      %351 = vmatpush1.bf16.msra.mxu0 %v304
      %352 = vmatprep.subr.bf16.mxu0 0
      %353 = vmatpush2.bf16.msra.mxu0 0
      %354 = vmatprep.subr.bf16.mxu0 0
      %355 = vmatpush2.bf16.msra.mxu0 0
      %356 = vmatprep.subr.bf16.mxu0 0
      %357 = vmatpush2.bf16.msra.mxu0 0
      %358 = vmatprep.subr.bf16.mxu0 0
      %359 = vmatpush2.bf16.msra.mxu0 0
      %360 = vmatprep.subr.bf16.mxu0 0
      %361 = vmatpush2.bf16.msra.mxu0 0
      %362 = vmatprep.subr.bf16.mxu0 0
      %363 = vmatpush2.bf16.msra.mxu0 0
      %364 = vmatprep.subr.bf16.mxu0 0
      %365 = vmatpush2.bf16.msra.mxu0 0
      %366 = vmatprep.subr.bf16.mxu0 0
      %367 = vmatpush2.bf16.msra.mxu0 0
      %368 = vmatprep.mubr.bf16.mxu0 0
      %369 = vmatmul.mubr.bf16.gmra.mxu0 %v232
      %v370 = vpop.f32.mrf.mxu0
      %v371 = vadd.f32 0.0, %v370
      %v372 = vpop.f32.mrf.mxu0
      %v373 = vadd.f32 0.0, %v372
      %v374 = vpop.f32.mrf.mxu0
      %v375 = vadd.f32 0.0, %v374
      %v376 = vpop.f32.mrf.mxu0
      %v377 = vadd.f32 0.0, %v376
      %378 = vmatprep.mubr.bf16.mxu0 0
      %379 = vmatmul.mubr.bf16.gmra.mxu0 %v233
      %v380 = vpop.f32.mrf.mxu0
      %v381 = vadd.f32 0.0, %v380
      %v382 = vpop.f32.mrf.mxu0
      %v383 = vadd.f32 0.0, %v382
      %v384 = vpop.f32.mrf.mxu0
      %v385 = vadd.f32 0.0, %v384
      %v386 = vpop.f32.mrf.mxu0
      %v387 = vadd.f32 0.0, %v386
      %388 = vmatprep.mubr.bf16.mxu0 0
      %389 = vmatmul.mubr.bf16.gmra.mxu0 %v234
      %v390 = vpop.f32.mrf.mxu0
      %v391 = vadd.f32 0.0, %v390
      %v392 = vpop.f32.mrf.mxu0
      %v393 = vadd.f32 0.0, %v392
      %v394 = vpop.f32.mrf.mxu0
      %v395 = vadd.f32 0.0, %v394
      %v396 = vpop.f32.mrf.mxu0
      %v397 = vadd.f32 0.0, %v396
      %398 = vmatprep.mubr.bf16.mxu0 0
      %399 = vmatmul.mubr.bf16.gmra.mxu0 %v235
      %v400 = vpop.f32.mrf.mxu0
      %v401 = vadd.f32 0.0, %v400
      %v402 = vpop.f32.mrf.mxu0
      %v403 = vadd.f32 0.0, %v402
      %v404 = vpop.f32.mrf.mxu0
      %v405 = vadd.f32 0.0, %v404
      %v406 = vpop.f32.mrf.mxu0
      %v407 = vadd.f32 0.0, %v406
      %408 = vmatprep.mubr.bf16.mxu0 0
      %409 = vmatmul.mubr.bf16.gmra.mxu0 %v236
      %v410 = vpop.f32.mrf.mxu0
      %v411 = vadd.f32 0.0, %v410
      %v412 = vpop.f32.mrf.mxu0
      %v413 = vadd.f32 0.0, %v412
      %v414 = vpop.f32.mrf.mxu0
      %v415 = vadd.f32 0.0, %v414
      %v416 = vpop.f32.mrf.mxu0
      %v417 = vadd.f32 0.0, %v416
      %418 = vmatprep.mubr.bf16.mxu0 0
      %419 = vmatmul.mubr.bf16.gmra.mxu0 %v237
      %v420 = vpop.f32.mrf.mxu0
      %v421 = vadd.f32 0.0, %v420
      %v422 = vpop.f32.mrf.mxu0
      %v423 = vadd.f32 0.0, %v422
      %v424 = vpop.f32.mrf.mxu0
      %v425 = vadd.f32 0.0, %v424
      %v426 = vpop.f32.mrf.mxu0
      %v427 = vadd.f32 0.0, %v426
      %428 = vmatprep.mubr.bf16.mxu0 0
      %429 = vmatmul.mubr.bf16.gmra.mxu0 %v238
      %v430 = vpop.f32.mrf.mxu0
      %v431 = vadd.f32 0.0, %v430
      %v432 = vpop.f32.mrf.mxu0
      %v433 = vadd.f32 0.0, %v432
      %v434 = vpop.f32.mrf.mxu0
      %v435 = vadd.f32 0.0, %v434
      %v436 = vpop.f32.mrf.mxu0
      %v437 = vadd.f32 0.0, %v436
      %438 = vmatprep.mubr.bf16.mxu0 0
      %439 = vmatmul.mubr.bf16.gmra.mxu0 %v239
      %v440 = vpop.f32.mrf.mxu0
      %v441 = vadd.f32 0.0, %v440
      %v442 = vpop.f32.mrf.mxu0
      %v443 = vadd.f32 0.0, %v442
      %v444 = vpop.f32.mrf.mxu0
      %v445 = vadd.f32 0.0, %v444
      %v446 = vpop.f32.mrf.mxu0
      %v447 = vadd.f32 0.0, %v446
      %448 = vdwg.mxu0
      %v449 = vpack.c.bf16 %v375, %v371
      %v450 = vpack.c.bf16 %v385, %v381
      %v451 = vpack.c.bf16 %v395, %v391
      %v452 = vpack.c.bf16 %v405, %v401
      %v453 = vpack.c.bf16 %v415, %v411
      %v454 = vpack.c.bf16 %v425, %v421
      %v455 = vpack.c.bf16 %v435, %v431
      %v456 = vpack.c.bf16 %v445, %v441
      %v465 = vunpack.c.l.b16 %v449
      %v466 = vunpack.c.h.b16 %v449
      %v467 = vunpack.c.l.b16 %v450
      %v468 = vunpack.c.h.b16 %v450
      %v469 = vunpack.c.l.b16 %v451
      %v470 = vunpack.c.h.b16 %v451
      %v471 = vunpack.c.l.b16 %v452
      %v472 = vunpack.c.h.b16 %v452
      %v473 = vunpack.c.l.b16 %v453
      %v474 = vunpack.c.h.b16 %v453
      %v475 = vunpack.c.l.b16 %v454
      %v476 = vunpack.c.h.b16 %v454
      %v477 = vunpack.c.l.b16 %v455
      %v478 = vunpack.c.h.b16 %v455
      %v479 = vunpack.c.l.b16 %v456
      %v480 = vunpack.c.h.b16 %v456
      %v481 = vpack.c.b16 %v465, %v465
      %v482 = vpack.c.b16 %v466, %v466
      %v483 = vpack.c.b16 %v467, %v467
      %v484 = vpack.c.b16 %v468, %v468
      %v485 = vpack.c.b16 %v469, %v469
      %v486 = vpack.c.b16 %v470, %v470
      %v487 = vpack.c.b16 %v471, %v471
      %v488 = vpack.c.b16 %v472, %v472
      %v489 = vpack.c.b16 %v473, %v473
      %v490 = vpack.c.b16 %v474, %v474
      %v491 = vpack.c.b16 %v475, %v475
      %v492 = vpack.c.b16 %v476, %v476
      %v493 = vpack.c.b16 %v477, %v477
      %v494 = vpack.c.b16 %v478, %v478
      %v495 = vpack.c.b16 %v479, %v479
      %v496 = vpack.c.b16 %v480, %v480
      %513 = vst [vmem:[%s207] sm:$0xf] %v481
      %514 = vst [vmem:[%s207 + $0x4] sm:$0xf] %v482
      %515 = vst [vmem:[%s207 + $0x8] sm:$0xf] %v483
      %516 = vst [vmem:[%s207 + $0xc] sm:$0xf] %v484
      %517 = vst [vmem:[%s207 + $0x10] sm:$0xf] %v485
      %518 = vst [vmem:[%s207 + $0x14] sm:$0xf] %v486
      %519 = vst [vmem:[%s207 + $0x18] sm:$0xf] %v487
      %520 = vst [vmem:[%s207 + $0x1c] sm:$0xf] %v488
      %521 = vst [vmem:[%s207 + $0x20] sm:$0xf] %v489
      %522 = vst [vmem:[%s207 + $0x24] sm:$0xf] %v490
      %523 = vst [vmem:[%s207 + $0x28] sm:$0xf] %v491
      %524 = vst [vmem:[%s207 + $0x2c] sm:$0xf] %v492
      %525 = vst [vmem:[%s207 + $0x30] sm:$0xf] %v493
      %526 = vst [vmem:[%s207 + $0x34] sm:$0xf] %v494
      %527 = vst [vmem:[%s207 + $0x38] sm:$0xf] %v495
      %528 = vst [vmem:[%s207 + $0x3c] sm:$0xf] %v496
      %v529 = vld [vmem:[%s2] sm:$0x1]
      %v531 = vlaneseq
      %v532 = vshrl.u32 %v531, 7
      %v533 = vsub.s32 0, %v532
      %v534 = vrot.slane %v529, %v533
      %v536 = vadd.f32 %v373, %v534
      %v537 = vadd.f32 %v377, %v534
      %v538 = vadd.f32 %v383, %v534
      %v539 = vadd.f32 %v387, %v534
      %v540 = vadd.f32 %v393, %v534
      %v541 = vadd.f32 %v397, %v534
      %v542 = vadd.f32 %v403, %v534
      %v543 = vadd.f32 %v407, %v534
      %v544 = vadd.f32 %v413, %v534
      %v545 = vadd.f32 %v417, %v534
      %v546 = vadd.f32 %v423, %v534
      %v547 = vadd.f32 %v427, %v534
      %v548 = vadd.f32 %v433, %v534
      %v549 = vadd.f32 %v437, %v534
      %v550 = vadd.f32 %v443, %v534
      %v551 = vadd.f32 %v447, %v534
      %552 = vst [vmem:[%s213] sm:$0xff] %v536
      %553 = vst [vmem:[%s213 + $0x8] sm:$0xff] %v537
      %554 = vst [vmem:[%s213 + $0x10] sm:$0xff] %v538
      %555 = vst [vmem:[%s213 + $0x18] sm:$0xff] %v539
      %556 = vst [vmem:[%s213 + $0x20] sm:$0xff] %v540
      %557 = vst [vmem:[%s213 + $0x28] sm:$0xff] %v541
      %558 = vst [vmem:[%s213 + $0x30] sm:$0xff] %v542
      %559 = vst [vmem:[%s213 + $0x38] sm:$0xff] %v543
      %560 = vst [vmem:[%s213 + $0x40] sm:$0xff] %v544
      %561 = vst [vmem:[%s213 + $0x48] sm:$0xff] %v545
      %562 = vst [vmem:[%s213 + $0x50] sm:$0xff] %v546
      %563 = vst [vmem:[%s213 + $0x58] sm:$0xff] %v547
      %564 = vst [vmem:[%s213 + $0x60] sm:$0xff] %v548
      %565 = vst [vmem:[%s213 + $0x68] sm:$0xff] %v549
      %566 = vst [vmem:[%s213 + $0x70] sm:$0xff] %v550
      %567 = vst [vmem:[%s213 + $0x78] sm:$0xff] %v551
      %s568 = smul.u32 16, %s16
      %p569 = scmp.lt.s32.totalorder %s568, 31
      %s570 = scalar_select %p569, %s568, 31
      %s571 = smul.addr %s570, 4
      %s572 = scalar_lea.vmem %s3, %s571
      %s573 = smul.u32 16, %s16
      %p574 = scmp.lt.s32.totalorder %s573, 31
      %s575 = scalar_select %p574, %s573, 31
      %s576 = smul.addr %s575, 8
      %s577 = scalar_lea.vmem %s4, %s576
      // Predicated region
      $region33: #{net_forward.6} parent=31 // pred_check
        %p578 = pneg %p102
      $region34: #{net_forward.6} parent=31 // pred_check_branch
        %580 = sbr.rel (%p578) target = $region36
      $region35: #{net_forward.6} parent=31 // pred_region
        %s581 = smul.u32 16, %s16
      $region36: #{net_forward.6} parent=31 // pred_fallthru
        _
      // Predicated region
      $region37: #{net_forward.6} parent=31 // pred_check
        %p582 = pneg %p128
      $region38: #{net_forward.6} parent=31 // pred_check_branch
        %584 = sbr.rel (%p582) target = $region40
      $region39: #{net_forward.6} parent=31 // pred_region
        %s585 = smul.u32 16, %s16
      $region40: #{net_forward.6} parent=31 // pred_fallthru
        _
    $region32: #{net_forward.6} parent=5 // pred_fallthru
      _
    %p586 = scmp.le.s32.totalorder 2, %s11
    // Predicated region
    $region41: #{net_forward.6} parent=5 // pred_check
      %p587 = pneg %p586
    $region42: #{net_forward.6} parent=5 // pred_check_branch
      %589 = sbr.rel (%p587) target = $region44
    $region43: #{net_forward.6} parent=5 // pred_region
      %s590 = ssub.s32 %s11, 2
      // Predicated region
      $region45: #{net_forward.6} parent=43 // pred_check
        %p591 = pneg %p108
      $region46: #{net_forward.6} parent=43 // pred_check_branch
        %593 = sbr.rel (%p591) target = $region48
      $region47: #{net_forward.6} parent=43 // pred_region
        %s594 = smul.u32 16, %s17
        %p595 = scmp.lt.s32.totalorder %s594, 31
        %s596 = scalar_select %p595, %s594, 31
        %s597 = smul.addr %s596, 4
        %s598 = scalar_lea.vmem %s3, %s597
      $region48: #{net_forward.6} parent=43 // pred_fallthru
        _
      // Predicated region
      $region49: #{net_forward.6} parent=43 // pred_check
        %p599 = pneg %p134
      $region50: #{net_forward.6} parent=43 // pred_check_branch
        %601 = sbr.rel (%p599) target = $region52
      $region51: #{net_forward.6} parent=43 // pred_region
        %s602 = smul.u32 16, %s17
        %p603 = scmp.lt.s32.totalorder %s602, 31
        %s604 = scalar_select %p603, %s602, 31
        %s605 = smul.addr %s604, 8
        %s606 = scalar_lea.vmem %s4, %s605
      $region52: #{net_forward.6} parent=43 // pred_fallthru
        _
    $region44: #{net_forward.6} parent=5 // pred_fallthru
      _
  $region6: #{net_forward.6} parent=0 // loop_footer
    %s15 = sadd.s32 1, %s11
  $region7: #{net_forward.6} parent=0 // loop_footer_branch
    %10 = sbr.rel target = $region3
  $region8: #{net_forward.6} parent=0 // loop_exit
    _

// kernel: net_forward.7
$region0: #{net_forward.7}
  #allocation0 [shape = 'u32[]', space=smem, size = 0x4, offset = 0x4, fixed_abs, tag = 'smem constant byte address 0x4 - core index']
  #allocation1 [shape = 'u32[144,128]{1,0:T(1,128)}', space=vmem, size = 0x12000, scoped, tag = 'internal scratch']
  #allocation2 [shape = 'f32[128,128]{1,0:T(8,128)}', space=vmem, size = 0x10000, scoped, tag = 'scratch operand']
  %s0 = inlined_call_operand.vmem [shape: bf16[256,256], index: 0, kind: input, shape index: {}]
  %s1 = inlined_call_operand.vmem [shape: bf16[256,128], index: 1, kind: input, shape index: {}]
  %s2 = inlined_call_operand.vmem [shape: f32[256,128], index: 2, kind: input, shape index: {}]
  %s3 = inlined_call_operand.vmem [shape: f32[256,128], index: 3, kind: output, shape index: {}]
  %s4 = sld [smem:[#allocation0]]
  $region94: #{net_forward.7} parent=0
    _
  %s6 = ssub.s32 1, %s4
  %s7 = scalar_select 0, %s6, %s4
  $region1: #{net_forward.7} parent=0
    #allocation3 [shape = 'u8[65536]{0}', space=vmem, size = 0x10000, scoped, tag = 'input window, operand 0']
    loop: start=0, step=1, limit=6
    $region2: #{net_forward.7} parent=1 // loop_pre_header
      _
    $region3: #{net_forward.7} parent=1 // loop_header
      %s9 = sphi 0, %s13
      %p10 = scmp.ge.s32.totalorder %s9, 6
      %s16 = sphi 0, %s28
      %s17 = sphi 0, %s24
      %s18 = sphi 0, %s16
      %s19 = sphi 0, %s17
      %s20 = sphi 0, %s18
      %s21 = sphi 0, %s19
      %s33 = sphi 0, %s35
      %s36 = sphi 0, %s33
      %s37 = sphi 0, %s36
      %s53 = sphi 0, %s37
      %s59 = sphi 0, %s61
      %s62 = sphi 0, %s59
      %s63 = sphi 0, %s62
      %s79 = sphi 0, %s63
      %s85 = sphi 0, %s87
      %s88 = sphi 0, %s85
      %s89 = sphi 0, %s88
      %s105 = sphi 0, %s89
      %s111 = sphi 0, %s113
      %s114 = sphi 0, %s111
      %s115 = sphi 0, %s114
      %s131 = sphi 0, %s115
    $region4: #{net_forward.7} parent=1 // loop_header_branch
      %12 = sbr.rel (%p10) target = $region8
    $region5: #{net_forward.7} parent=1 // loop_body
      %s14 = ssub.s32 %s9, 1
      %s15 = ssub.s32 %s9, 2
      %s22 = sadd.s32 1, %s17
      %p23 = scmp.ge.s32.totalorder %s22, 2
      %s24 = scalar_select %p23, 0, %s22
      %s25 = sadd.s32 1, %s16
      %s26 = scalar_select %p23, %s25, %s16
      %p27 = scmp.ge.s32.totalorder %s26, 2
      %s28 = scalar_select %p27, 0, %s26
      %s29 = ssub.s32 %s16, %s28
      %s30 = ssub.s32 %s17, %s24
      %s31 = sor.u32 %s29, %s30
      %p32 = scmp.eq.s32.totalorder %s31, 0
      %s34 = sadd.s32 %s33, 1
      %s35 = scalar_select %p32, %s33, %s34
      %p38 = pneg %p32
      %p39 = scmp.eq.s32.totalorder %s9, 3
      %p40 = por %p38, %p39
      %p41 = scmp.ne.s32.totalorder %s33, %s36
      %p42 = scmp.eq.s32.totalorder %s9, 0
      %p43 = por %p41, %p42
      %p44 = scmp.ne.s32.totalorder %s33, %s36
      %p45 = scmp.eq.s32.totalorder %s14, 3
      %p46 = por %p44, %p45
      %p47 = scmp.ne.s32.totalorder %s36, %s37
      %p48 = scmp.eq.s32.totalorder %s14, 0
      %p49 = por %p47, %p48
      %p50 = scmp.ne.s32.totalorder %s36, %s37
      %p51 = scmp.eq.s32.totalorder %s15, 3
      %p52 = por %p50, %p51
      %p54 = scmp.ne.s32.totalorder %s37, %s53
      %p55 = scmp.eq.s32.totalorder %s15, 0
      %p56 = por %p54, %p55
      %s57 = ssub.s32 %s17, %s24
      %p58 = scmp.eq.s32.totalorder %s57, 0
      %s60 = sadd.s32 %s59, 1
      %s61 = scalar_select %p58, %s59, %s60
      %p64 = pneg %p58
      %p65 = scmp.eq.s32.totalorder %s9, 3
      %p66 = por %p64, %p65
      %p67 = scmp.ne.s32.totalorder %s59, %s62
      %p68 = scmp.eq.s32.totalorder %s9, 0
      %p69 = por %p67, %p68
      %p70 = scmp.ne.s32.totalorder %s59, %s62
      %p71 = scmp.eq.s32.totalorder %s14, 3
      %p72 = por %p70, %p71
      %p73 = scmp.ne.s32.totalorder %s62, %s63
      %p74 = scmp.eq.s32.totalorder %s14, 0
      %p75 = por %p73, %p74
      %p76 = scmp.ne.s32.totalorder %s62, %s63
      %p77 = scmp.eq.s32.totalorder %s15, 3
      %p78 = por %p76, %p77
      %p80 = scmp.ne.s32.totalorder %s63, %s79
      %p81 = scmp.eq.s32.totalorder %s15, 0
      %p82 = por %p80, %p81
      %s83 = ssub.s32 %s16, %s28
      %p84 = scmp.eq.s32.totalorder %s83, 0
      %s86 = sadd.s32 %s85, 1
      %s87 = scalar_select %p84, %s85, %s86
      %p90 = pneg %p84
      %p91 = scmp.eq.s32.totalorder %s9, 3
      %p92 = por %p90, %p91
      %p93 = scmp.ne.s32.totalorder %s85, %s88
      %p94 = scmp.eq.s32.totalorder %s9, 0
      %p95 = por %p93, %p94
      %p96 = scmp.ne.s32.totalorder %s85, %s88
      %p97 = scmp.eq.s32.totalorder %s14, 3
      %p98 = por %p96, %p97
      %p99 = scmp.ne.s32.totalorder %s88, %s89
      %p100 = scmp.eq.s32.totalorder %s14, 0
      %p101 = por %p99, %p100
      %p102 = scmp.ne.s32.totalorder %s88, %s89
      %p103 = scmp.eq.s32.totalorder %s15, 3
      %p104 = por %p102, %p103
      %p106 = scmp.ne.s32.totalorder %s89, %s105
      %p107 = scmp.eq.s32.totalorder %s15, 0
      %p108 = por %p106, %p107
      %s109 = ssub.s32 %s16, %s28
      %p110 = scmp.eq.s32.totalorder %s109, 0
      %s112 = sadd.s32 %s111, 1
      %s113 = scalar_select %p110, %s111, %s112
      %p116 = pneg %p110
      %p117 = scmp.eq.s32.totalorder %s9, 3
      %p118 = por %p116, %p117
      %p119 = scmp.ne.s32.totalorder %s111, %s114
      %p120 = scmp.eq.s32.totalorder %s9, 0
      %p121 = por %p119, %p120
      %p122 = scmp.ne.s32.totalorder %s111, %s114
      %p123 = scmp.eq.s32.totalorder %s14, 3
      %p124 = por %p122, %p123
      %p125 = scmp.ne.s32.totalorder %s114, %s115
      %p126 = scmp.eq.s32.totalorder %s14, 0
      %p127 = por %p125, %p126
      %p128 = scmp.ne.s32.totalorder %s114, %s115
      %p129 = scmp.eq.s32.totalorder %s15, 3
      %p130 = por %p128, %p129
      %p132 = scmp.ne.s32.totalorder %s115, %s131
      %p133 = scmp.eq.s32.totalorder %s15, 0
      %p134 = por %p132, %p133
      %p135 = scmp.le.s32.totalorder 1, %s9
      %p136 = scmp.lt.s32.totalorder %s9, 5
      %p137 = pnand %p135, %p136
      %p138 = pneg %p137
      // Predicated region
      $region9: #{net_forward.7} parent=5 // pred_check
        _
      $region10: #{net_forward.7} parent=5 // pred_check_branch
        %140 = sbr.rel (%p137) target = $region12
      $region11: #{net_forward.7} parent=5 // pred_region
        %s141 = ssub.s32 %s9, 1
      $region12: #{net_forward.7} parent=5 // pred_fallthru
        _
      %p142 = scmp.lt.s32.totalorder %s9, 4
      // Predicated region
      $region13: #{net_forward.7} parent=5 // pred_check
        %p143 = pneg %p142
      $region14: #{net_forward.7} parent=5 // pred_check_branch
        %145 = sbr.rel (%p143) target = $region16
      $region15: #{net_forward.7} parent=5 // pred_region
        // Predicated region
        $region17: #{net_forward.7} parent=15 // pred_check
          %p146 = pneg %p43
        $region18: #{net_forward.7} parent=15 // pred_check_branch
          %148 = sbr.rel (%p146) target = $region20
        $region19: #{net_forward.7} parent=15 // pred_region
          %s149 = sand.u32 %s33, 1
          %s150 = sand.u32 %s33, 1
          %s151 = smul.addr %s150, 64
          %s152 = scalar_lea.vmem [#allocation3], %s151
          %s153 = smul.u32 16, %s16
          %s154 = smul.addr %s153, 2
          %s155 = sadd.s32 %s17, %s154
          %s156 = smul.addr %s155, 4
          %s157 = scalar_lea.vmem %s0, %s156
          // Predicated region
          $region21: #{net_forward.7} parent=19 // pred_check
            _
          $region22: #{net_forward.7} parent=19 // pred_check_branch
            %159 = sbr.rel (0) target = $region24
          $region23: #{net_forward.7} parent=19 // pred_region
            // Predicated region
            $region25: #{net_forward.7} parent=23 // pred_check
              _
            $region26: #{net_forward.7} parent=23 // pred_check_branch
              %161 = sbr.rel target = $region28
            $region27: #{net_forward.7} parent=23 // pred_region
              // Predicated region
              $region40: #{net_forward.7} parent=27 // pred_check
                _
              $region41: #{net_forward.7} parent=27 // pred_check_branch
                %207 = sbr.rel (0) target = $region43
              $region42: #{net_forward.7} parent=27 // pred_region
                loop: start=0, step=1, limit=1
                $region44: #{net_forward.7} parent=42 // loop_pre_header
                  _
                $region45: #{net_forward.7} parent=42 // loop_header
                  %s209 = sphi 0, %s213
                  %p210 = scmp.ge.s32.totalorder %s209, 1
                  %s214 = sphi %s157, %s157
                  %s215 = sphi %s152, %s152
                $region46: #{net_forward.7} parent=42 // loop_header_branch
                  %212 = sbr.rel (%p210) target = $region50
                $region47: #{net_forward.7} parent=42 // loop_body
                  _
                $region48: #{net_forward.7} parent=42 // loop_footer
                  %s213 = sadd.s32 1, %s209
                $region49: #{net_forward.7} parent=42 // loop_footer_branch
                  %208 = sbr.rel target = $region45
                $region50: #{net_forward.7} parent=42 // loop_exit
                  _
                %s217 = ssub.s32 16, 1
                loop: start=0, step=1, limit=1
                $region51: #{net_forward.7} parent=42 // loop_pre_header
                  _
                $region52: #{net_forward.7} parent=42 // loop_header
                  %s219 = sphi 0, %s223
                  %p220 = scmp.ge.s32.totalorder %s219, 1
                  %s224 = sphi %s157, %s157
                  %s225 = sphi %s152, %s152
                $region53: #{net_forward.7} parent=42 // loop_header_branch
                  %222 = sbr.rel (%p220) target = $region57
                $region54: #{net_forward.7} parent=42 // loop_body
                  %v226 = vld [vmem:[%s224] sm:%s217]
                  %227 = vst [vmem:[%s225] sm:%s217] %v226
                  %v228 = vld [vmem:[%s224 + $0x8] sm:%s217]
                  %229 = vst [vmem:[%s225 + $0x4] sm:%s217] %v228
                  %v230 = vld [vmem:[%s224 + $0x10] sm:%s217]
                  %231 = vst [vmem:[%s225 + $0x8] sm:%s217] %v230
                  %v232 = vld [vmem:[%s224 + $0x18] sm:%s217]
                  %233 = vst [vmem:[%s225 + $0xc] sm:%s217] %v232
                  %v234 = vld [vmem:[%s224 + $0x20] sm:%s217]
                  %235 = vst [vmem:[%s225 + $0x10] sm:%s217] %v234
                  %v236 = vld [vmem:[%s224 + $0x28] sm:%s217]
                  %237 = vst [vmem:[%s225 + $0x14] sm:%s217] %v236
                  %v238 = vld [vmem:[%s224 + $0x30] sm:%s217]
                  %239 = vst [vmem:[%s225 + $0x18] sm:%s217] %v238
                  %v240 = vld [vmem:[%s224 + $0x38] sm:%s217]
                  %241 = vst [vmem:[%s225 + $0x1c] sm:%s217] %v240
                  %v242 = vld [vmem:[%s224 + $0x40] sm:%s217]
                  %243 = vst [vmem:[%s225 + $0x20] sm:%s217] %v242
                  %v244 = vld [vmem:[%s224 + $0x48] sm:%s217]
                  %245 = vst [vmem:[%s225 + $0x24] sm:%s217] %v244
                  %v246 = vld [vmem:[%s224 + $0x50] sm:%s217]
                  %247 = vst [vmem:[%s225 + $0x28] sm:%s217] %v246
                  %v248 = vld [vmem:[%s224 + $0x58] sm:%s217]
                  %249 = vst [vmem:[%s225 + $0x2c] sm:%s217] %v248
                  %v250 = vld [vmem:[%s224 + $0x60] sm:%s217]
                  %251 = vst [vmem:[%s225 + $0x30] sm:%s217] %v250
                  %v252 = vld [vmem:[%s224 + $0x68] sm:%s217]
                  %253 = vst [vmem:[%s225 + $0x34] sm:%s217] %v252
                  %v254 = vld [vmem:[%s224 + $0x70] sm:%s217]
                  %255 = vst [vmem:[%s225 + $0x38] sm:%s217] %v254
                  %v256 = vld [vmem:[%s224 + $0x78] sm:%s217]
                  %257 = vst [vmem:[%s225 + $0x3c] sm:%s217] %v256
                $region55: #{net_forward.7} parent=42 // loop_footer
                  %s223 = sadd.s32 1, %s219
                $region56: #{net_forward.7} parent=42 // loop_footer_branch
                  %218 = sbr.rel target = $region52
                $region57: #{net_forward.7} parent=42 // loop_exit
                  _
              $region43: #{net_forward.7} parent=27 // pred_fallthru
                _
            $region28: #{net_forward.7} parent=23 // pred_fallthru
              _
            // Predicated region
            $region29: #{net_forward.7} parent=23 // pred_check
              _
            $region30: #{net_forward.7} parent=23 // pred_check_branch
              %163 = sbr.rel (0) target = $region32
            $region31: #{net_forward.7} parent=23 // pred_region
              %s165 = ssub.s32 16, 1
              loop: start=0, step=1, limit=1
              $region33: #{net_forward.7} parent=31 // loop_pre_header
                _
              $region34: #{net_forward.7} parent=31 // loop_header
                %s167 = sphi 0, %s171
                %p168 = scmp.ge.s32.totalorder %s167, 1
                %s172 = sphi %s157, %s157
                %s173 = sphi %s152, %s152
              $region35: #{net_forward.7} parent=31 // loop_header_branch
                %170 = sbr.rel (%p168) target = $region39
              $region36: #{net_forward.7} parent=31 // loop_body
                %v174 = vld [vmem:[%s172] sm:%s165]
                %175 = vst [vmem:[%s173] sm:%s165] %v174
                %v176 = vld [vmem:[%s172 + $0x8] sm:%s165]
                %177 = vst [vmem:[%s173 + $0x4] sm:%s165] %v176
                %v178 = vld [vmem:[%s172 + $0x10] sm:%s165]
                %179 = vst [vmem:[%s173 + $0x8] sm:%s165] %v178
                %v180 = vld [vmem:[%s172 + $0x18] sm:%s165]
                %181 = vst [vmem:[%s173 + $0xc] sm:%s165] %v180
                %v182 = vld [vmem:[%s172 + $0x20] sm:%s165]
                %183 = vst [vmem:[%s173 + $0x10] sm:%s165] %v182
                %v184 = vld [vmem:[%s172 + $0x28] sm:%s165]
                %185 = vst [vmem:[%s173 + $0x14] sm:%s165] %v184
                %v186 = vld [vmem:[%s172 + $0x30] sm:%s165]
                %187 = vst [vmem:[%s173 + $0x18] sm:%s165] %v186
                %v188 = vld [vmem:[%s172 + $0x38] sm:%s165]
                %189 = vst [vmem:[%s173 + $0x1c] sm:%s165] %v188
                %v190 = vld [vmem:[%s172 + $0x40] sm:%s165]
                %191 = vst [vmem:[%s173 + $0x20] sm:%s165] %v190
                %v192 = vld [vmem:[%s172 + $0x48] sm:%s165]
                %193 = vst [vmem:[%s173 + $0x24] sm:%s165] %v192
                %v194 = vld [vmem:[%s172 + $0x50] sm:%s165]
                %195 = vst [vmem:[%s173 + $0x28] sm:%s165] %v194
                %v196 = vld [vmem:[%s172 + $0x58] sm:%s165]
                %197 = vst [vmem:[%s173 + $0x2c] sm:%s165] %v196
                %v198 = vld [vmem:[%s172 + $0x60] sm:%s165]
                %199 = vst [vmem:[%s173 + $0x30] sm:%s165] %v198
                %v200 = vld [vmem:[%s172 + $0x68] sm:%s165]
                %201 = vst [vmem:[%s173 + $0x34] sm:%s165] %v200
                %v202 = vld [vmem:[%s172 + $0x70] sm:%s165]
                %203 = vst [vmem:[%s173 + $0x38] sm:%s165] %v202
                %v204 = vld [vmem:[%s172 + $0x78] sm:%s165]
                %205 = vst [vmem:[%s173 + $0x3c] sm:%s165] %v204
              $region37: #{net_forward.7} parent=31 // loop_footer
                %s171 = sadd.s32 1, %s167
              $region38: #{net_forward.7} parent=31 // loop_footer_branch
                %166 = sbr.rel target = $region34
              $region39: #{net_forward.7} parent=31 // loop_exit
                _
            $region32: #{net_forward.7} parent=23 // pred_fallthru
              _
          $region24: #{net_forward.7} parent=19 // pred_fallthru
            _
          %258 = vnop
        $region20: #{net_forward.7} parent=15 // pred_fallthru
          _
        // Predicated region
        $region58: #{net_forward.7} parent=15 // pred_check
          %p259 = pneg %p69
        $region59: #{net_forward.7} parent=15 // pred_check_branch
          %261 = sbr.rel (%p259) target = $region61
        $region60: #{net_forward.7} parent=15 // pred_region
          %s262 = smul.u32 16, %s17
          %p263 = scmp.lt.s32.totalorder %s262, 31
          %s264 = scalar_select %p263, %s262, 31
          %s265 = smul.addr %s264, 4
          %s266 = scalar_lea.vmem %s1, %s265
          %s267 = smul.u32 16, %s17
        $region61: #{net_forward.7} parent=15 // pred_fallthru
          _
        // Predicated region
        $region62: #{net_forward.7} parent=15 // pred_check
          %p268 = pneg %p95
        $region63: #{net_forward.7} parent=15 // pred_check_branch
          %270 = sbr.rel (%p268) target = $region65
        $region64: #{net_forward.7} parent=15 // pred_region
          %s271 = smul.u32 16, %s16
          %p272 = scmp.lt.s32.totalorder %s271, 31
          %s273 = scalar_select %p272, %s271, 31
          %s274 = smul.addr %s273, 8
          %s275 = scalar_lea.vmem %s2, %s274
          %s276 = smul.u32 16, %s16
        $region65: #{net_forward.7} parent=15 // pred_fallthru
          _
      $region16: #{net_forward.7} parent=5 // pred_fallthru
        _
      %p277 = scmp.le.s32.totalorder 1, %s9
      %p278 = scmp.lt.s32.totalorder %s9, 5
      %p279 = pnand %p277, %p278
      %p280 = pneg %p279
      // Predicated region
      $region66: #{net_forward.7} parent=5 // pred_check
        _
      $region67: #{net_forward.7} parent=5 // pred_check_branch
        %282 = sbr.rel (%p279) target = $region69
      $region68: #{net_forward.7} parent=5 // pred_region
        %s283 = ssub.s32 %s9, 1
        %s284 = sand.u32 %s36, 1
        %s285 = sand.u32 %s36, 1
        %s286 = smul.addr %s285, 64
        %s287 = scalar_lea.vmem [#allocation3], %s286
        // Predicated region
        $region70: #{net_forward.7} parent=68 // pred_check
          %p288 = pneg %p49
        $region71: #{net_forward.7} parent=68 // pred_check_branch
          %290 = sbr.rel (%p288) target = $region73
        $region72: #{net_forward.7} parent=68 // pred_region
          _
        $region73: #{net_forward.7} parent=68 // pred_fallthru
          _
        %s291 = sand.u32 %s36, 1
        %s292 = sand.u32 %s36, 1
        %s293 = smul.addr %s292, 64
        %s294 = scalar_lea.vmem [#allocation3], %s293
        %p295 = pneg %p49
        %p296 = pneg %p46
        %s297 = smul.u32 16, %s19
        %p298 = scmp.lt.s32.totalorder %s297, 31
        %s299 = scalar_select %p298, %s297, 31
        %s300 = smul.addr %s299, 4
        %s301 = scalar_lea.vmem %s1, %s300
        %p302 = pneg %p75
        %p303 = pneg %p72
        %s304 = smul.u32 16, %s18
        %p305 = scmp.lt.s32.totalorder %s304, 31
        %s306 = scalar_select %p305, %s304, 31
        %s307 = smul.addr %s306, 8
        %s308 = scalar_lea.vmem %s2, %s307
        %p309 = pneg %p101
        %p310 = pneg %p98
        %p311 = pneg %p127
        %p312 = pneg %p124
        %s313 = smul.u32 16, %s18
        %p314 = scmp.lt.s32.totalorder %s313, 31
        %s315 = scalar_select %p314, %s313, 31
        %s316 = smul.addr %s315, 8
        %s317 = scalar_lea.vmem %s3, %s316
        %s318 = smul.u32 16, %s18
        %s319 = smul.u32 16, %s19
        %p320 = scmp.lt.s32.totalorder %s319, 31
        %s321 = scalar_select %p320, %s319, 31
        %s322 = smul.addr %s321, 4
        %s323 = scalar_lea.vmem %s1, %s322
        %s324 = smul.u32 16, %s19
        %s325 = smul.u32 16, %s18
        %p326 = scmp.lt.s32.totalorder %s325, 31
        %s327 = scalar_select %p326, %s325, 31
        %s328 = smul.addr %s327, 8
        %s329 = scalar_lea.vmem %s2, %s328
        %s330 = smul.u32 16, %s18
        %s331 = smul.u32 16, %s18
        %p332 = scmp.lt.s32.totalorder %s331, 31
        %s333 = scalar_select %p332, %s331, 31
        %s334 = smul.addr %s333, 8
        %s335 = scalar_lea.vmem %s3, %s334
        %s336 = smul.u32 16, %s18
        %p338 = scmp.eq.s32.totalorder %s19, 0
        // Predicated region
        $region74: #{net_forward.7} parent=68 // pred_check
          %p339 = pneg %p338
        $region75: #{net_forward.7} parent=68 // pred_check_branch
          %341 = sbr.rel (%p339) target = $region77
        $region76: #{net_forward.7} parent=68 // pred_region
          %342 = vst [vmem:[#allocation2] sm:$0xff] 0.0
          %343 = vst [vmem:[#allocation2 + $0x8] sm:$0xff] 0.0
          %344 = vst [vmem:[#allocation2 + $0x10] sm:$0xff] 0.0
          %345 = vst [vmem:[#allocation2 + $0x18] sm:$0xff] 0.0
          %346 = vst [vmem:[#allocation2 + $0x20] sm:$0xff] 0.0
          %347 = vst [vmem:[#allocation2 + $0x28] sm:$0xff] 0.0
          %348 = vst [vmem:[#allocation2 + $0x30] sm:$0xff] 0.0
          %349 = vst [vmem:[#allocation2 + $0x38] sm:$0xff] 0.0
          %350 = vst [vmem:[#allocation2 + $0x40] sm:$0xff] 0.0
          %351 = vst [vmem:[#allocation2 + $0x48] sm:$0xff] 0.0
          %352 = vst [vmem:[#allocation2 + $0x50] sm:$0xff] 0.0
          %353 = vst [vmem:[#allocation2 + $0x58] sm:$0xff] 0.0
          %354 = vst [vmem:[#allocation2 + $0x60] sm:$0xff] 0.0
          %355 = vst [vmem:[#allocation2 + $0x68] sm:$0xff] 0.0
          %356 = vst [vmem:[#allocation2 + $0x70] sm:$0xff] 0.0
          %357 = vst [vmem:[#allocation2 + $0x78] sm:$0xff] 0.0
        $region77: #{net_forward.7} parent=68 // pred_fallthru
          _
        %v358 = vld [vmem:[#allocation2] sm:$0xff]
        %v359 = vld [vmem:[#allocation2 + $0x8] sm:$0xff]
        %v360 = vld [vmem:[#allocation2 + $0x10] sm:$0xff]
        %v361 = vld [vmem:[#allocation2 + $0x18] sm:$0xff]
        %v362 = vld [vmem:[#allocation2 + $0x20] sm:$0xff]
        %v363 = vld [vmem:[#allocation2 + $0x28] sm:$0xff]
        %v364 = vld [vmem:[#allocation2 + $0x30] sm:$0xff]
        %v365 = vld [vmem:[#allocation2 + $0x38] sm:$0xff]
        %v366 = vld [vmem:[#allocation2 + $0x40] sm:$0xff]
        %v367 = vld [vmem:[#allocation2 + $0x48] sm:$0xff]
        %v368 = vld [vmem:[#allocation2 + $0x50] sm:$0xff]
        %v369 = vld [vmem:[#allocation2 + $0x58] sm:$0xff]
        %v370 = vld [vmem:[#allocation2 + $0x60] sm:$0xff]
        %v371 = vld [vmem:[#allocation2 + $0x68] sm:$0xff]
        %v372 = vld [vmem:[#allocation2 + $0x70] sm:$0xff]
        %v373 = vld [vmem:[#allocation2 + $0x78] sm:$0xff]
        %v374 = vld [vmem:[%s287] sm:$0xf]
        %v375 = vld [vmem:[%s287 + $0x4] sm:$0xf]
        %v376 = vld [vmem:[%s287 + $0x8] sm:$0xf]
        %v377 = vld [vmem:[%s287 + $0xc] sm:$0xf]
        %v378 = vld [vmem:[%s287 + $0x10] sm:$0xf]
        %v379 = vld [vmem:[%s287 + $0x14] sm:$0xf]
        %v380 = vld [vmem:[%s287 + $0x18] sm:$0xf]
        %v381 = vld [vmem:[%s287 + $0x1c] sm:$0xf]
        %v382 = vld [vmem:[%s287 + $0x20] sm:$0xf]
        %v383 = vld [vmem:[%s287 + $0x24] sm:$0xf]
        %v384 = vld [vmem:[%s287 + $0x28] sm:$0xf]
        %v385 = vld [vmem:[%s287 + $0x2c] sm:$0xf]
        %v386 = vld [vmem:[%s287 + $0x30] sm:$0xf]
        %v387 = vld [vmem:[%s287 + $0x34] sm:$0xf]
        %v388 = vld [vmem:[%s287 + $0x38] sm:$0xf]
        %v389 = vld [vmem:[%s287 + $0x3c] sm:$0xf]
        %v390 = vld [vmem:[%s323] sm:$0xf]
        %v391 = vld [vmem:[%s323 + $0x4] sm:$0xf]
        %v392 = vld [vmem:[%s323 + $0x8] sm:$0xf]
        %v393 = vld [vmem:[%s323 + $0xc] sm:$0xf]
        %v394 = vld [vmem:[%s323 + $0x10] sm:$0xf]
        %v395 = vld [vmem:[%s323 + $0x14] sm:$0xf]
        %v396 = vld [vmem:[%s323 + $0x18] sm:$0xf]
        %v397 = vld [vmem:[%s323 + $0x1c] sm:$0xf]
        %v398 = vld [vmem:[%s323 + $0x20] sm:$0xf]
        %v399 = vld [vmem:[%s323 + $0x24] sm:$0xf]
        %v400 = vld [vmem:[%s323 + $0x28] sm:$0xf]
        %v401 = vld [vmem:[%s323 + $0x2c] sm:$0xf]
        %v402 = vld [vmem:[%s323 + $0x30] sm:$0xf]
        %v403 = vld [vmem:[%s323 + $0x34] sm:$0xf]
        %v404 = vld [vmem:[%s323 + $0x38] sm:$0xf]
        %v405 = vld [vmem:[%s323 + $0x3c] sm:$0xf]
        %v422 = vunpack.c.l.b16 %v374
        %v423 = vunpack.c.l.b16 %v375
        %v424 = vunpack.c.l.b16 %v376
        %v425 = vunpack.c.l.b16 %v377
        %v426 = vunpack.c.l.b16 %v378
        %v427 = vunpack.c.l.b16 %v379
        %v428 = vunpack.c.l.b16 %v380
        %v429 = vunpack.c.l.b16 %v381
        %v430 = vunpack.c.l.b16 %v382
        %v431 = vunpack.c.l.b16 %v383
        %v432 = vunpack.c.l.b16 %v384
        %v433 = vunpack.c.l.b16 %v385
        %v434 = vunpack.c.l.b16 %v386
        %v435 = vunpack.c.l.b16 %v387
        %v436 = vunpack.c.l.b16 %v388
        %v437 = vunpack.c.l.b16 %v389
        %v438 = vpack.c.b16 %v423, %v422
        %v439 = vpack.c.b16 %v425, %v424
        %v440 = vpack.c.b16 %v427, %v426
        %v441 = vpack.c.b16 %v429, %v428
        %v442 = vpack.c.b16 %v431, %v430
        %v443 = vpack.c.b16 %v433, %v432
        %v444 = vpack.c.b16 %v435, %v434
        %v445 = vpack.c.b16 %v437, %v436
        %v470 = vunpack.c.l.b16 %v390
        %v471 = vunpack.c.l.b16 %v391
        %v472 = vunpack.c.l.b16 %v392
        %v473 = vunpack.c.l.b16 %v393
        %v474 = vunpack.c.l.b16 %v394
        %v475 = vunpack.c.l.b16 %v395
        %v476 = vunpack.c.l.b16 %v396
        %v477 = vunpack.c.l.b16 %v397
        %v478 = vunpack.c.l.b16 %v398
        %v479 = vunpack.c.l.b16 %v399
        %v480 = vunpack.c.l.b16 %v400
        %v481 = vunpack.c.l.b16 %v401
        %v482 = vunpack.c.l.b16 %v402
        %v483 = vunpack.c.l.b16 %v403
        %v484 = vunpack.c.l.b16 %v404
        %v485 = vunpack.c.l.b16 %v405
        %v486 = vpack.c.b16 %v471, %v470
        %v487 = vpack.c.b16 %v473, %v472
        %v488 = vpack.c.b16 %v475, %v474
        %v489 = vpack.c.b16 %v477, %v476
        %v490 = vpack.c.b16 %v479, %v478
        %v491 = vpack.c.b16 %v481, %v480
        %v492 = vpack.c.b16 %v483, %v482
        %v493 = vpack.c.b16 %v485, %v484
        %502 = vmatprep.subr.bf16.mxu0 0
        %503 = vmatpush1.bf16.msra.mxu0 %v493
        %504 = vmatprep.subr.bf16.mxu0 0
        %505 = vmatpush1.bf16.msra.mxu0 %v492
        %506 = vmatprep.subr.bf16.mxu0 0
        %507 = vmatpush1.bf16.msra.mxu0 %v491
        %508 = vmatprep.subr.bf16.mxu0 0
        %509 = vmatpush1.bf16.msra.mxu0 %v490
        %510 = vmatprep.subr.bf16.mxu0 0
        %511 = vmatpush1.bf16.msra.mxu0 %v489
        %512 = vmatprep.subr.bf16.mxu0 0
        %513 = vmatpush1.bf16.msra.mxu0 %v488
        %514 = vmatprep.subr.bf16.mxu0 0
        %515 = vmatpush1.bf16.msra.mxu0 %v487
        %516 = vmatprep.subr.bf16.mxu0 0
        %517 = vmatpush1.bf16.msra.mxu0 %v486
        %518 = vmatprep.subr.bf16.mxu0 0
        %519 = vmatpush2.bf16.msra.mxu0 0
        %520 = vmatprep.subr.bf16.mxu0 0
        %521 = vmatpush2.bf16.msra.mxu0 0
        %522 = vmatprep.subr.bf16.mxu0 0
        %523 = vmatpush2.bf16.msra.mxu0 0
        %524 = vmatprep.subr.bf16.mxu0 0
        %525 = vmatpush2.bf16.msra.mxu0 0
        %526 = vmatprep.subr.bf16.mxu0 0
        %527 = vmatpush2.bf16.msra.mxu0 0
        %528 = vmatprep.subr.bf16.mxu0 0
        %529 = vmatpush2.bf16.msra.mxu0 0
        %530 = vmatprep.subr.bf16.mxu0 0
        %531 = vmatpush2.bf16.msra.mxu0 0
        %532 = vmatprep.subr.bf16.mxu0 0
        %533 = vmatpush2.bf16.msra.mxu0 0
        %534 = vmatprep.mubr.bf16.mxu0 0
        %535 = vmatmul.mubr.bf16.gmra.mxu0 %v438
        %v536 = vpop.f32.mrf.mxu0
        %v537 = vadd.f32 0.0, %v536
        %v538 = vpop.f32.mrf.mxu0
        %v539 = vpop.f32.mrf.mxu0
        %v540 = vadd.f32 0.0, %v539
        %v541 = vpop.f32.mrf.mxu0
        %542 = vmatprep.mubr.bf16.mxu0 0
        %543 = vmatmul.mubr.bf16.gmra.mxu0 %v439
        %v544 = vpop.f32.mrf.mxu0
        %v545 = vadd.f32 0.0, %v544
        %v546 = vpop.f32.mrf.mxu0
        %v547 = vpop.f32.mrf.mxu0
        %v548 = vadd.f32 0.0, %v547
        %v549 = vpop.f32.mrf.mxu0
        %550 = vmatprep.mubr.bf16.mxu0 0
        %551 = vmatmul.mubr.bf16.gmra.mxu0 %v440
        %v552 = vpop.f32.mrf.mxu0
        %v553 = vadd.f32 0.0, %v552
        %v554 = vpop.f32.mrf.mxu0
        %v555 = vpop.f32.mrf.mxu0
        %v556 = vadd.f32 0.0, %v555
        %v557 = vpop.f32.mrf.mxu0
        %558 = vmatprep.mubr.bf16.mxu0 0
        %559 = vmatmul.mubr.bf16.gmra.mxu0 %v441
        %v560 = vpop.f32.mrf.mxu0
        %v561 = vadd.f32 0.0, %v560
        %v562 = vpop.f32.mrf.mxu0
        %v563 = vpop.f32.mrf.mxu0
        %v564 = vadd.f32 0.0, %v563
        %v565 = vpop.f32.mrf.mxu0
        %566 = vmatprep.mubr.bf16.mxu0 0
        %567 = vmatmul.mubr.bf16.gmra.mxu0 %v442
        %v568 = vpop.f32.mrf.mxu0
        %v569 = vadd.f32 0.0, %v568
        %v570 = vpop.f32.mrf.mxu0
        %v571 = vpop.f32.mrf.mxu0
        %v572 = vadd.f32 0.0, %v571
        %v573 = vpop.f32.mrf.mxu0
        %574 = vmatprep.mubr.bf16.mxu0 0
        %575 = vmatmul.mubr.bf16.gmra.mxu0 %v443
        %v576 = vpop.f32.mrf.mxu0
        %v577 = vadd.f32 0.0, %v576
        %v578 = vpop.f32.mrf.mxu0
        %v579 = vpop.f32.mrf.mxu0
        %v580 = vadd.f32 0.0, %v579
        %v581 = vpop.f32.mrf.mxu0
        %582 = vmatprep.mubr.bf16.mxu0 0
        %583 = vmatmul.mubr.bf16.gmra.mxu0 %v444
        %v584 = vpop.f32.mrf.mxu0
        %v585 = vadd.f32 0.0, %v584
        %v586 = vpop.f32.mrf.mxu0
        %v587 = vpop.f32.mrf.mxu0
        %v588 = vadd.f32 0.0, %v587
        %v589 = vpop.f32.mrf.mxu0
        %590 = vmatprep.mubr.bf16.mxu0 0
        %591 = vmatmul.mubr.bf16.gmra.mxu0 %v445
        %v592 = vpop.f32.mrf.mxu0
        %v593 = vadd.f32 0.0, %v592
        %v594 = vpop.f32.mrf.mxu0
        %v595 = vpop.f32.mrf.mxu0
        %v596 = vadd.f32 0.0, %v595
        %v597 = vpop.f32.mrf.mxu0
        %598 = vdwg.mxu0
        %v599 = vadd.f32 %v358, %v537
        %v600 = vadd.f32 %v359, %v540
        %v601 = vadd.f32 %v360, %v545
        %v602 = vadd.f32 %v361, %v548
        %v603 = vadd.f32 %v362, %v553
        %v604 = vadd.f32 %v363, %v556
        %v605 = vadd.f32 %v364, %v561
        %v606 = vadd.f32 %v365, %v564
        %v607 = vadd.f32 %v366, %v569
        %v608 = vadd.f32 %v367, %v572
        %v609 = vadd.f32 %v368, %v577
        %v610 = vadd.f32 %v369, %v580
        %v611 = vadd.f32 %v370, %v585
        %v612 = vadd.f32 %v371, %v588
        %v613 = vadd.f32 %v372, %v593
        %v614 = vadd.f32 %v373, %v596
        %615 = vst [vmem:[#allocation2] sm:$0xff] %v599
        %616 = vst [vmem:[#allocation2 + $0x8] sm:$0xff] %v600
        %617 = vst [vmem:[#allocation2 + $0x10] sm:$0xff] %v601
        %618 = vst [vmem:[#allocation2 + $0x18] sm:$0xff] %v602
        %619 = vst [vmem:[#allocation2 + $0x20] sm:$0xff] %v603
        %620 = vst [vmem:[#allocation2 + $0x28] sm:$0xff] %v604
        %621 = vst [vmem:[#allocation2 + $0x30] sm:$0xff] %v605
        %622 = vst [vmem:[#allocation2 + $0x38] sm:$0xff] %v606
        %623 = vst [vmem:[#allocation2 + $0x40] sm:$0xff] %v607
        %624 = vst [vmem:[#allocation2 + $0x48] sm:$0xff] %v608
        %625 = vst [vmem:[#allocation2 + $0x50] sm:$0xff] %v609
        %626 = vst [vmem:[#allocation2 + $0x58] sm:$0xff] %v610
        %627 = vst [vmem:[#allocation2 + $0x60] sm:$0xff] %v611
        %628 = vst [vmem:[#allocation2 + $0x68] sm:$0xff] %v612
        %629 = vst [vmem:[#allocation2 + $0x70] sm:$0xff] %v613
        %630 = vst [vmem:[#allocation2 + $0x78] sm:$0xff] %v614
        %p631 = scmp.eq.s32.totalorder %s19, 1
        // Predicated region
        $region78: #{net_forward.7} parent=68 // pred_check
          %p632 = pneg %p631
        $region79: #{net_forward.7} parent=68 // pred_check_branch
          %634 = sbr.rel (%p632) target = $region81
        $region80: #{net_forward.7} parent=68 // pred_region
          %v635 = vld [vmem:[#allocation2] sm:$0xff]
          %v636 = vld [vmem:[#allocation2 + $0x8] sm:$0xff]
          %v637 = vld [vmem:[#allocation2 + $0x10] sm:$0xff]
          %v638 = vld [vmem:[#allocation2 + $0x18] sm:$0xff]
          %v639 = vld [vmem:[#allocation2 + $0x20] sm:$0xff]
          %v640 = vld [vmem:[#allocation2 + $0x28] sm:$0xff]
          %v641 = vld [vmem:[#allocation2 + $0x30] sm:$0xff]
          %v642 = vld [vmem:[#allocation2 + $0x38] sm:$0xff]
          %v643 = vld [vmem:[#allocation2 + $0x40] sm:$0xff]
          %v644 = vld [vmem:[#allocation2 + $0x48] sm:$0xff]
          %v645 = vld [vmem:[#allocation2 + $0x50] sm:$0xff]
          %v646 = vld [vmem:[#allocation2 + $0x58] sm:$0xff]
          %v647 = vld [vmem:[#allocation2 + $0x60] sm:$0xff]
          %v648 = vld [vmem:[#allocation2 + $0x68] sm:$0xff]
          %v649 = vld [vmem:[#allocation2 + $0x70] sm:$0xff]
          %v650 = vld [vmem:[#allocation2 + $0x78] sm:$0xff]
          %v651 = vld [vmem:[%s329] sm:$0xff]
          %v652 = vld [vmem:[%s329 + $0x8] sm:$0xff]
          %v653 = vld [vmem:[%s329 + $0x10] sm:$0xff]
          %v654 = vld [vmem:[%s329 + $0x18] sm:$0xff]
          %v655 = vld [vmem:[%s329 + $0x20] sm:$0xff]
          %v656 = vld [vmem:[%s329 + $0x28] sm:$0xff]
          %v657 = vld [vmem:[%s329 + $0x30] sm:$0xff]
          %v658 = vld [vmem:[%s329 + $0x38] sm:$0xff]
          %v659 = vld [vmem:[%s329 + $0x40] sm:$0xff]
          %v660 = vld [vmem:[%s329 + $0x48] sm:$0xff]
          %v661 = vld [vmem:[%s329 + $0x50] sm:$0xff]
          %v662 = vld [vmem:[%s329 + $0x58] sm:$0xff]
          %v663 = vld [vmem:[%s329 + $0x60] sm:$0xff]
          %v664 = vld [vmem:[%s329 + $0x68] sm:$0xff]
          %v665 = vld [vmem:[%s329 + $0x70] sm:$0xff]
          %v666 = vld [vmem:[%s329 + $0x78] sm:$0xff]
          %v667 = vadd.f32 %v635, %v651
          %v668 = vadd.f32 %v636, %v652
          %v669 = vadd.f32 %v637, %v653
          %v670 = vadd.f32 %v638, %v654
          %v671 = vadd.f32 %v639, %v655
          %v672 = vadd.f32 %v640, %v656
          %v673 = vadd.f32 %v641, %v657
          %v674 = vadd.f32 %v642, %v658
          %v675 = vadd.f32 %v643, %v659
          %v676 = vadd.f32 %v644, %v660
          %v677 = vadd.f32 %v645, %v661
          %v678 = vadd.f32 %v646, %v662
          %v679 = vadd.f32 %v647, %v663
          %v680 = vadd.f32 %v648, %v664
          %v681 = vadd.f32 %v649, %v665
          %v682 = vadd.f32 %v650, %v666
          %v683 = vlaneseq
          %v684 = vand.u32 %v683, 127
          %vm685 = vcmp.lt.s32.totalorder %v684, 8
          %v686 = vsel %vm685, %v667, -1e+30
          %v687 = vsel %vm685, %v668, -1e+30
          %v688 = vsel %vm685, %v669, -1e+30
          %v689 = vsel %vm685, %v670, -1e+30
          %v690 = vsel %vm685, %v671, -1e+30
          %v691 = vsel %vm685, %v672, -1e+30
          %v692 = vsel %vm685, %v673, -1e+30
          %v693 = vsel %vm685, %v674, -1e+30
          %v694 = vsel %vm685, %v675, -1e+30
          %v695 = vsel %vm685, %v676, -1e+30
          %v696 = vsel %vm685, %v677, -1e+30
          %v697 = vsel %vm685, %v678, -1e+30
          %v698 = vsel %vm685, %v679, -1e+30
          %v699 = vsel %vm685, %v680, -1e+30
          %v700 = vsel %vm685, %v681, -1e+30
          %v701 = vsel %vm685, %v682, -1e+30
          %702 = vmax.xlane.f32.xlu0 %v686
          %v703 = vpop.xlane.xlu0 %702
          %704 = vmax.xlane.f32.xlu0 %v687
          %v705 = vpop.xlane.xlu0 %704
          %706 = vmax.xlane.f32.xlu0 %v688
          %v707 = vpop.xlane.xlu0 %706
          %708 = vmax.xlane.f32.xlu0 %v689
          %v709 = vpop.xlane.xlu0 %708
          %710 = vmax.xlane.f32.xlu0 %v690
          %v711 = vpop.xlane.xlu0 %710
          %712 = vmax.xlane.f32.xlu0 %v691
          %v713 = vpop.xlane.xlu0 %712
          %714 = vmax.xlane.f32.xlu0 %v692
          %v715 = vpop.xlane.xlu0 %714
          %716 = vmax.xlane.f32.xlu0 %v693
          %v717 = vpop.xlane.xlu0 %716
          %718 = vmax.xlane.f32.xlu0 %v694
          %v719 = vpop.xlane.xlu0 %718
          %720 = vmax.xlane.f32.xlu0 %v695
          %v721 = vpop.xlane.xlu0 %720
          %722 = vmax.xlane.f32.xlu0 %v696
          %v723 = vpop.xlane.xlu0 %722
          %724 = vmax.xlane.f32.xlu0 %v697
          %v725 = vpop.xlane.xlu0 %724
          %726 = vmax.xlane.f32.xlu0 %v698
          %v727 = vpop.xlane.xlu0 %726
          %728 = vmax.xlane.f32.xlu0 %v699
          %v729 = vpop.xlane.xlu0 %728
          %730 = vmax.xlane.f32.xlu0 %v700
          %v731 = vpop.xlane.xlu0 %730
          %732 = vmax.xlane.f32.xlu0 %v701
          %v733 = vpop.xlane.xlu0 %732
          %v734 = vsub.f32 %v686, %v703
          %v735 = vsub.f32 %v687, %v705
          %v736 = vsub.f32 %v688, %v707
          %v737 = vsub.f32 %v689, %v709
          %v738 = vsub.f32 %v690, %v711
          %v739 = vsub.f32 %v691, %v713
          %v740 = vsub.f32 %v692, %v715
          %v741 = vsub.f32 %v693, %v717
          %v742 = vsub.f32 %v694, %v719
          %v743 = vsub.f32 %v695, %v721
          %v744 = vsub.f32 %v696, %v723
          %v745 = vsub.f32 %v697, %v725
          %v746 = vsub.f32 %v698, %v727
          %v747 = vsub.f32 %v699, %v729
          %v748 = vsub.f32 %v700, %v731
          %v749 = vsub.f32 %v701, %v733
          %v750 = vmul.f32 %v734, 1.442695
          %v751 = vpow.pop %v750
          %v752 = vmul.f32 %v735, 1.442695
          %v753 = vpow.pop %v752
          %v754 = vmul.f32 %v736, 1.442695
          %v755 = vpow.pop %v754
          %v756 = vmul.f32 %v737, 1.442695
          %v757 = vpow.pop %v756
          %v758 = vmul.f32 %v738, 1.442695
          %v759 = vpow.pop %v758
          %v760 = vmul.f32 %v739, 1.442695
          %v761 = vpow.pop %v760
          %v762 = vmul.f32 %v740, 1.442695
          %v763 = vpow.pop %v762
          %v764 = vmul.f32 %v741, 1.442695
          %v765 = vpow.pop %v764
          %v766 = vmul.f32 %v742, 1.442695
          %v767 = vpow.pop %v766
          %v768 = vmul.f32 %v743, 1.442695
          %v769 = vpow.pop %v768
          %v770 = vmul.f32 %v744, 1.442695
          %v771 = vpow.pop %v770
          %v772 = vmul.f32 %v745, 1.442695
          %v773 = vpow.pop %v772
          %v774 = vmul.f32 %v746, 1.442695
          %v775 = vpow.pop %v774
          %v776 = vmul.f32 %v747, 1.442695
          %v777 = vpow.pop %v776
          %v778 = vmul.f32 %v748, 1.442695
          %v779 = vpow.pop %v778
          %v780 = vmul.f32 %v749, 1.442695
          %v781 = vpow.pop %v780
          %782 = vadd.xlane.f32.xlu0 %v751
          %v783 = vpop.xlane.xlu0 %782
          %784 = vadd.xlane.f32.xlu0 %v753
          %v785 = vpop.xlane.xlu0 %784
          %786 = vadd.xlane.f32.xlu0 %v755
          %v787 = vpop.xlane.xlu0 %786
          %788 = vadd.xlane.f32.xlu0 %v757
          %v789 = vpop.xlane.xlu0 %788
          %790 = vadd.xlane.f32.xlu0 %v759
          %v791 = vpop.xlane.xlu0 %790
          %792 = vadd.xlane.f32.xlu0 %v761
          %v793 = vpop.xlane.xlu0 %792
          %794 = vadd.xlane.f32.xlu0 %v763
          %v795 = vpop.xlane.xlu0 %794
          %796 = vadd.xlane.f32.xlu0 %v765
          %v797 = vpop.xlane.xlu0 %796
          %798 = vadd.xlane.f32.xlu0 %v767
          %v799 = vpop.xlane.xlu0 %798
          %800 = vadd.xlane.f32.xlu0 %v769
          %v801 = vpop.xlane.xlu0 %800
          %802 = vadd.xlane.f32.xlu0 %v771
          %v803 = vpop.xlane.xlu0 %802
          %804 = vadd.xlane.f32.xlu0 %v773
          %v805 = vpop.xlane.xlu0 %804
          %806 = vadd.xlane.f32.xlu0 %v775
          %v807 = vpop.xlane.xlu0 %806
          %808 = vadd.xlane.f32.xlu0 %v777
          %v809 = vpop.xlane.xlu0 %808
          %810 = vadd.xlane.f32.xlu0 %v779
          %v811 = vpop.xlane.xlu0 %810
          %812 = vadd.xlane.f32.xlu0 %v781
          %v813 = vpop.xlane.xlu0 %812
          %v814 = vlog2.pop %v783
          %v815 = vmul.f32 %v814, 0.6931472
          %v816 = vlog2.pop %v785
          %v817 = vmul.f32 %v816, 0.6931472
          %v818 = vlog2.pop %v787
          %v819 = vmul.f32 %v818, 0.6931472
          %v820 = vlog2.pop %v789
          %v821 = vmul.f32 %v820, 0.6931472
          %v822 = vlog2.pop %v791
          %v823 = vmul.f32 %v822, 0.6931472
          %v824 = vlog2.pop %v793
          %v825 = vmul.f32 %v824, 0.6931472
          %v826 = vlog2.pop %v795
          %v827 = vmul.f32 %v826, 0.6931472
          %v828 = vlog2.pop %v797
          %v829 = vmul.f32 %v828, 0.6931472
          %v830 = vlog2.pop %v799
          %v831 = vmul.f32 %v830, 0.6931472
          %v832 = vlog2.pop %v801
          %v833 = vmul.f32 %v832, 0.6931472
          %v834 = vlog2.pop %v803
          %v835 = vmul.f32 %v834, 0.6931472
          %v836 = vlog2.pop %v805
          %v837 = vmul.f32 %v836, 0.6931472
          %v838 = vlog2.pop %v807
          %v839 = vmul.f32 %v838, 0.6931472
          %v840 = vlog2.pop %v809
          %v841 = vmul.f32 %v840, 0.6931472
          %v842 = vlog2.pop %v811
          %v843 = vmul.f32 %v842, 0.6931472
          %v844 = vlog2.pop %v813
          %v845 = vmul.f32 %v844, 0.6931472
          %v846 = vsub.f32 %v734, %v815
          %v847 = vsub.f32 %v735, %v817
          %v848 = vsub.f32 %v736, %v819
          %v849 = vsub.f32 %v737, %v821
          %v850 = vsub.f32 %v738, %v823
          %v851 = vsub.f32 %v739, %v825
          %v852 = vsub.f32 %v740, %v827
          %v853 = vsub.f32 %v741, %v829
          %v854 = vsub.f32 %v742, %v831
          %v855 = vsub.f32 %v743, %v833
          %v856 = vsub.f32 %v744, %v835
          %v857 = vsub.f32 %v745, %v837
          %v858 = vsub.f32 %v746, %v839
          %v859 = vsub.f32 %v747, %v841
          %v860 = vsub.f32 %v748, %v843
          %v861 = vsub.f32 %v749, %v845
          %862 = vst [vmem:[%s335] sm:$0xff] %v846
          %863 = vst [vmem:[%s335 + $0x8] sm:$0xff] %v847
          %864 = vst [vmem:[%s335 + $0x10] sm:$0xff] %v848
          %865 = vst [vmem:[%s335 + $0x18] sm:$0xff] %v849
          %866 = vst [vmem:[%s335 + $0x20] sm:$0xff] %v850
          %867 = vst [vmem:[%s335 + $0x28] sm:$0xff] %v851
          %868 = vst [vmem:[%s335 + $0x30] sm:$0xff] %v852
          %869 = vst [vmem:[%s335 + $0x38] sm:$0xff] %v853
          %870 = vst [vmem:[%s335 + $0x40] sm:$0xff] %v854
          %871 = vst [vmem:[%s335 + $0x48] sm:$0xff] %v855
          %872 = vst [vmem:[%s335 + $0x50] sm:$0xff] %v856
          %873 = vst [vmem:[%s335 + $0x58] sm:$0xff] %v857
          %874 = vst [vmem:[%s335 + $0x60] sm:$0xff] %v858
          %875 = vst [vmem:[%s335 + $0x68] sm:$0xff] %v859
          %876 = vst [vmem:[%s335 + $0x70] sm:$0xff] %v860
          %877 = vst [vmem:[%s335 + $0x78] sm:$0xff] %v861
        $region81: #{net_forward.7} parent=68 // pred_fallthru
          _
        %s878 = smul.u32 16, %s18
        %p879 = scmp.lt.s32.totalorder %s878, 31
        %s880 = scalar_select %p879, %s878, 31
        %s881 = smul.addr %s880, 8
        %s882 = scalar_lea.vmem %s3, %s881
        // Predicated region
        $region82: #{net_forward.7} parent=68 // pred_check
          %p883 = pneg %p124
        $region83: #{net_forward.7} parent=68 // pred_check_branch
          %885 = sbr.rel (%p883) target = $region85
        $region84: #{net_forward.7} parent=68 // pred_region
          %s886 = smul.u32 16, %s18
        $region85: #{net_forward.7} parent=68 // pred_fallthru
          _
      $region69: #{net_forward.7} parent=5 // pred_fallthru
        _
      %p887 = scmp.le.s32.totalorder 2, %s9
      // Predicated region
      $region86: #{net_forward.7} parent=5 // pred_check
        %p888 = pneg %p887
      $region87: #{net_forward.7} parent=5 // pred_check_branch
        %890 = sbr.rel (%p888) target = $region89
      $region88: #{net_forward.7} parent=5 // pred_region
        %s891 = ssub.s32 %s9, 2
        // Predicated region
        $region90: #{net_forward.7} parent=88 // pred_check
          %p892 = pneg %p130
        $region91: #{net_forward.7} parent=88 // pred_check_branch
          %894 = sbr.rel (%p892) target = $region93
        $region92: #{net_forward.7} parent=88 // pred_region
          %s895 = smul.u32 16, %s20
          %p896 = scmp.lt.s32.totalorder %s895, 31
          %s897 = scalar_select %p896, %s895, 31
          %s898 = smul.addr %s897, 8
          %s899 = scalar_lea.vmem %s3, %s898
        $region93: #{net_forward.7} parent=88 // pred_fallthru
          _
      $region89: #{net_forward.7} parent=5 // pred_fallthru
        _
    $region6: #{net_forward.7} parent=1 // loop_footer
      %s13 = sadd.s32 1, %s9
    $region7: #{net_forward.7} parent=1 // loop_footer_branch
      %8 = sbr.rel target = $region3
    $region8: #{net_forward.7} parent=1 // loop_exit
      _

</llo_original>
